<compile_context>
chip_gen: v7x
topology: tpu7x:2x2x1
jax: 0.10.0
libtpu: 0.0.40
codegen_flags: <defaults>
</compile_context>

<pallas_src>
import functools

import jax
import jax.numpy as jnp
from jax import lax
from jax.experimental import pallas as pl
from jax.experimental.pallas import tpu as pltpu

TAU = 1.5
INV_TAU = float(1.0 / TAU)
NUM_HEADS = 8
BN_EPS = 1e-5
PREC = lax.Precision.HIGHEST      # reference only


# ----------------------------- Pallas kernel ---------------------------------

def _lif_step(v, x, thr):
    """One spikingjelly LIF step (decay_input=True, hard reset to 0, tau=1.5)."""
    v = v + (x - v) * INV_TAU
    fire = v >= thr
    spk = fire.astype(jnp.float32)
    v = jnp.where(fire, 0.0, v)
    return v, spk


def ssa_kernel(T, Bb, N,
               x_ref, wqkv_hi_ref, wqkv_lo_ref, bqkv_ref,
               wp_hi_ref, wp_lo_ref, bp_ref, mask_ref, out_ref):
    # x_ref / out_ref : (C, T*Bb*N)  -- lanes ordered (t, b_local, n); the batch
    #                                   grid dim is squeezed by the BlockSpec.
    C = x_ref.shape[0]
    TW = Bb * N                    # per-t lane width (=128 for Bb=2, N=64)
    F = T * Bb                     # attention "frames" (t, b_local)

    # Weights / biases / mask loaded once (hoisted out of all time loops).
    wq_hi = wqkv_hi_ref[...]       # (3C, C) bf16
    wq_lo = wqkv_lo_ref[...]       # (3C, C) bf16
    b_qkv = bqkv_ref[...]          # (3C, 1) f32
    wp_hi = wp_hi_ref[...]         # (C, C)  bf16
    wp_lo = wp_lo_ref[...]         # (C, C)  bf16
    b_p = bp_ref[...]              # (C, 1)  f32
    mask = mask_ref[...].astype(jnp.float32)   # (F*C, F*C), 0.125 / 0.0

    x = x_ref[...]                 # (C, T*Bb*N) f32

    # ---- stage 1: proj_lif recurrence over T (full-lane VPU work) ------------
    v = jnp.zeros((C, TW), jnp.float32)
    s_list = []
    for t in range(T):                               # T static & small: unroll
        v, s = _lif_step(v, x[:, t * TW:(t + 1) * TW], 1.0)   # 128-aligned slice
        s_list.append(s.astype(jnp.bfloat16))        # spikes exact in bf16
    s_proj = jnp.concatenate(s_list, axis=1)         # (C, T*Bb*N) bf16

    # ---- stage 2: fused q/k/v conv + folded BN (exact hi/lo, no RHS dup) -----
    qkv_pre = (jnp.dot(wq_hi, s_proj, preferred_element_type=jnp.float32)
               + jnp.dot(wq_lo, s_proj, preferred_element_type=jnp.float32)
               + b_qkv)                              # (3C, T*Bb*N) f32

    # ---- stage 3a: q/k/v LIF over T; stack spikes into attention layout ------
    # Attention layout: rows = (t, b_local, c) on sublanes, lanes = n.
    zero = jnp.zeros((C, TW), jnp.float32)
    v_q, v_k, v_v = zero, zero, zero
    q_rows, k_rows, v_rows = [], [], []
    for t in range(T):
        pre = qkv_pre[:, t * TW:(t + 1) * TW]        # (3C, TW), 128-aligned
        v_q, s_q = _lif_step(v_q, pre[0:C], 1.0)
        v_k, s_k = _lif_step(v_k, pre[C:2 * C], 1.0)
        v_v, s_v = _lif_step(v_v, pre[2 * C:3 * C], 1.0)
        for b in range(Bb):
            sl = slice(b * N, (b + 1) * N)
            q_rows.append(s_q[:, sl].astype(jnp.bfloat16))
            k_rows.append(s_k[:, sl].astype(jnp.bfloat16))
            v_rows.append(s_v[:, sl].astype(jnp.bfloat16))
    s_q_all = jnp.concatenate(q_rows, axis=0)        # (F*C, N) bf16
    s_k_all = jnp.concatenate(k_rows, axis=0)        # (F*C, N) bf16
    s_v_all = jnp.concatenate(v_rows, axis=0)        # (F*C, N) bf16

    # ---- stage 3b: batched spiking attention — TWO MXU matmuls ---------------
    # S[(f,c),(f',c')] = sum_n s_v[(f,c),n] * s_k[(f',c'),n]
    S = lax.dot_general(s_v_all, s_k_all, (((1,), (1,)), ((), ())),
                        preferred_element_type=jnp.float32)    # (F*C, F*C)
    # Keep only same-frame, same-head entries; fold the 0.125 scale.  Values are
    # multiples of 0.125 <= 8 -> exact in bf16.
    S = (S * mask).astype(jnp.bfloat16)
    oh = jnp.dot(S, s_q_all, preferred_element_type=jnp.float32)  # (F*C, N)

    # ---- stage 3c: attn_lif (thr=0.5) over T; back to conv layout ------------
    v_a = jnp.zeros((Bb * C, N), jnp.float32)
    cols = []
    for t in range(T):
        v_a, s_a = _lif_step(v_a, oh[t * Bb * C:(t + 1) * Bb * C], 0.5)
        s_a = s_a.astype(jnp.bfloat16)               # (Bb*C, N), rows (b, c)
        for b in range(Bb):
            cols.append(s_a[b * C:(b + 1) * C])      # (C, N), sublane-aligned
    s_attn = jnp.concatenate(cols, axis=1)           # (C, T*Bb*N) bf16

    # ---- stage 4: proj conv + bias + folded BN; single lane-dense store ------
    y = (jnp.dot(wp_hi, s_attn, preferred_element_type=jnp.float32)
         + jnp.dot(wp_lo, s_attn, preferred_element_type=jnp.float32)
         + b_p)                                      # (C, T*Bb*N) f32
    out_ref[...] = y


# --------------------------------- wrapper ------------------------------------

def spiking_self_attention(x, params, b_blk=None):
    """x: (T, B, C, H, W) float32 -> (T, B, C, H, W)."""
    T, B, C, Hs, Ws = x.shape
    N = Hs * Ws
    if b_blk is None:
        b_blk = 2 if B % 2 == 0 else 1
    assert B % b_blk == 0
    G = B // b_blk                 # grid steps (>=2 in the test: v7x has 2 TCs)
    F = T * b_blk
    Dh = C // NUM_HEADS

    wqkv_hi, wqkv_lo, b_qkv, wp_hi, wp_lo, b_p = params

    # (T,B,C,H,W) -> (G, C, T*b_blk*N) with lanes ordered (t, b_local, n).
    # Wrapper-side layout plumbing so the kernel's loads/stores are lane-dense.
    x_in = (x.reshape(T, G, b_blk, C, N)
              .transpose(1, 3, 0, 2, 4)
              .reshape(G, C, F * N))

    # Block-diagonal mask: same (t, b_local) frame AND same head; 0.125 folded in.
    idx = jnp.arange(F * C)
    frame = idx // C
    head = (idx % C) // Dh
    same = (frame[:, None] == frame[None, :]) & (head[:, None] == head[None, :])
    mask = jnp.where(same, 0.125, 0.0).astype(jnp.bfloat16)     # (F*C, F*C)

    kernel = functools.partial(ssa_kernel, T, b_blk, N)
    io_spec = pl.BlockSpec((None, C, F * N), lambda g: (g, 0, 0))
    full = lambda g: (0, 0)

    out = pl.pallas_call(
        kernel,
        out_shape=jax.ShapeDtypeStruct((G, C, F * N), jnp.float32),
        grid=(G,),
        in_specs=[io_spec,
                  pl.BlockSpec((3 * C, C), full),      # W_qkv hi
                  pl.BlockSpec((3 * C, C), full),      # W_qkv lo
                  pl.BlockSpec((3 * C, 1), full),      # b_qkv
                  pl.BlockSpec((C, C), full),          # W_proj hi
                  pl.BlockSpec((C, C), full),          # W_proj lo
                  pl.BlockSpec((C, 1), full),          # b_proj
                  pl.BlockSpec((F * C, F * C), full)], # attention mask
        out_specs=io_spec,
        compiler_params=pltpu.CompilerParams(dimension_semantics=("parallel",)),
    )(x_in, wqkv_hi, wqkv_lo, b_qkv, wp_hi, wp_lo, b_p, mask)

    # (G, C, T*b_blk*N) -> (T, B, C, H, W)
    return (out.reshape(G, C, T, b_blk, N)
               .transpose(2, 0, 3, 1, 4)
               .reshape(T, B, C, Hs, Ws))


# ------------------------- parameter construction -----------------------------

def make_params(key, C):
    ks = jax.random.split(key, 9)

    def conv_w(k):
        return jax.random.normal(k, (C, C), jnp.float32) / jnp.sqrt(float(C))

    def bn_params(k):
        kg, kb, km, kv = jax.random.split(k, 4)
        gamma = 1.0 + 0.1 * jax.random.normal(kg, (C,), jnp.float32)
        beta = 0.1 * jax.random.normal(kb, (C,), jnp.float32)
        mean = 0.1 * jax.random.normal(km, (C,), jnp.float32)
        var = 1.0 + 0.1 * jax.random.uniform(kv, (C,), jnp.float32)
        return gamma, beta, mean, var

    def fold(W, bias, bn):
        # BN(eval) o (Wx + b)  ==  W_eff x + shift
        gamma, beta, mean, var = bn
        scale = gamma / jnp.sqrt(var + BN_EPS)
        W_eff = scale[:, None] * W
        shift = scale * (bias - mean) + beta
        # Snap to a 2^-12 grid: with binary spikes every matmul partial sum is
        # exact in f32 and the bf16 hi/lo split below is exact.
        W_eff = jnp.round(W_eff * 4096.0) / 4096.0
        shift = jnp.round(shift * 4096.0) / 4096.0
        # |W_eff| < 2 keeps the snapped weights within ~13 significant bits so the
        # hi/lo split is exact (review correctness concern).
        assert float(jnp.max(jnp.abs(W_eff))) < 2.0, "folded weight too large"
        return W_eff, shift

    def split_hi_lo(W):
        hi = W.astype(jnp.bfloat16)
        lo = (W - hi.astype(jnp.float32)).astype(jnp.bfloat16)
        recon_err = float(jnp.max(jnp.abs(
            hi.astype(jnp.float32) + lo.astype(jnp.float32) - W)))
        assert recon_err == 0.0, "hi/lo split not exact"
        return hi, lo

    zero_b = jnp.zeros((C,), jnp.float32)
    Wq, bq = fold(conv_w(ks[0]), zero_b, bn_params(ks[4]))       # q_conv + q_bn
    Wk, bk = fold(conv_w(ks[1]), zero_b, bn_params(ks[5]))       # k_conv + k_bn
    Wv, bv = fold(conv_w(ks[2]), zero_b, bn_params(ks[6]))       # v_conv + v_bn
    proj_bias = 0.1 * jax.random.normal(ks[8], (C,), jnp.float32)
    Wp, bp = fold(conv_w(ks[3]), proj_bias, bn_params(ks[7]))    # proj_conv + bn

    w_qkv = jnp.concatenate([Wq, Wk, Wv], axis=0)                # (3C, C) f32
    b_qkv = jnp.concatenate([bq, bk, bv], axis=0)[:, None]       # (3C, 1) f32
    wqkv_hi, wqkv_lo = split_hi_lo(w_qkv)
    wp_hi, wp_lo = split_hi_lo(Wp)
    return (wqkv_hi, wqkv_lo, b_qkv.astype(jnp.float32),
            wp_hi, wp_lo, bp[:, None].astype(jnp.float32))


# --------------------------- pure-JAX reference --------------------------------

def _lif_seq(x, thr):
    def step(v, xt):
        v = v + (xt - v) * INV_TAU
        fire = v >= thr
        s = fire.astype(x.dtype)
        return jnp.where(fire, 0.0, v), s
    return lax.scan(step, jnp.zeros_like(x[0]), x)[1]


def reference(x, params):
    T, B, C, Hs, Ws = x.shape
    N = Hs * Ws
    Dh = C // NUM_HEADS
    wqkv_hi, wqkv_lo, b_qkv, wp_hi, wp_lo, b_p = params
    w_qkv = wqkv_hi.astype(jnp.float32) + wqkv_lo.astype(jnp.float32)
    w_p = wp_hi.astype(jnp.float32) + wp_lo.astype(jnp.float32)

    s = _lif_seq(x.reshape(T, B, C, N), 1.0)
    qkv = jnp.einsum('oc,tbcn->tbon', w_qkv, s,
                     precision=PREC) + b_qkv.reshape(1, 1, 3 * C, 1)
    sq = _lif_seq(qkv[:, :, 0:C], 1.0)
    sk = _lif_seq(qkv[:, :, C:2 * C], 1.0)
    sv = _lif_seq(qkv[:, :, 2 * C:3 * C], 1.0)

    qh = sq.reshape(T, B, NUM_HEADS, Dh, N)
    kh = sk.reshape(T, B, NUM_HEADS, Dh, N)
    vh = sv.reshape(T, B, NUM_HEADS, Dh, N)
    attn = jnp.einsum('tbhdn,tbhdm->tbhnm', qh, kh, precision=PREC)
    oh = jnp.einsum('tbhnm,tbhdm->tbhdn', attn, vh, precision=PREC) * 0.125
    sa = _lif_seq(oh.reshape(T, B, C, N), 0.5)
    y = jnp.einsum('oc,tbcn->tbon', w_p, sa,
                   precision=PREC) + b_p.reshape(1, 1, C, 1)
    return y.reshape(T, B, C, Hs, Ws)


# ----------------------------------- main --------------------------------------

if __name__ == "__main__":
    # dim=32, num_heads=8, N=64; B=4 -> 2 grid steps of 2 batch elements each.
    T, B, C, Hs, Ws = 4, 4, 32, 8, 8
    key = jax.random.PRNGKey(0)
    kx, kp = jax.random.split(key)
    x = 1.5 * jax.random.normal(kx, (T, B, C, Hs, Ws), jnp.float32)
    params = make_params(kp, C)

    out = jax.block_until_ready(spiking_self_attention(x, params))
    ref = jax.block_until_ready(reference(x, params))

    assert out.shape == (T, B, C, Hs, Ws)
    err = float(jnp.max(jnp.abs(out - ref)))
    assert err < 1e-3, f"max abs error vs reference: {err}"
    print("KERNEL_OK")
</pallas_src>

<mosaic_0001>
module attributes {stable_mosaic.version = 11 : i64} {
  func.func @ssa_kernel(%arg0: i32, %arg1: memref<1x32x512xf32, #tpu.memory_space<vmem>>, %arg2: memref<96x32xbf16, #tpu.memory_space<vmem>>, %arg3: memref<96x32xbf16, #tpu.memory_space<vmem>>, %arg4: memref<96x1xf32, #tpu.memory_space<vmem>>, %arg5: memref<32x32xbf16, #tpu.memory_space<vmem>>, %arg6: memref<32x32xbf16, #tpu.memory_space<vmem>>, %arg7: memref<32x1xf32, #tpu.memory_space<vmem>>, %arg8: memref<256x256xbf16, #tpu.memory_space<vmem>>, %arg9: memref<1x32x512xf32, #tpu.memory_space<vmem>>) attributes {dimension_semantics = [#tpu.dimension_semantics<parallel>], iteration_bounds = array<i64: 2>, scalar_prefetch = 0 : i64, scratch_operands = 0 : i64, tpu.core_type = #tpu.core_type<tc>, window_params = [{transform_indices = @transform_0, window_bounds = array<i64: 1, 32, 512>}, {pipeline_mode = #tpu.pipeline_mode<synchronous>, transform_indices = @transform_1, window_bounds = array<i64: 96, 32>}, {pipeline_mode = #tpu.pipeline_mode<synchronous>, transform_indices = @transform_2, window_bounds = array<i64: 96, 32>}, {pipeline_mode = #tpu.pipeline_mode<synchronous>, transform_indices = @transform_3, window_bounds = array<i64: 96, 1>}, {pipeline_mode = #tpu.pipeline_mode<synchronous>, transform_indices = @transform_4, window_bounds = array<i64: 32, 32>}, {pipeline_mode = #tpu.pipeline_mode<synchronous>, transform_indices = @transform_5, window_bounds = array<i64: 32, 32>}, {pipeline_mode = #tpu.pipeline_mode<synchronous>, transform_indices = @transform_6, window_bounds = array<i64: 32, 1>}, {pipeline_mode = #tpu.pipeline_mode<synchronous>, transform_indices = @transform_7, window_bounds = array<i64: 256, 256>}, {transform_indices = @transform_8, window_bounds = array<i64: 1, 32, 512>}]} {
    %c0 = arith.constant 0 : index
    %c0_0 = arith.constant 0 : index
    %0 = vector.load %arg2[%c0, %c0_0] : memref<96x32xbf16, #tpu.memory_space<vmem>>, vector<96x32xbf16>
    %c0_1 = arith.constant 0 : index
    %c0_2 = arith.constant 0 : index
    %1 = vector.load %arg3[%c0_1, %c0_2] : memref<96x32xbf16, #tpu.memory_space<vmem>>, vector<96x32xbf16>
    %c0_3 = arith.constant 0 : index
    %c0_4 = arith.constant 0 : index
    %2 = vector.load %arg4[%c0_3, %c0_4] : memref<96x1xf32, #tpu.memory_space<vmem>>, vector<96x1xf32>
    %c0_5 = arith.constant 0 : index
    %c0_6 = arith.constant 0 : index
    %3 = vector.load %arg5[%c0_5, %c0_6] : memref<32x32xbf16, #tpu.memory_space<vmem>>, vector<32x32xbf16>
    %c0_7 = arith.constant 0 : index
    %c0_8 = arith.constant 0 : index
    %4 = vector.load %arg6[%c0_7, %c0_8] : memref<32x32xbf16, #tpu.memory_space<vmem>>, vector<32x32xbf16>
    %c0_9 = arith.constant 0 : index
    %c0_10 = arith.constant 0 : index
    %5 = vector.load %arg7[%c0_9, %c0_10] : memref<32x1xf32, #tpu.memory_space<vmem>>, vector<32x1xf32>
    %c0_11 = arith.constant 0 : index
    %c0_12 = arith.constant 0 : index
    %6 = vector.load %arg8[%c0_11, %c0_12] : memref<256x256xbf16, #tpu.memory_space<vmem>>, vector<256x256xbf16>
    %7 = arith.extf %6 : vector<256x256xbf16> to vector<256x256xf32>
    %c0_13 = arith.constant 0 : index
    %c0_14 = arith.constant 0 : index
    %c0_15 = arith.constant 0 : index
    %8 = vector.load %arg1[%c0_13, %c0_14, %c0_15] : memref<1x32x512xf32, #tpu.memory_space<vmem>>, vector<1x32x512xf32>
    %9 = vector.shape_cast %8 : vector<1x32x512xf32> to vector<32x512xf32>
    %cst = arith.constant 0.000000e+00 : f32
    %10 = vector.broadcast %cst : f32 to vector<32x128xf32>
    %11 = vector.extract_strided_slice %9 {offsets = [0, 0], sizes = [32, 128], strides = [1, 1]} : vector<32x512xf32> to vector<32x128xf32>
    %12 = arith.subf %11, %10 : vector<32x128xf32>
    %cst_16 = arith.constant 0.666666686 : f32
    %13 = vector.broadcast %cst_16 : f32 to vector<32x128xf32>
    %14 = arith.mulf %12, %13 : vector<32x128xf32>
    %15 = arith.addf %10, %14 : vector<32x128xf32>
    %cst_17 = arith.constant 1.000000e+00 : f32
    %16 = vector.broadcast %cst_17 : f32 to vector<32x128xf32>
    %17 = arith.cmpf oge, %15, %16 : vector<32x128xf32>
    %18 = arith.extui %17 : vector<32x128xi1> to vector<32x128xi32>
    %19 = arith.sitofp %18 : vector<32x128xi32> to vector<32x128xf32>
    %cst_18 = arith.constant 0.000000e+00 : f32
    %20 = vector.broadcast %cst_18 : f32 to vector<32x128xf32>
    %21 = arith.select %17, %20, %15 : vector<32x128xi1>, vector<32x128xf32>
    %22 = arith.truncf %19 : vector<32x128xf32> to vector<32x128xbf16>
    %23 = vector.extract_strided_slice %9 {offsets = [0, 128], sizes = [32, 128], strides = [1, 1]} : vector<32x512xf32> to vector<32x128xf32>
    %24 = arith.subf %23, %21 : vector<32x128xf32>
    %cst_19 = arith.constant 0.666666686 : f32
    %25 = vector.broadcast %cst_19 : f32 to vector<32x128xf32>
    %26 = arith.mulf %24, %25 : vector<32x128xf32>
    %27 = arith.addf %21, %26 : vector<32x128xf32>
    %cst_20 = arith.constant 1.000000e+00 : f32
    %28 = vector.broadcast %cst_20 : f32 to vector<32x128xf32>
    %29 = arith.cmpf oge, %27, %28 : vector<32x128xf32>
    %30 = arith.extui %29 : vector<32x128xi1> to vector<32x128xi32>
    %31 = arith.sitofp %30 : vector<32x128xi32> to vector<32x128xf32>
    %cst_21 = arith.constant 0.000000e+00 : f32
    %32 = vector.broadcast %cst_21 : f32 to vector<32x128xf32>
    %33 = arith.select %29, %32, %27 : vector<32x128xi1>, vector<32x128xf32>
    %34 = arith.truncf %31 : vector<32x128xf32> to vector<32x128xbf16>
    %35 = vector.extract_strided_slice %9 {offsets = [0, 256], sizes = [32, 128], strides = [1, 1]} : vector<32x512xf32> to vector<32x128xf32>
    %36 = arith.subf %35, %33 : vector<32x128xf32>
    %cst_22 = arith.constant 0.666666686 : f32
    %37 = vector.broadcast %cst_22 : f32 to vector<32x128xf32>
    %38 = arith.mulf %36, %37 : vector<32x128xf32>
    %39 = arith.addf %33, %38 : vector<32x128xf32>
    %cst_23 = arith.constant 1.000000e+00 : f32
    %40 = vector.broadcast %cst_23 : f32 to vector<32x128xf32>
    %41 = arith.cmpf oge, %39, %40 : vector<32x128xf32>
    %42 = arith.extui %41 : vector<32x128xi1> to vector<32x128xi32>
    %43 = arith.sitofp %42 : vector<32x128xi32> to vector<32x128xf32>
    %cst_24 = arith.constant 0.000000e+00 : f32
    %44 = vector.broadcast %cst_24 : f32 to vector<32x128xf32>
    %45 = arith.select %41, %44, %39 : vector<32x128xi1>, vector<32x128xf32>
    %46 = arith.truncf %43 : vector<32x128xf32> to vector<32x128xbf16>
    %47 = vector.extract_strided_slice %9 {offsets = [0, 384], sizes = [32, 128], strides = [1, 1]} : vector<32x512xf32> to vector<32x128xf32>
    %48 = arith.subf %47, %45 : vector<32x128xf32>
    %cst_25 = arith.constant 0.666666686 : f32
    %49 = vector.broadcast %cst_25 : f32 to vector<32x128xf32>
    %50 = arith.mulf %48, %49 : vector<32x128xf32>
    %51 = arith.addf %45, %50 : vector<32x128xf32>
    %cst_26 = arith.constant 1.000000e+00 : f32
    %52 = vector.broadcast %cst_26 : f32 to vector<32x128xf32>
    %53 = arith.cmpf oge, %51, %52 : vector<32x128xf32>
    %54 = arith.extui %53 : vector<32x128xi1> to vector<32x128xi32>
    %55 = arith.sitofp %54 : vector<32x128xi32> to vector<32x128xf32>
    %56 = arith.truncf %55 : vector<32x128xf32> to vector<32x128xbf16>
    %57 = tpu.concatenate %22, %34, %46, %56 in 1 : vector<32x128xbf16>, vector<32x128xbf16>, vector<32x128xbf16>, vector<32x128xbf16> -> vector<32x512xbf16>
    %cst_27 = arith.constant dense<0.000000e+00> : vector<96x512xf32>
    %58 = tpu.matmul %0, %57, %cst_27 {dimension_numbers = #tpu.dot_dimension_numbers<[1], [0], [0], [1], [0, 0, 1, 1], [], []>} : vector<96x32xbf16>, vector<32x512xbf16>, vector<96x512xf32> -> vector<96x512xf32>
    %cst_28 = arith.constant dense<0.000000e+00> : vector<96x512xf32>
    %59 = tpu.matmul %1, %57, %cst_28 {dimension_numbers = #tpu.dot_dimension_numbers<[1], [0], [0], [1], [0, 0, 1, 1], [], []>} : vector<96x32xbf16>, vector<32x512xbf16>, vector<96x512xf32> -> vector<96x512xf32>
    %60 = arith.addf %58, %59 : vector<96x512xf32>
    %61 = vector.broadcast %2 : vector<96x1xf32> to vector<96x512xf32>
    %62 = arith.addf %60, %61 : vector<96x512xf32>
    %cst_29 = arith.constant 0.000000e+00 : f32
    %63 = vector.broadcast %cst_29 : f32 to vector<32x128xf32>
    %64 = vector.extract_strided_slice %62 {offsets = [0, 0], sizes = [96, 128], strides = [1, 1]} : vector<96x512xf32> to vector<96x128xf32>
    %65 = vector.extract_strided_slice %64 {offsets = [0, 0], sizes = [32, 128], strides = [1, 1]} : vector<96x128xf32> to vector<32x128xf32>
    %66 = arith.subf %65, %63 : vector<32x128xf32>
    %cst_30 = arith.constant 0.666666686 : f32
    %67 = vector.broadcast %cst_30 : f32 to vector<32x128xf32>
    %68 = arith.mulf %66, %67 : vector<32x128xf32>
    %69 = arith.addf %63, %68 : vector<32x128xf32>
    %cst_31 = arith.constant 1.000000e+00 : f32
    %70 = vector.broadcast %cst_31 : f32 to vector<32x128xf32>
    %71 = arith.cmpf oge, %69, %70 : vector<32x128xf32>
    %72 = arith.extui %71 : vector<32x128xi1> to vector<32x128xi32>
    %73 = arith.sitofp %72 : vector<32x128xi32> to vector<32x128xf32>
    %cst_32 = arith.constant 0.000000e+00 : f32
    %74 = vector.broadcast %cst_32 : f32 to vector<32x128xf32>
    %75 = arith.select %71, %74, %69 : vector<32x128xi1>, vector<32x128xf32>
    %76 = vector.extract_strided_slice %64 {offsets = [32, 0], sizes = [32, 128], strides = [1, 1]} : vector<96x128xf32> to vector<32x128xf32>
    %77 = arith.subf %76, %63 : vector<32x128xf32>
    %cst_33 = arith.constant 0.666666686 : f32
    %78 = vector.broadcast %cst_33 : f32 to vector<32x128xf32>
    %79 = arith.mulf %77, %78 : vector<32x128xf32>
    %80 = arith.addf %63, %79 : vector<32x128xf32>
    %cst_34 = arith.constant 1.000000e+00 : f32
    %81 = vector.broadcast %cst_34 : f32 to vector<32x128xf32>
    %82 = arith.cmpf oge, %80, %81 : vector<32x128xf32>
    %83 = arith.extui %82 : vector<32x128xi1> to vector<32x128xi32>
    %84 = arith.sitofp %83 : vector<32x128xi32> to vector<32x128xf32>
    %cst_35 = arith.constant 0.000000e+00 : f32
    %85 = vector.broadcast %cst_35 : f32 to vector<32x128xf32>
    %86 = arith.select %82, %85, %80 : vector<32x128xi1>, vector<32x128xf32>
    %87 = vector.extract_strided_slice %64 {offsets = [64, 0], sizes = [32, 128], strides = [1, 1]} : vector<96x128xf32> to vector<32x128xf32>
    %88 = arith.subf %87, %63 : vector<32x128xf32>
    %cst_36 = arith.constant 0.666666686 : f32
    %89 = vector.broadcast %cst_36 : f32 to vector<32x128xf32>
    %90 = arith.mulf %88, %89 : vector<32x128xf32>
    %91 = arith.addf %63, %90 : vector<32x128xf32>
    %cst_37 = arith.constant 1.000000e+00 : f32
    %92 = vector.broadcast %cst_37 : f32 to vector<32x128xf32>
    %93 = arith.cmpf oge, %91, %92 : vector<32x128xf32>
    %94 = arith.extui %93 : vector<32x128xi1> to vector<32x128xi32>
    %95 = arith.sitofp %94 : vector<32x128xi32> to vector<32x128xf32>
    %cst_38 = arith.constant 0.000000e+00 : f32
    %96 = vector.broadcast %cst_38 : f32 to vector<32x128xf32>
    %97 = arith.select %93, %96, %91 : vector<32x128xi1>, vector<32x128xf32>
    %98 = vector.extract_strided_slice %73 {offsets = [0, 0], sizes = [32, 64], strides = [1, 1]} : vector<32x128xf32> to vector<32x64xf32>
    %99 = arith.truncf %98 : vector<32x64xf32> to vector<32x64xbf16>
    %100 = vector.extract_strided_slice %84 {offsets = [0, 0], sizes = [32, 64], strides = [1, 1]} : vector<32x128xf32> to vector<32x64xf32>
    %101 = arith.truncf %100 : vector<32x64xf32> to vector<32x64xbf16>
    %102 = vector.extract_strided_slice %95 {offsets = [0, 0], sizes = [32, 64], strides = [1, 1]} : vector<32x128xf32> to vector<32x64xf32>
    %103 = arith.truncf %102 : vector<32x64xf32> to vector<32x64xbf16>
    %104 = vector.extract_strided_slice %73 {offsets = [0, 64], sizes = [32, 64], strides = [1, 1]} : vector<32x128xf32> to vector<32x64xf32>
    %105 = arith.truncf %104 : vector<32x64xf32> to vector<32x64xbf16>
    %106 = vector.extract_strided_slice %84 {offsets = [0, 64], sizes = [32, 64], strides = [1, 1]} : vector<32x128xf32> to vector<32x64xf32>
    %107 = arith.truncf %106 : vector<32x64xf32> to vector<32x64xbf16>
    %108 = vector.extract_strided_slice %95 {offsets = [0, 64], sizes = [32, 64], strides = [1, 1]} : vector<32x128xf32> to vector<32x64xf32>
    %109 = arith.truncf %108 : vector<32x64xf32> to vector<32x64xbf16>
    %110 = vector.extract_strided_slice %62 {offsets = [0, 128], sizes = [96, 128], strides = [1, 1]} : vector<96x512xf32> to vector<96x128xf32>
    %111 = vector.extract_strided_slice %110 {offsets = [0, 0], sizes = [32, 128], strides = [1, 1]} : vector<96x128xf32> to vector<32x128xf32>
    %112 = arith.subf %111, %75 : vector<32x128xf32>
    %cst_39 = arith.constant 0.666666686 : f32
    %113 = vector.broadcast %cst_39 : f32 to vector<32x128xf32>
    %114 = arith.mulf %112, %113 : vector<32x128xf32>
    %115 = arith.addf %75, %114 : vector<32x128xf32>
    %cst_40 = arith.constant 1.000000e+00 : f32
    %116 = vector.broadcast %cst_40 : f32 to vector<32x128xf32>
    %117 = arith.cmpf oge, %115, %116 : vector<32x128xf32>
    %118 = arith.extui %117 : vector<32x128xi1> to vector<32x128xi32>
    %119 = arith.sitofp %118 : vector<32x128xi32> to vector<32x128xf32>
    %cst_41 = arith.constant 0.000000e+00 : f32
    %120 = vector.broadcast %cst_41 : f32 to vector<32x128xf32>
    %121 = arith.select %117, %120, %115 : vector<32x128xi1>, vector<32x128xf32>
    %122 = vector.extract_strided_slice %110 {offsets = [32, 0], sizes = [32, 128], strides = [1, 1]} : vector<96x128xf32> to vector<32x128xf32>
    %123 = arith.subf %122, %86 : vector<32x128xf32>
    %cst_42 = arith.constant 0.666666686 : f32
    %124 = vector.broadcast %cst_42 : f32 to vector<32x128xf32>
    %125 = arith.mulf %123, %124 : vector<32x128xf32>
    %126 = arith.addf %86, %125 : vector<32x128xf32>
    %cst_43 = arith.constant 1.000000e+00 : f32
    %127 = vector.broadcast %cst_43 : f32 to vector<32x128xf32>
    %128 = arith.cmpf oge, %126, %127 : vector<32x128xf32>
    %129 = arith.extui %128 : vector<32x128xi1> to vector<32x128xi32>
    %130 = arith.sitofp %129 : vector<32x128xi32> to vector<32x128xf32>
    %cst_44 = arith.constant 0.000000e+00 : f32
    %131 = vector.broadcast %cst_44 : f32 to vector<32x128xf32>
    %132 = arith.select %128, %131, %126 : vector<32x128xi1>, vector<32x128xf32>
    %133 = vector.extract_strided_slice %110 {offsets = [64, 0], sizes = [32, 128], strides = [1, 1]} : vector<96x128xf32> to vector<32x128xf32>
    %134 = arith.subf %133, %97 : vector<32x128xf32>
    %cst_45 = arith.constant 0.666666686 : f32
    %135 = vector.broadcast %cst_45 : f32 to vector<32x128xf32>
    %136 = arith.mulf %134, %135 : vector<32x128xf32>
    %137 = arith.addf %97, %136 : vector<32x128xf32>
    %cst_46 = arith.constant 1.000000e+00 : f32
    %138 = vector.broadcast %cst_46 : f32 to vector<32x128xf32>
    %139 = arith.cmpf oge, %137, %138 : vector<32x128xf32>
    %140 = arith.extui %139 : vector<32x128xi1> to vector<32x128xi32>
    %141 = arith.sitofp %140 : vector<32x128xi32> to vector<32x128xf32>
    %cst_47 = arith.constant 0.000000e+00 : f32
    %142 = vector.broadcast %cst_47 : f32 to vector<32x128xf32>
    %143 = arith.select %139, %142, %137 : vector<32x128xi1>, vector<32x128xf32>
    %144 = vector.extract_strided_slice %119 {offsets = [0, 0], sizes = [32, 64], strides = [1, 1]} : vector<32x128xf32> to vector<32x64xf32>
    %145 = arith.truncf %144 : vector<32x64xf32> to vector<32x64xbf16>
    %146 = vector.extract_strided_slice %130 {offsets = [0, 0], sizes = [32, 64], strides = [1, 1]} : vector<32x128xf32> to vector<32x64xf32>
    %147 = arith.truncf %146 : vector<32x64xf32> to vector<32x64xbf16>
    %148 = vector.extract_strided_slice %141 {offsets = [0, 0], sizes = [32, 64], strides = [1, 1]} : vector<32x128xf32> to vector<32x64xf32>
    %149 = arith.truncf %148 : vector<32x64xf32> to vector<32x64xbf16>
    %150 = vector.extract_strided_slice %119 {offsets = [0, 64], sizes = [32, 64], strides = [1, 1]} : vector<32x128xf32> to vector<32x64xf32>
    %151 = arith.truncf %150 : vector<32x64xf32> to vector<32x64xbf16>
    %152 = vector.extract_strided_slice %130 {offsets = [0, 64], sizes = [32, 64], strides = [1, 1]} : vector<32x128xf32> to vector<32x64xf32>
    %153 = arith.truncf %152 : vector<32x64xf32> to vector<32x64xbf16>
    %154 = vector.extract_strided_slice %141 {offsets = [0, 64], sizes = [32, 64], strides = [1, 1]} : vector<32x128xf32> to vector<32x64xf32>
    %155 = arith.truncf %154 : vector<32x64xf32> to vector<32x64xbf16>
    %156 = vector.extract_strided_slice %62 {offsets = [0, 256], sizes = [96, 128], strides = [1, 1]} : vector<96x512xf32> to vector<96x128xf32>
    %157 = vector.extract_strided_slice %156 {offsets = [0, 0], sizes = [32, 128], strides = [1, 1]} : vector<96x128xf32> to vector<32x128xf32>
    %158 = arith.subf %157, %121 : vector<32x128xf32>
    %cst_48 = arith.constant 0.666666686 : f32
    %159 = vector.broadcast %cst_48 : f32 to vector<32x128xf32>
    %160 = arith.mulf %158, %159 : vector<32x128xf32>
    %161 = arith.addf %121, %160 : vector<32x128xf32>
    %cst_49 = arith.constant 1.000000e+00 : f32
    %162 = vector.broadcast %cst_49 : f32 to vector<32x128xf32>
    %163 = arith.cmpf oge, %161, %162 : vector<32x128xf32>
    %164 = arith.extui %163 : vector<32x128xi1> to vector<32x128xi32>
    %165 = arith.sitofp %164 : vector<32x128xi32> to vector<32x128xf32>
    %cst_50 = arith.constant 0.000000e+00 : f32
    %166 = vector.broadcast %cst_50 : f32 to vector<32x128xf32>
    %167 = arith.select %163, %166, %161 : vector<32x128xi1>, vector<32x128xf32>
    %168 = vector.extract_strided_slice %156 {offsets = [32, 0], sizes = [32, 128], strides = [1, 1]} : vector<96x128xf32> to vector<32x128xf32>
    %169 = arith.subf %168, %132 : vector<32x128xf32>
    %cst_51 = arith.constant 0.666666686 : f32
    %170 = vector.broadcast %cst_51 : f32 to vector<32x128xf32>
    %171 = arith.mulf %169, %170 : vector<32x128xf32>
    %172 = arith.addf %132, %171 : vector<32x128xf32>
    %cst_52 = arith.constant 1.000000e+00 : f32
    %173 = vector.broadcast %cst_52 : f32 to vector<32x128xf32>
    %174 = arith.cmpf oge, %172, %173 : vector<32x128xf32>
    %175 = arith.extui %174 : vector<32x128xi1> to vector<32x128xi32>
    %176 = arith.sitofp %175 : vector<32x128xi32> to vector<32x128xf32>
    %cst_53 = arith.constant 0.000000e+00 : f32
    %177 = vector.broadcast %cst_53 : f32 to vector<32x128xf32>
    %178 = arith.select %174, %177, %172 : vector<32x128xi1>, vector<32x128xf32>
    %179 = vector.extract_strided_slice %156 {offsets = [64, 0], sizes = [32, 128], strides = [1, 1]} : vector<96x128xf32> to vector<32x128xf32>
    %180 = arith.subf %179, %143 : vector<32x128xf32>
    %cst_54 = arith.constant 0.666666686 : f32
    %181 = vector.broadcast %cst_54 : f32 to vector<32x128xf32>
    %182 = arith.mulf %180, %181 : vector<32x128xf32>
    %183 = arith.addf %143, %182 : vector<32x128xf32>
    %cst_55 = arith.constant 1.000000e+00 : f32
    %184 = vector.broadcast %cst_55 : f32 to vector<32x128xf32>
    %185 = arith.cmpf oge, %183, %184 : vector<32x128xf32>
    %186 = arith.extui %185 : vector<32x128xi1> to vector<32x128xi32>
    %187 = arith.sitofp %186 : vector<32x128xi32> to vector<32x128xf32>
    %cst_56 = arith.constant 0.000000e+00 : f32
    %188 = vector.broadcast %cst_56 : f32 to vector<32x128xf32>
    %189 = arith.select %185, %188, %183 : vector<32x128xi1>, vector<32x128xf32>
    %190 = vector.extract_strided_slice %165 {offsets = [0, 0], sizes = [32, 64], strides = [1, 1]} : vector<32x128xf32> to vector<32x64xf32>
    %191 = arith.truncf %190 : vector<32x64xf32> to vector<32x64xbf16>
    %192 = vector.extract_strided_slice %176 {offsets = [0, 0], sizes = [32, 64], strides = [1, 1]} : vector<32x128xf32> to vector<32x64xf32>
    %193 = arith.truncf %192 : vector<32x64xf32> to vector<32x64xbf16>
    %194 = vector.extract_strided_slice %187 {offsets = [0, 0], sizes = [32, 64], strides = [1, 1]} : vector<32x128xf32> to vector<32x64xf32>
    %195 = arith.truncf %194 : vector<32x64xf32> to vector<32x64xbf16>
    %196 = vector.extract_strided_slice %165 {offsets = [0, 64], sizes = [32, 64], strides = [1, 1]} : vector<32x128xf32> to vector<32x64xf32>
    %197 = arith.truncf %196 : vector<32x64xf32> to vector<32x64xbf16>
    %198 = vector.extract_strided_slice %176 {offsets = [0, 64], sizes = [32, 64], strides = [1, 1]} : vector<32x128xf32> to vector<32x64xf32>
    %199 = arith.truncf %198 : vector<32x64xf32> to vector<32x64xbf16>
    %200 = vector.extract_strided_slice %187 {offsets = [0, 64], sizes = [32, 64], strides = [1, 1]} : vector<32x128xf32> to vector<32x64xf32>
    %201 = arith.truncf %200 : vector<32x64xf32> to vector<32x64xbf16>
    %202 = vector.extract_strided_slice %62 {offsets = [0, 384], sizes = [96, 128], strides = [1, 1]} : vector<96x512xf32> to vector<96x128xf32>
    %203 = vector.extract_strided_slice %202 {offsets = [0, 0], sizes = [32, 128], strides = [1, 1]} : vector<96x128xf32> to vector<32x128xf32>
    %204 = arith.subf %203, %167 : vector<32x128xf32>
    %cst_57 = arith.constant 0.666666686 : f32
    %205 = vector.broadcast %cst_57 : f32 to vector<32x128xf32>
    %206 = arith.mulf %204, %205 : vector<32x128xf32>
    %207 = arith.addf %167, %206 : vector<32x128xf32>
    %cst_58 = arith.constant 1.000000e+00 : f32
    %208 = vector.broadcast %cst_58 : f32 to vector<32x128xf32>
    %209 = arith.cmpf oge, %207, %208 : vector<32x128xf32>
    %210 = arith.extui %209 : vector<32x128xi1> to vector<32x128xi32>
    %211 = arith.sitofp %210 : vector<32x128xi32> to vector<32x128xf32>
    %212 = vector.extract_strided_slice %202 {offsets = [32, 0], sizes = [32, 128], strides = [1, 1]} : vector<96x128xf32> to vector<32x128xf32>
    %213 = arith.subf %212, %178 : vector<32x128xf32>
    %cst_59 = arith.constant 0.666666686 : f32
    %214 = vector.broadcast %cst_59 : f32 to vector<32x128xf32>
    %215 = arith.mulf %213, %214 : vector<32x128xf32>
    %216 = arith.addf %178, %215 : vector<32x128xf32>
    %cst_60 = arith.constant 1.000000e+00 : f32
    %217 = vector.broadcast %cst_60 : f32 to vector<32x128xf32>
    %218 = arith.cmpf oge, %216, %217 : vector<32x128xf32>
    %219 = arith.extui %218 : vector<32x128xi1> to vector<32x128xi32>
    %220 = arith.sitofp %219 : vector<32x128xi32> to vector<32x128xf32>
    %221 = vector.extract_strided_slice %202 {offsets = [64, 0], sizes = [32, 128], strides = [1, 1]} : vector<96x128xf32> to vector<32x128xf32>
    %222 = arith.subf %221, %189 : vector<32x128xf32>
    %cst_61 = arith.constant 0.666666686 : f32
    %223 = vector.broadcast %cst_61 : f32 to vector<32x128xf32>
    %224 = arith.mulf %222, %223 : vector<32x128xf32>
    %225 = arith.addf %189, %224 : vector<32x128xf32>
    %cst_62 = arith.constant 1.000000e+00 : f32
    %226 = vector.broadcast %cst_62 : f32 to vector<32x128xf32>
    %227 = arith.cmpf oge, %225, %226 : vector<32x128xf32>
    %228 = arith.extui %227 : vector<32x128xi1> to vector<32x128xi32>
    %229 = arith.sitofp %228 : vector<32x128xi32> to vector<32x128xf32>
    %230 = vector.extract_strided_slice %211 {offsets = [0, 0], sizes = [32, 64], strides = [1, 1]} : vector<32x128xf32> to vector<32x64xf32>
    %231 = arith.truncf %230 : vector<32x64xf32> to vector<32x64xbf16>
    %232 = vector.extract_strided_slice %220 {offsets = [0, 0], sizes = [32, 64], strides = [1, 1]} : vector<32x128xf32> to vector<32x64xf32>
    %233 = arith.truncf %232 : vector<32x64xf32> to vector<32x64xbf16>
    %234 = vector.extract_strided_slice %229 {offsets = [0, 0], sizes = [32, 64], strides = [1, 1]} : vector<32x128xf32> to vector<32x64xf32>
    %235 = arith.truncf %234 : vector<32x64xf32> to vector<32x64xbf16>
    %236 = vector.extract_strided_slice %211 {offsets = [0, 64], sizes = [32, 64], strides = [1, 1]} : vector<32x128xf32> to vector<32x64xf32>
    %237 = arith.truncf %236 : vector<32x64xf32> to vector<32x64xbf16>
    %238 = vector.extract_strided_slice %220 {offsets = [0, 64], sizes = [32, 64], strides = [1, 1]} : vector<32x128xf32> to vector<32x64xf32>
    %239 = arith.truncf %238 : vector<32x64xf32> to vector<32x64xbf16>
    %240 = vector.extract_strided_slice %229 {offsets = [0, 64], sizes = [32, 64], strides = [1, 1]} : vector<32x128xf32> to vector<32x64xf32>
    %241 = arith.truncf %240 : vector<32x64xf32> to vector<32x64xbf16>
    %242 = tpu.concatenate %99, %105, %145, %151, %191, %197, %231, %237 in 0 : vector<32x64xbf16>, vector<32x64xbf16>, vector<32x64xbf16>, vector<32x64xbf16>, vector<32x64xbf16>, vector<32x64xbf16>, vector<32x64xbf16>, vector<32x64xbf16> -> vector<256x64xbf16>
    %243 = tpu.concatenate %101, %107, %147, %153, %193, %199, %233, %239 in 0 : vector<32x64xbf16>, vector<32x64xbf16>, vector<32x64xbf16>, vector<32x64xbf16>, vector<32x64xbf16>, vector<32x64xbf16>, vector<32x64xbf16>, vector<32x64xbf16> -> vector<256x64xbf16>
    %244 = tpu.concatenate %103, %109, %149, %155, %195, %201, %235, %241 in 0 : vector<32x64xbf16>, vector<32x64xbf16>, vector<32x64xbf16>, vector<32x64xbf16>, vector<32x64xbf16>, vector<32x64xbf16>, vector<32x64xbf16>, vector<32x64xbf16> -> vector<256x64xbf16>
    %cst_63 = arith.constant dense<0.000000e+00> : vector<256x256xf32>
    %245 = tpu.matmul %244, %243, %cst_63 {dimension_numbers = #tpu.dot_dimension_numbers<[1], [1], [0], [0], [0, 0, 1, 0], [], []>} : vector<256x64xbf16>, vector<256x64xbf16>, vector<256x256xf32> -> vector<256x256xf32>
    %246 = arith.mulf %245, %7 : vector<256x256xf32>
    %247 = arith.truncf %246 : vector<256x256xf32> to vector<256x256xbf16>
    %cst_64 = arith.constant dense<0.000000e+00> : vector<256x64xf32>
    %248 = tpu.matmul %247, %242, %cst_64 {dimension_numbers = #tpu.dot_dimension_numbers<[1], [0], [0], [1], [0, 0, 1, 1], [], []>} : vector<256x256xbf16>, vector<256x64xbf16>, vector<256x64xf32> -> vector<256x64xf32>
    %cst_65 = arith.constant 0.000000e+00 : f32
    %249 = vector.broadcast %cst_65 : f32 to vector<64x64xf32>
    %250 = vector.extract_strided_slice %248 {offsets = [0, 0], sizes = [64, 64], strides = [1, 1]} : vector<256x64xf32> to vector<64x64xf32>
    %251 = arith.subf %250, %249 : vector<64x64xf32>
    %cst_66 = arith.constant 0.666666686 : f32
    %252 = vector.broadcast %cst_66 : f32 to vector<64x64xf32>
    %253 = arith.mulf %251, %252 : vector<64x64xf32>
    %254 = arith.addf %249, %253 : vector<64x64xf32>
    %cst_67 = arith.constant 5.000000e-01 : f32
    %255 = vector.broadcast %cst_67 : f32 to vector<64x64xf32>
    %256 = arith.cmpf oge, %254, %255 : vector<64x64xf32>
    %257 = arith.extui %256 : vector<64x64xi1> to vector<64x64xi32>
    %258 = arith.sitofp %257 : vector<64x64xi32> to vector<64x64xf32>
    %cst_68 = arith.constant 0.000000e+00 : f32
    %259 = vector.broadcast %cst_68 : f32 to vector<64x64xf32>
    %260 = arith.select %256, %259, %254 : vector<64x64xi1>, vector<64x64xf32>
    %261 = arith.truncf %258 : vector<64x64xf32> to vector<64x64xbf16>
    %262 = vector.extract_strided_slice %261 {offsets = [0, 0], sizes = [32, 64], strides = [1, 1]} : vector<64x64xbf16> to vector<32x64xbf16>
    %263 = vector.extract_strided_slice %261 {offsets = [32, 0], sizes = [32, 64], strides = [1, 1]} : vector<64x64xbf16> to vector<32x64xbf16>
    %264 = vector.extract_strided_slice %248 {offsets = [64, 0], sizes = [64, 64], strides = [1, 1]} : vector<256x64xf32> to vector<64x64xf32>
    %265 = arith.subf %264, %260 : vector<64x64xf32>
    %cst_69 = arith.constant 0.666666686 : f32
    %266 = vector.broadcast %cst_69 : f32 to vector<64x64xf32>
    %267 = arith.mulf %265, %266 : vector<64x64xf32>
    %268 = arith.addf %260, %267 : vector<64x64xf32>
    %cst_70 = arith.constant 5.000000e-01 : f32
    %269 = vector.broadcast %cst_70 : f32 to vector<64x64xf32>
    %270 = arith.cmpf oge, %268, %269 : vector<64x64xf32>
    %271 = arith.extui %270 : vector<64x64xi1> to vector<64x64xi32>
    %272 = arith.sitofp %271 : vector<64x64xi32> to vector<64x64xf32>
    %cst_71 = arith.constant 0.000000e+00 : f32
    %273 = vector.broadcast %cst_71 : f32 to vector<64x64xf32>
    %274 = arith.select %270, %273, %268 : vector<64x64xi1>, vector<64x64xf32>
    %275 = arith.truncf %272 : vector<64x64xf32> to vector<64x64xbf16>
    %276 = vector.extract_strided_slice %275 {offsets = [0, 0], sizes = [32, 64], strides = [1, 1]} : vector<64x64xbf16> to vector<32x64xbf16>
    %277 = vector.extract_strided_slice %275 {offsets = [32, 0], sizes = [32, 64], strides = [1, 1]} : vector<64x64xbf16> to vector<32x64xbf16>
    %278 = vector.extract_strided_slice %248 {offsets = [128, 0], sizes = [64, 64], strides = [1, 1]} : vector<256x64xf32> to vector<64x64xf32>
    %279 = arith.subf %278, %274 : vector<64x64xf32>
    %cst_72 = arith.constant 0.666666686 : f32
    %280 = vector.broadcast %cst_72 : f32 to vector<64x64xf32>
    %281 = arith.mulf %279, %280 : vector<64x64xf32>
    %282 = arith.addf %274, %281 : vector<64x64xf32>
    %cst_73 = arith.constant 5.000000e-01 : f32
    %283 = vector.broadcast %cst_73 : f32 to vector<64x64xf32>
    %284 = arith.cmpf oge, %282, %283 : vector<64x64xf32>
    %285 = arith.extui %284 : vector<64x64xi1> to vector<64x64xi32>
    %286 = arith.sitofp %285 : vector<64x64xi32> to vector<64x64xf32>
    %cst_74 = arith.constant 0.000000e+00 : f32
    %287 = vector.broadcast %cst_74 : f32 to vector<64x64xf32>
    %288 = arith.select %284, %287, %282 : vector<64x64xi1>, vector<64x64xf32>
    %289 = arith.truncf %286 : vector<64x64xf32> to vector<64x64xbf16>
    %290 = vector.extract_strided_slice %289 {offsets = [0, 0], sizes = [32, 64], strides = [1, 1]} : vector<64x64xbf16> to vector<32x64xbf16>
    %291 = vector.extract_strided_slice %289 {offsets = [32, 0], sizes = [32, 64], strides = [1, 1]} : vector<64x64xbf16> to vector<32x64xbf16>
    %292 = vector.extract_strided_slice %248 {offsets = [192, 0], sizes = [64, 64], strides = [1, 1]} : vector<256x64xf32> to vector<64x64xf32>
    %293 = arith.subf %292, %288 : vector<64x64xf32>
    %cst_75 = arith.constant 0.666666686 : f32
    %294 = vector.broadcast %cst_75 : f32 to vector<64x64xf32>
    %295 = arith.mulf %293, %294 : vector<64x64xf32>
    %296 = arith.addf %288, %295 : vector<64x64xf32>
    %cst_76 = arith.constant 5.000000e-01 : f32
    %297 = vector.broadcast %cst_76 : f32 to vector<64x64xf32>
    %298 = arith.cmpf oge, %296, %297 : vector<64x64xf32>
    %299 = arith.extui %298 : vector<64x64xi1> to vector<64x64xi32>
    %300 = arith.sitofp %299 : vector<64x64xi32> to vector<64x64xf32>
    %301 = arith.truncf %300 : vector<64x64xf32> to vector<64x64xbf16>
    %302 = vector.extract_strided_slice %301 {offsets = [0, 0], sizes = [32, 64], strides = [1, 1]} : vector<64x64xbf16> to vector<32x64xbf16>
    %303 = vector.extract_strided_slice %301 {offsets = [32, 0], sizes = [32, 64], strides = [1, 1]} : vector<64x64xbf16> to vector<32x64xbf16>
    %304 = tpu.concatenate %262, %263, %276, %277, %290, %291, %302, %303 in 1 : vector<32x64xbf16>, vector<32x64xbf16>, vector<32x64xbf16>, vector<32x64xbf16>, vector<32x64xbf16>, vector<32x64xbf16>, vector<32x64xbf16>, vector<32x64xbf16> -> vector<32x512xbf16>
    %cst_77 = arith.constant dense<0.000000e+00> : vector<32x512xf32>
    %305 = tpu.matmul %3, %304, %cst_77 {dimension_numbers = #tpu.dot_dimension_numbers<[1], [0], [0], [1], [0, 0, 1, 1], [], []>} : vector<32x32xbf16>, vector<32x512xbf16>, vector<32x512xf32> -> vector<32x512xf32>
    %cst_78 = arith.constant dense<0.000000e+00> : vector<32x512xf32>
    %306 = tpu.matmul %4, %304, %cst_78 {dimension_numbers = #tpu.dot_dimension_numbers<[1], [0], [0], [1], [0, 0, 1, 1], [], []>} : vector<32x32xbf16>, vector<32x512xbf16>, vector<32x512xf32> -> vector<32x512xf32>
    %307 = arith.addf %305, %306 : vector<32x512xf32>
    %308 = vector.broadcast %5 : vector<32x1xf32> to vector<32x512xf32>
    %309 = arith.addf %307, %308 : vector<32x512xf32>
    %c0_79 = arith.constant 0 : index
    %c0_80 = arith.constant 0 : index
    %c0_81 = arith.constant 0 : index
    %310 = vector.load %arg9[%c0_79, %c0_80, %c0_81] : memref<1x32x512xf32, #tpu.memory_space<vmem>>, vector<1x32x512xf32>
    %311 = vector.shape_cast %310 : vector<1x32x512xf32> to vector<32x512xf32>
    %312 = vector.shape_cast %309 : vector<32x512xf32> to vector<1x32x512xf32>
    tpu.vector_store %arg9[%c0_79, %c0_80, %c0_81], %312 {strides = array<i32>} : memref<1x32x512xf32, #tpu.memory_space<vmem>>, vector<1x32x512xf32>,
    return
  }
  func.func @transform_0(%arg0: i32) -> (i32, i32, i32) {
    %c0_i32 = arith.constant 0 : i32
    %c0_i32_0 = arith.constant 0 : i32
    %c0_i32_1 = arith.constant 0 : i32
    return %arg0, %c0_i32, %c0_i32_0 : i32, i32, i32
  }
  func.func @transform_1(%arg0: i32) -> (i32, i32) {
    %c0_i32 = arith.constant 0 : i32
    %c0_i32_0 = arith.constant 0 : i32
    %c0_i32_1 = arith.constant 0 : i32
    return %c0_i32, %c0_i32_0 : i32, i32
  }
  func.func @transform_2(%arg0: i32) -> (i32, i32) {
    %c0_i32 = arith.constant 0 : i32
    %c0_i32_0 = arith.constant 0 : i32
    %c0_i32_1 = arith.constant 0 : i32
    return %c0_i32, %c0_i32_0 : i32, i32
  }
  func.func @transform_3(%arg0: i32) -> (i32, i32) {
    %c0_i32 = arith.constant 0 : i32
    %c0_i32_0 = arith.constant 0 : i32
    %c0_i32_1 = arith.constant 0 : i32
    return %c0_i32, %c0_i32_0 : i32, i32
  }
  func.func @transform_4(%arg0: i32) -> (i32, i32) {
    %c0_i32 = arith.constant 0 : i32
    %c0_i32_0 = arith.constant 0 : i32
    %c0_i32_1 = arith.constant 0 : i32
    return %c0_i32, %c0_i32_0 : i32, i32
  }
  func.func @transform_5(%arg0: i32) -> (i32, i32) {
    %c0_i32 = arith.constant 0 : i32
    %c0_i32_0 = arith.constant 0 : i32
    %c0_i32_1 = arith.constant 0 : i32
    return %c0_i32, %c0_i32_0 : i32, i32
  }
  func.func @transform_6(%arg0: i32) -> (i32, i32) {
    %c0_i32 = arith.constant 0 : i32
    %c0_i32_0 = arith.constant 0 : i32
    %c0_i32_1 = arith.constant 0 : i32
    return %c0_i32, %c0_i32_0 : i32, i32
  }
  func.func @transform_7(%arg0: i32) -> (i32, i32) {
    %c0_i32 = arith.constant 0 : i32
    %c0_i32_0 = arith.constant 0 : i32
    %c0_i32_1 = arith.constant 0 : i32
    return %c0_i32, %c0_i32_0 : i32, i32
  }
  func.func @transform_8(%arg0: i32) -> (i32, i32, i32) {
    %c0_i32 = arith.constant 0 : i32
    %c0_i32_0 = arith.constant 0 : i32
    %c0_i32_1 = arith.constant 0 : i32
    return %arg0, %c0_i32, %c0_i32_0 : i32, i32, i32
  }
}

</mosaic_0001>

<llo_original>
// kernel: tpu_custom_call.1
$region0: #{tpu_custom_call.1}
  #allocation0 [shape = 'u32[]', space=smem, size = 0x4, offset = 0x4, fixed_abs, tag = 'smem constant byte address 0x4 - core index']
  #allocation1 [shape = 'u32[144,128]{1,0:T(1,128)}', space=vmem, size = 0x12000, scoped, tag = 'internal scratch']
  %s0 = inlined_call_operand.vmem [shape: f32[2,32,512], index: 0, kind: input, shape index: {}]
  %s1 = inlined_call_operand.vmem [shape: bf16[96,32], index: 1, kind: input, shape index: {}]
  %s2 = inlined_call_operand.vmem [shape: bf16[96,32], index: 2, kind: input, shape index: {}]
  %s3 = inlined_call_operand.vmem [shape: f32[96,1], index: 3, kind: input, shape index: {}]
  %s4 = inlined_call_operand.vmem [shape: bf16[32,32], index: 4, kind: input, shape index: {}]
  %s5 = inlined_call_operand.hbm [shape: bf16[32,32], index: 5, kind: input, shape index: {}]
  %s6 = inlined_call_operand.vmem [shape: f32[32,1], index: 6, kind: input, shape index: {}]
  %s7 = inlined_call_operand.hbm [shape: bf16[256,256], index: 7, kind: input, shape index: {}]
  %s8 = inlined_call_operand.hbm [shape: f32[2,32,512], index: 8, kind: output, shape index: {}]
  %s9 = sld [smem:[#allocation0]]
  $region73: #{tpu_custom_call.1} parent=0
    _
  %s11 = ssub.s32 1, %s9
  %s12 = scalar_select 0, %s11, %s9
  $region1: #{tpu_custom_call.1} parent=0
    #allocation2 [shape = 'u8[8192]{0}', space=vmem, size = 0x2000, scoped, tag = 'input window, operand 5, single buffered']
    #allocation3 [shape = 's32[2]{0}', space=sflag, size = 0x8, scoped, tag = 'scoped memory for tpu_custom_call.1']
    #allocation4 [shape = 's32[2]{0}', space=sflag, size = 0x8, scoped, tag = 'scoped memory for tpu_custom_call.1']
    #allocation5 [shape = 'u8[131072]{0}', space=vmem, size = 0x20000, scoped, tag = 'input window, operand 7, single buffered']
    #allocation6 [shape = 's32[1]{0}', space=sflag, size = 0x4, scoped, tag = 'scoped memory for tpu_custom_call.1']
    #allocation7 [shape = 'u8[131072]{0}', space=vmem, size = 0x20000, scoped, tag = 'output window, operand 0']
    %13 = vsyncpa [#allocation3], 0
    %14 = vsyncpa [#allocation6], 0
    %15 = vsyncpa [#allocation4], 0
    %s16 = scalar_lea.sflag [#allocation4], 1
    %17 = vsyncpa %s16, 0
    loop: start=0, step=1, limit=4
    $region2: #{tpu_custom_call.1} parent=1 // loop_pre_header
      _
    $region3: #{tpu_custom_call.1} parent=1 // loop_header
      %s19 = sphi 0, %s23
      %p20 = scmp.ge.s32.totalorder %s19, 4
      %s29 = sphi 0, %s31
      %s32 = sphi 0, %s29
      %s33 = sphi 0, %s32
      %s49 = sphi 0, %s33
      %s53 = sphi 0, %s53
      %s55 = sphi 0, %s53
      %s56 = sphi 0, %s55
      %s70 = sphi 0, %s56
      %s74 = sphi 0, %s74
      %s76 = sphi 0, %s74
      %s77 = sphi 0, %s76
      %s91 = sphi 0, %s77
      %s95 = sphi 0, %s95
      %s97 = sphi 0, %s95
      %s98 = sphi 0, %s97
      %s112 = sphi 0, %s98
      %s116 = sphi 0, %s116
      %s118 = sphi 0, %s116
      %s119 = sphi 0, %s118
      %s133 = sphi 0, %s119
      %s137 = sphi 0, %s137
      %s139 = sphi 0, %s137
      %s140 = sphi 0, %s139
      %s154 = sphi 0, %s140
      %s158 = sphi 0, %s158
      %s160 = sphi 0, %s158
      %s161 = sphi 0, %s160
      %s175 = sphi 0, %s161
      %s179 = sphi 0, %s179
      %s181 = sphi 0, %s179
      %s182 = sphi 0, %s181
      %s196 = sphi 0, %s182
      %s202 = sphi 0, %s204
      %s205 = sphi 0, %s202
      %s206 = sphi 0, %s205
      %s222 = sphi 0, %s206
    $region4: #{tpu_custom_call.1} parent=1 // loop_header_branch
      %22 = sbr.rel (%p20) target = $region8
    $region5: #{tpu_custom_call.1} parent=1 // loop_body
      %s24 = ssub.s32 %s19, 1
      %s25 = ssub.s32 %s19, 2
      %s26 = sadd.s32 %s19, 1
      %s27 = ssub.s32 %s19, %s26
      %p28 = scmp.eq.s32.totalorder %s27, 0
      %s30 = sadd.s32 %s29, 1
      %s31 = scalar_select %p28, %s29, %s30
      %p34 = pneg %p28
      %p35 = scmp.eq.s32.totalorder %s19, 1
      %p36 = por %p34, %p35
      %p37 = scmp.ne.s32.totalorder %s29, %s32
      %p38 = scmp.eq.s32.totalorder %s19, 0
      %p39 = por %p37, %p38
      %p40 = scmp.ne.s32.totalorder %s29, %s32
      %p41 = scmp.eq.s32.totalorder %s24, 1
      %p42 = por %p40, %p41
      %p43 = scmp.ne.s32.totalorder %s32, %s33
      %p44 = scmp.eq.s32.totalorder %s24, 0
      %p45 = por %p43, %p44
      %p46 = scmp.ne.s32.totalorder %s32, %s33
      %p47 = scmp.eq.s32.totalorder %s25, 1
      %p48 = por %p46, %p47
      %p50 = scmp.ne.s32.totalorder %s33, %s49
      %p51 = scmp.eq.s32.totalorder %s25, 0
      %p52 = por %p50, %p51
      %s54 = sadd.s32 %s53, 1
      %p57 = scmp.eq.s32.totalorder %s19, 1
      %p58 = scmp.ne.s32.totalorder %s53, %s55
      %p59 = scmp.eq.s32.totalorder %s19, 0
      %p60 = por %p58, %p59
      %p61 = scmp.ne.s32.totalorder %s53, %s55
      %p62 = scmp.eq.s32.totalorder %s24, 1
      %p63 = por %p61, %p62
      %p64 = scmp.ne.s32.totalorder %s55, %s56
      %p65 = scmp.eq.s32.totalorder %s24, 0
      %p66 = por %p64, %p65
      %p67 = scmp.ne.s32.totalorder %s55, %s56
      %p68 = scmp.eq.s32.totalorder %s25, 1
      %p69 = por %p67, %p68
      %p71 = scmp.ne.s32.totalorder %s56, %s70
      %p72 = scmp.eq.s32.totalorder %s25, 0
      %p73 = por %p71, %p72
      %s75 = sadd.s32 %s74, 1
      %p78 = scmp.eq.s32.totalorder %s19, 1
      %p79 = scmp.ne.s32.totalorder %s74, %s76
      %p80 = scmp.eq.s32.totalorder %s19, 0
      %p81 = por %p79, %p80
      %p82 = scmp.ne.s32.totalorder %s74, %s76
      %p83 = scmp.eq.s32.totalorder %s24, 1
      %p84 = por %p82, %p83
      %p85 = scmp.ne.s32.totalorder %s76, %s77
      %p86 = scmp.eq.s32.totalorder %s24, 0
      %p87 = por %p85, %p86
      %p88 = scmp.ne.s32.totalorder %s76, %s77
      %p89 = scmp.eq.s32.totalorder %s25, 1
      %p90 = por %p88, %p89
      %p92 = scmp.ne.s32.totalorder %s77, %s91
      %p93 = scmp.eq.s32.totalorder %s25, 0
      %p94 = por %p92, %p93
      %s96 = sadd.s32 %s95, 1
      %p99 = scmp.eq.s32.totalorder %s19, 1
      %p100 = scmp.ne.s32.totalorder %s95, %s97
      %p101 = scmp.eq.s32.totalorder %s19, 0
      %p102 = por %p100, %p101
      %p103 = scmp.ne.s32.totalorder %s95, %s97
      %p104 = scmp.eq.s32.totalorder %s24, 1
      %p105 = por %p103, %p104
      %p106 = scmp.ne.s32.totalorder %s97, %s98
      %p107 = scmp.eq.s32.totalorder %s24, 0
      %p108 = por %p106, %p107
      %p109 = scmp.ne.s32.totalorder %s97, %s98
      %p110 = scmp.eq.s32.totalorder %s25, 1
      %p111 = por %p109, %p110
      %p113 = scmp.ne.s32.totalorder %s98, %s112
      %p114 = scmp.eq.s32.totalorder %s25, 0
      %p115 = por %p113, %p114
      %s117 = sadd.s32 %s116, 1
      %p120 = scmp.eq.s32.totalorder %s19, 1
      %p121 = scmp.ne.s32.totalorder %s116, %s118
      %p122 = scmp.eq.s32.totalorder %s19, 0
      %p123 = por %p121, %p122
      %p124 = scmp.ne.s32.totalorder %s116, %s118
      %p125 = scmp.eq.s32.totalorder %s24, 1
      %p126 = por %p124, %p125
      %p127 = scmp.ne.s32.totalorder %s118, %s119
      %p128 = scmp.eq.s32.totalorder %s24, 0
      %p129 = por %p127, %p128
      %p130 = scmp.ne.s32.totalorder %s118, %s119
      %p131 = scmp.eq.s32.totalorder %s25, 1
      %p132 = por %p130, %p131
      %p134 = scmp.ne.s32.totalorder %s119, %s133
      %p135 = scmp.eq.s32.totalorder %s25, 0
      %p136 = por %p134, %p135
      %s138 = sadd.s32 %s137, 1
      %p141 = scmp.eq.s32.totalorder %s19, 1
      %p142 = scmp.ne.s32.totalorder %s137, %s139
      %p143 = scmp.eq.s32.totalorder %s19, 0
      %p144 = por %p142, %p143
      %p145 = scmp.ne.s32.totalorder %s137, %s139
      %p146 = scmp.eq.s32.totalorder %s24, 1
      %p147 = por %p145, %p146
      %p148 = scmp.ne.s32.totalorder %s139, %s140
      %p149 = scmp.eq.s32.totalorder %s24, 0
      %p150 = por %p148, %p149
      %p151 = scmp.ne.s32.totalorder %s139, %s140
      %p152 = scmp.eq.s32.totalorder %s25, 1
      %p153 = por %p151, %p152
      %p155 = scmp.ne.s32.totalorder %s140, %s154
      %p156 = scmp.eq.s32.totalorder %s25, 0
      %p157 = por %p155, %p156
      %s159 = sadd.s32 %s158, 1
      %p162 = scmp.eq.s32.totalorder %s19, 1
      %p163 = scmp.ne.s32.totalorder %s158, %s160
      %p164 = scmp.eq.s32.totalorder %s19, 0
      %p165 = por %p163, %p164
      %p166 = scmp.ne.s32.totalorder %s158, %s160
      %p167 = scmp.eq.s32.totalorder %s24, 1
      %p168 = por %p166, %p167
      %p169 = scmp.ne.s32.totalorder %s160, %s161
      %p170 = scmp.eq.s32.totalorder %s24, 0
      %p171 = por %p169, %p170
      %p172 = scmp.ne.s32.totalorder %s160, %s161
      %p173 = scmp.eq.s32.totalorder %s25, 1
      %p174 = por %p172, %p173
      %p176 = scmp.ne.s32.totalorder %s161, %s175
      %p177 = scmp.eq.s32.totalorder %s25, 0
      %p178 = por %p176, %p177
      %s180 = sadd.s32 %s179, 1
      %p183 = scmp.eq.s32.totalorder %s19, 1
      %p184 = scmp.ne.s32.totalorder %s179, %s181
      %p185 = scmp.eq.s32.totalorder %s19, 0
      %p186 = por %p184, %p185
      %p187 = scmp.ne.s32.totalorder %s179, %s181
      %p188 = scmp.eq.s32.totalorder %s24, 1
      %p189 = por %p187, %p188
      %p190 = scmp.ne.s32.totalorder %s181, %s182
      %p191 = scmp.eq.s32.totalorder %s24, 0
      %p192 = por %p190, %p191
      %p193 = scmp.ne.s32.totalorder %s181, %s182
      %p194 = scmp.eq.s32.totalorder %s25, 1
      %p195 = por %p193, %p194
      %p197 = scmp.ne.s32.totalorder %s182, %s196
      %p198 = scmp.eq.s32.totalorder %s25, 0
      %p199 = por %p197, %p198
      %s200 = ssub.s32 %s19, %s26
      %p201 = scmp.eq.s32.totalorder %s200, 0
      %s203 = sadd.s32 %s202, 1
      %s204 = scalar_select %p201, %s202, %s203
      %p207 = pneg %p201
      %p208 = scmp.eq.s32.totalorder %s19, 1
      %p209 = por %p207, %p208
      %p210 = scmp.ne.s32.totalorder %s202, %s205
      %p211 = scmp.eq.s32.totalorder %s19, 0
      %p212 = por %p210, %p211
      %p213 = scmp.ne.s32.totalorder %s202, %s205
      %p214 = scmp.eq.s32.totalorder %s24, 1
      %p215 = por %p213, %p214
      %p216 = scmp.ne.s32.totalorder %s205, %s206
      %p217 = scmp.eq.s32.totalorder %s24, 0
      %p218 = por %p216, %p217
      %p219 = scmp.ne.s32.totalorder %s205, %s206
      %p220 = scmp.eq.s32.totalorder %s25, 1
      %p221 = por %p219, %p220
      %p223 = scmp.ne.s32.totalorder %s206, %s222
      %p224 = scmp.eq.s32.totalorder %s25, 0
      %p225 = por %p223, %p224
      %p226 = scmp.le.s32.totalorder 1, %s19
      %p227 = scmp.lt.s32.totalorder %s19, 3
      %p228 = pnand %p226, %p227
      %p229 = pneg %p228
      // Predicated region
      $region9: #{tpu_custom_call.1} parent=5 // pred_check
        _
      $region10: #{tpu_custom_call.1} parent=5 // pred_check_branch
        %231 = sbr.rel (%p228) target = $region12
      $region11: #{tpu_custom_call.1} parent=5 // pred_region
        %s232 = ssub.s32 %s19, 1
        // Predicated region
        $region13: #{tpu_custom_call.1} parent=11 // pred_check
          %p233 = pneg %p66
        $region14: #{tpu_custom_call.1} parent=11 // pred_check_branch
          %235 = sbr.rel (%p233) target = $region16
        $region15: #{tpu_custom_call.1} parent=11 // pred_region
          _
        $region16: #{tpu_custom_call.1} parent=11 // pred_fallthru
          _
        // Predicated region
        $region17: #{tpu_custom_call.1} parent=11 // pred_check
          %p236 = pneg %p87
        $region18: #{tpu_custom_call.1} parent=11 // pred_check_branch
          %238 = sbr.rel (%p236) target = $region20
        $region19: #{tpu_custom_call.1} parent=11 // pred_region
          _
        $region20: #{tpu_custom_call.1} parent=11 // pred_fallthru
          _
        // Predicated region
        $region21: #{tpu_custom_call.1} parent=11 // pred_check
          %p239 = pneg %p108
        $region22: #{tpu_custom_call.1} parent=11 // pred_check_branch
          %241 = sbr.rel (%p239) target = $region24
        $region23: #{tpu_custom_call.1} parent=11 // pred_region
          _
        $region24: #{tpu_custom_call.1} parent=11 // pred_fallthru
          _
        // Predicated region
        $region25: #{tpu_custom_call.1} parent=11 // pred_check
          %p242 = pneg %p129
        $region26: #{tpu_custom_call.1} parent=11 // pred_check_branch
          %244 = sbr.rel (%p242) target = $region28
        $region27: #{tpu_custom_call.1} parent=11 // pred_region
          _
        $region28: #{tpu_custom_call.1} parent=11 // pred_fallthru
          _
        // Predicated region
        $region29: #{tpu_custom_call.1} parent=11 // pred_check
          %p245 = pneg %p150
        $region30: #{tpu_custom_call.1} parent=11 // pred_check_branch
          %247 = sbr.rel (%p245) target = $region32
        $region31: #{tpu_custom_call.1} parent=11 // pred_region
          %s249 = ssub.s32 256, 256
          %250 = vsyncadd [#allocation3], %s249
          %s251 = sshll.u32 [#allocation2], 4
          %s252 = int_to_ptr.vmem [resolvable:$true] %s251
          %257 = dma.hbm_to_vmem [thread:$0]  %s5, 256, %s252, [#allocation3], 64, 64, 4
        $region32: #{tpu_custom_call.1} parent=11 // pred_fallthru
          _
        // Predicated region
        $region33: #{tpu_custom_call.1} parent=11 // pred_check
          %p258 = pneg %p171
        $region34: #{tpu_custom_call.1} parent=11 // pred_check_branch
          %260 = sbr.rel (%p258) target = $region36
        $region35: #{tpu_custom_call.1} parent=11 // pred_region
          _
        $region36: #{tpu_custom_call.1} parent=11 // pred_fallthru
          _
        // Predicated region
        $region37: #{tpu_custom_call.1} parent=11 // pred_check
          %p261 = pneg %p192
        $region38: #{tpu_custom_call.1} parent=11 // pred_check_branch
          %263 = sbr.rel (%p261) target = $region40
        $region39: #{tpu_custom_call.1} parent=11 // pred_region
          %s265 = ssub.s32 4096, 4096
          %266 = vsyncadd [#allocation6], %s265
          %s267 = sshll.u32 [#allocation5], 4
          %s268 = int_to_ptr.vmem [resolvable:$true] %s267
          %273 = dma.hbm_to_vmem [thread:$0]  %s7, 4096, %s268, [#allocation6], 128, 128, 8
        $region40: #{tpu_custom_call.1} parent=11 // pred_fallthru
          _
      $region12: #{tpu_custom_call.1} parent=5 // pred_fallthru
        _
      %p274 = scmp.lt.s32.totalorder %s19, 2
      // Predicated region
      $region41: #{tpu_custom_call.1} parent=5 // pred_check
        %p275 = pneg %p274
      $region42: #{tpu_custom_call.1} parent=5 // pred_check_branch
        %277 = sbr.rel (%p275) target = $region44
      $region43: #{tpu_custom_call.1} parent=5 // pred_region
        // Predicated region
        $region45: #{tpu_custom_call.1} parent=43 // pred_check
          %p278 = pneg %p39
        $region46: #{tpu_custom_call.1} parent=43 // pred_check_branch
          %280 = sbr.rel (%p278) target = $region48
        $region47: #{tpu_custom_call.1} parent=43 // pred_region
          %p281 = scmp.lt.s32.totalorder %s19, 1
          %s282 = scalar_select %p281, %s19, 1
          %s283 = smul.addr %s282, 16
          %s284 = smul.addr %s283, 8
          %s285 = scalar_lea.vmem %s0, %s284
        $region48: #{tpu_custom_call.1} parent=43 // pred_fallthru
          _
      $region44: #{tpu_custom_call.1} parent=5 // pred_fallthru
        _
      %p286 = scmp.le.s32.totalorder 1, %s19
      %p287 = scmp.lt.s32.totalorder %s19, 3
      %p288 = pnand %p286, %p287
      %p289 = pneg %p288
      // Predicated region
      $region49: #{tpu_custom_call.1} parent=5 // pred_check
        _
      $region50: #{tpu_custom_call.1} parent=5 // pred_check_branch
        %291 = sbr.rel (%p288) target = $region52
      $region51: #{tpu_custom_call.1} parent=5 // pred_region
        %s292 = ssub.s32 %s19, 1
        // Predicated region
        $region53: #{tpu_custom_call.1} parent=51 // pred_check
          %p293 = pneg %p150
        $region54: #{tpu_custom_call.1} parent=51 // pred_check_branch
          %295 = sbr.rel (%p293) target = $region56
        $region55: #{tpu_custom_call.1} parent=51 // pred_region
          %296 = dma.done [#allocation3], 256
        $region56: #{tpu_custom_call.1} parent=51 // pred_fallthru
          _
        // Predicated region
        $region57: #{tpu_custom_call.1} parent=51 // pred_check
          %p297 = pneg %p192
        $region58: #{tpu_custom_call.1} parent=51 // pred_check_branch
          %299 = sbr.rel (%p297) target = $region60
        $region59: #{tpu_custom_call.1} parent=51 // pred_region
          %300 = dma.done [#allocation6], 4096
        $region60: #{tpu_custom_call.1} parent=51 // pred_fallthru
          _
        %p301 = scmp.lt.s32.totalorder %s24, 1
        %s302 = scalar_select %p301, %s24, 1
        %s303 = smul.addr %s302, 16
        %s304 = smul.addr %s303, 8
        %s305 = scalar_lea.vmem %s0, %s304
        %p306 = pneg %p45
        %p307 = pneg %p42
        %p308 = pneg %p66
        %p309 = pneg %p63
        %p310 = pneg %p87
        %p311 = pneg %p84
        %p312 = pneg %p108
        %p313 = pneg %p105
        %p314 = pneg %p129
        %p315 = pneg %p126
        %p316 = pneg %p150
        %p317 = pneg %p147
        %p318 = pneg %p171
        %p319 = pneg %p168
        %p320 = pneg %p192
        %p321 = pneg %p189
        %p322 = pneg %p218
        %p323 = pneg %p215
        %s324 = sand.u32 %s205, 1
        %s325 = scalar_lea.sflag [#allocation4], %s324
        %s326 = sand.u32 %s205, 1
        %s327 = smul.addr %s326, 128
        %s328 = scalar_lea.vmem [#allocation7], %s327
        %p329 = scmp.lt.s32.totalorder %s24, 1
        %s330 = scalar_select %p329, %s24, 1
        %s331 = smul.addr %s330, 16
        %s332 = smul.addr %s331, 8
        %s333 = scalar_lea.vmem %s0, %s332
        %v335 = vld [vmem:[%s1] sm:$0xf]
        %v336 = vld [vmem:[%s1 + $0x4] sm:$0xf]
        %v337 = vld [vmem:[%s1 + $0x8] sm:$0xf]
        %v338 = vld [vmem:[%s1 + $0xc] sm:$0xf]
        %v339 = vld [vmem:[%s1 + $0x10] sm:$0xf]
        %v340 = vld [vmem:[%s1 + $0x14] sm:$0xf]
        %v341 = vld [vmem:[%s1 + $0x18] sm:$0xf]
        %v342 = vld [vmem:[%s1 + $0x1c] sm:$0xf]
        %v343 = vld [vmem:[%s1 + $0x20] sm:$0xf]
        %v344 = vld [vmem:[%s1 + $0x24] sm:$0xf]
        %v345 = vld [vmem:[%s1 + $0x28] sm:$0xf]
        %v346 = vld [vmem:[%s1 + $0x2c] sm:$0xf]
        %v347 = vld [vmem:[%s2] sm:$0xf]
        %v348 = vld [vmem:[%s2 + $0x4] sm:$0xf]
        %v349 = vld [vmem:[%s2 + $0x8] sm:$0xf]
        %v350 = vld [vmem:[%s2 + $0xc] sm:$0xf]
        %v351 = vld [vmem:[%s2 + $0x10] sm:$0xf]
        %v352 = vld [vmem:[%s2 + $0x14] sm:$0xf]
        %v353 = vld [vmem:[%s2 + $0x18] sm:$0xf]
        %v354 = vld [vmem:[%s2 + $0x1c] sm:$0xf]
        %v355 = vld [vmem:[%s2 + $0x20] sm:$0xf]
        %v356 = vld [vmem:[%s2 + $0x24] sm:$0xf]
        %v357 = vld [vmem:[%s2 + $0x28] sm:$0xf]
        %v358 = vld [vmem:[%s2 + $0x2c] sm:$0xf]
        %v359 = vld [vmem:[%s3] sm:$0xff]
        %v360 = vld [vmem:[%s3 + $0x8] sm:$0xff]
        %v361 = vld [vmem:[%s3 + $0x10] sm:$0xff]
        %v362 = vld [vmem:[%s3 + $0x18] sm:$0xff]
        %v363 = vld [vmem:[%s3 + $0x20] sm:$0xff]
        %v364 = vld [vmem:[%s3 + $0x28] sm:$0xff]
        %v365 = vld [vmem:[%s3 + $0x30] sm:$0xff]
        %v366 = vld [vmem:[%s3 + $0x38] sm:$0xff]
        %v367 = vld [vmem:[%s3 + $0x40] sm:$0xff]
        %v368 = vld [vmem:[%s3 + $0x48] sm:$0xff]
        %v369 = vld [vmem:[%s3 + $0x50] sm:$0xff]
        %v370 = vld [vmem:[%s3 + $0x58] sm:$0xff]
        %v371 = vld [vmem:[%s4] sm:$0xf]
        %v372 = vld [vmem:[%s4 + $0x4] sm:$0xf]
        %v373 = vld [vmem:[%s4 + $0x8] sm:$0xf]
        %v374 = vld [vmem:[%s4 + $0xc] sm:$0xf]
        %v375 = vld [vmem:[#allocation2] sm:$0xf]
        %v376 = vld [vmem:[#allocation2 + $0x4] sm:$0xf]
        %v377 = vld [vmem:[#allocation2 + $0x8] sm:$0xf]
        %v378 = vld [vmem:[#allocation2 + $0xc] sm:$0xf]
        %v379 = vld [vmem:[%s6] sm:$0xff]
        %v380 = vld [vmem:[%s6 + $0x8] sm:$0xff]
        %v381 = vld [vmem:[%s6 + $0x10] sm:$0xff]
        %v382 = vld [vmem:[%s6 + $0x18] sm:$0xff]
        %v383 = vld [vmem:[#allocation5] sm:$0xff]
        %v384 = vld [vmem:[#allocation5 + $0x8] sm:$0xff]
        %v385 = vld [vmem:[#allocation5 + $0x10] sm:$0xff]
        %v386 = vld [vmem:[#allocation5 + $0x18] sm:$0xff]
        %v387 = vld [vmem:[#allocation5 + $0x20] sm:$0xff]
        %v388 = vld [vmem:[#allocation5 + $0x28] sm:$0xff]
        %v389 = vld [vmem:[#allocation5 + $0x30] sm:$0xff]
        %v390 = vld [vmem:[#allocation5 + $0x38] sm:$0xff]
        %v391 = vld [vmem:[#allocation5 + $0x40] sm:$0xff]
        %v392 = vld [vmem:[#allocation5 + $0x48] sm:$0xff]
        %v393 = vld [vmem:[#allocation5 + $0x50] sm:$0xff]
        %v394 = vld [vmem:[#allocation5 + $0x58] sm:$0xff]
        %v395 = vld [vmem:[#allocation5 + $0x60] sm:$0xff]
        %v396 = vld [vmem:[#allocation5 + $0x68] sm:$0xff]
        %v397 = vld [vmem:[#allocation5 + $0x70] sm:$0xff]
        %v398 = vld [vmem:[#allocation5 + $0x78] sm:$0xff]
        %v399 = vld [vmem:[#allocation5 + $0x80] sm:$0xff]
        %v400 = vld [vmem:[#allocation5 + $0x88] sm:$0xff]
        %v401 = vld [vmem:[#allocation5 + $0x90] sm:$0xff]
        %v402 = vld [vmem:[#allocation5 + $0x98] sm:$0xff]
        %v403 = vld [vmem:[#allocation5 + $0xa0] sm:$0xff]
        %v404 = vld [vmem:[#allocation5 + $0xa8] sm:$0xff]
        %v405 = vld [vmem:[#allocation5 + $0xb0] sm:$0xff]
        %v406 = vld [vmem:[#allocation5 + $0xb8] sm:$0xff]
        %v407 = vld [vmem:[#allocation5 + $0xc0] sm:$0xff]
        %v408 = vld [vmem:[#allocation5 + $0xc8] sm:$0xff]
        %v409 = vld [vmem:[#allocation5 + $0xd0] sm:$0xff]
        %v410 = vld [vmem:[#allocation5 + $0xd8] sm:$0xff]
        %v411 = vld [vmem:[#allocation5 + $0xe0] sm:$0xff]
        %v412 = vld [vmem:[#allocation5 + $0xe8] sm:$0xff]
        %v413 = vld [vmem:[#allocation5 + $0xf0] sm:$0xff]
        %v414 = vld [vmem:[#allocation5 + $0xf8] sm:$0xff]
        %v415 = vunpack.c.l.bf16 %v383
        %v416 = vunpack.c.h.bf16 %v383
        %v417 = vunpack.c.l.bf16 %v384
        %v418 = vunpack.c.h.bf16 %v384
        %v419 = vunpack.c.l.bf16 %v385
        %v420 = vunpack.c.h.bf16 %v385
        %v421 = vunpack.c.l.bf16 %v386
        %v422 = vunpack.c.h.bf16 %v386
        %v423 = vunpack.c.l.bf16 %v387
        %v424 = vunpack.c.h.bf16 %v387
        %v425 = vunpack.c.l.bf16 %v388
        %v426 = vunpack.c.h.bf16 %v388
        %v427 = vunpack.c.l.bf16 %v389
        %v428 = vunpack.c.h.bf16 %v389
        %v429 = vunpack.c.l.bf16 %v390
        %v430 = vunpack.c.h.bf16 %v390
        %v431 = vunpack.c.l.bf16 %v391
        %v432 = vunpack.c.h.bf16 %v391
        %v433 = vunpack.c.l.bf16 %v392
        %v434 = vunpack.c.h.bf16 %v392
        %v435 = vunpack.c.l.bf16 %v393
        %v436 = vunpack.c.h.bf16 %v393
        %v437 = vunpack.c.l.bf16 %v394
        %v438 = vunpack.c.h.bf16 %v394
        %v439 = vunpack.c.l.bf16 %v395
        %v440 = vunpack.c.h.bf16 %v395
        %v441 = vunpack.c.l.bf16 %v396
        %v442 = vunpack.c.h.bf16 %v396
        %v443 = vunpack.c.l.bf16 %v397
        %v444 = vunpack.c.h.bf16 %v397
        %v445 = vunpack.c.l.bf16 %v398
        %v446 = vunpack.c.h.bf16 %v398
        %v447 = vunpack.c.l.bf16 %v399
        %v448 = vunpack.c.h.bf16 %v399
        %v449 = vunpack.c.l.bf16 %v400
        %v450 = vunpack.c.h.bf16 %v400
        %v451 = vunpack.c.l.bf16 %v401
        %v452 = vunpack.c.h.bf16 %v401
        %v453 = vunpack.c.l.bf16 %v402
        %v454 = vunpack.c.h.bf16 %v402
        %v455 = vunpack.c.l.bf16 %v403
        %v456 = vunpack.c.h.bf16 %v403
        %v457 = vunpack.c.l.bf16 %v404
        %v458 = vunpack.c.h.bf16 %v404
        %v459 = vunpack.c.l.bf16 %v405
        %v460 = vunpack.c.h.bf16 %v405
        %v461 = vunpack.c.l.bf16 %v406
        %v462 = vunpack.c.h.bf16 %v406
        %v463 = vunpack.c.l.bf16 %v407
        %v464 = vunpack.c.h.bf16 %v407
        %v465 = vunpack.c.l.bf16 %v408
        %v466 = vunpack.c.h.bf16 %v408
        %v467 = vunpack.c.l.bf16 %v409
        %v468 = vunpack.c.h.bf16 %v409
        %v469 = vunpack.c.l.bf16 %v410
        %v470 = vunpack.c.h.bf16 %v410
        %v471 = vunpack.c.l.bf16 %v411
        %v472 = vunpack.c.h.bf16 %v411
        %v473 = vunpack.c.l.bf16 %v412
        %v474 = vunpack.c.h.bf16 %v412
        %v475 = vunpack.c.l.bf16 %v413
        %v476 = vunpack.c.h.bf16 %v413
        %v477 = vunpack.c.l.bf16 %v414
        %v478 = vunpack.c.h.bf16 %v414
        %v479 = vld [vmem:[%s333] sm:$0xff]
        %v480 = vld [vmem:[%s333 + $0x8] sm:$0xff]
        %v481 = vld [vmem:[%s333 + $0x10] sm:$0xff]
        %v482 = vld [vmem:[%s333 + $0x18] sm:$0xff]
        %v483 = vld [vmem:[%s333 + $0x20] sm:$0xff]
        %v484 = vld [vmem:[%s333 + $0x28] sm:$0xff]
        %v485 = vld [vmem:[%s333 + $0x30] sm:$0xff]
        %v486 = vld [vmem:[%s333 + $0x38] sm:$0xff]
        %v487 = vld [vmem:[%s333 + $0x40] sm:$0xff]
        %v488 = vld [vmem:[%s333 + $0x48] sm:$0xff]
        %v489 = vld [vmem:[%s333 + $0x50] sm:$0xff]
        %v490 = vld [vmem:[%s333 + $0x58] sm:$0xff]
        %v491 = vld [vmem:[%s333 + $0x60] sm:$0xff]
        %v492 = vld [vmem:[%s333 + $0x68] sm:$0xff]
        %v493 = vld [vmem:[%s333 + $0x70] sm:$0xff]
        %v494 = vld [vmem:[%s333 + $0x78] sm:$0xff]
        %v495 = vmul.f32 %v479, 0.6666667
        %v496 = vmul.f32 %v483, 0.6666667
        %v497 = vmul.f32 %v487, 0.6666667
        %v498 = vmul.f32 %v491, 0.6666667
        %v499 = vadd.f32 %v495, 0.0
        %v500 = vadd.f32 %v496, 0.0
        %v501 = vadd.f32 %v497, 0.0
        %v502 = vadd.f32 %v498, 0.0
        %vm503 = vcmp.ge.f32.partialorder %v499, 1.0
        %vm504 = vcmp.ge.f32.partialorder %v500, 1.0
        %vm505 = vcmp.ge.f32.partialorder %v501, 1.0
        %vm506 = vcmp.ge.f32.partialorder %v502, 1.0
        %v507 = vsel %vm503, 0.0, %v499
        %v508 = vsel %vm504, 0.0, %v500
        %v509 = vsel %vm505, 0.0, %v501
        %v510 = vsel %vm506, 0.0, %v502
        %v511 = vsel %vm503, 1, 0
        %v512 = vsel %vm504, 1, 0
        %v513 = vsel %vm505, 1, 0
        %v514 = vsel %vm506, 1, 0
        %v515 = vcvt.s32.f32 %v511
        %v516 = vcvt.s32.f32 %v512
        %v517 = vcvt.s32.f32 %v513
        %v518 = vcvt.s32.f32 %v514
        %v519 = vpack.c.bf16 %v516, %v515
        %v520 = vpack.c.bf16 %v518, %v517
        %v521 = vsub.f32 %v480, %v507
        %v522 = vsub.f32 %v484, %v508
        %v523 = vsub.f32 %v488, %v509
        %v524 = vsub.f32 %v492, %v510
        %v525 = vmul.f32 %v521, 0.6666667
        %v526 = vmul.f32 %v522, 0.6666667
        %v527 = vmul.f32 %v523, 0.6666667
        %v528 = vmul.f32 %v524, 0.6666667
        %v529 = vadd.f32 %v507, %v525
        %v530 = vadd.f32 %v508, %v526
        %v531 = vadd.f32 %v509, %v527
        %v532 = vadd.f32 %v510, %v528
        %vm533 = vcmp.ge.f32.partialorder %v529, 1.0
        %vm534 = vcmp.ge.f32.partialorder %v530, 1.0
        %vm535 = vcmp.ge.f32.partialorder %v531, 1.0
        %vm536 = vcmp.ge.f32.partialorder %v532, 1.0
        %v537 = vsel %vm533, 0.0, %v529
        %v538 = vsel %vm534, 0.0, %v530
        %v539 = vsel %vm535, 0.0, %v531
        %v540 = vsel %vm536, 0.0, %v532
        %v541 = vsel %vm533, 1, 0
        %v542 = vsel %vm534, 1, 0
        %v543 = vsel %vm535, 1, 0
        %v544 = vsel %vm536, 1, 0
        %v545 = vcvt.s32.f32 %v541
        %v546 = vcvt.s32.f32 %v542
        %v547 = vcvt.s32.f32 %v543
        %v548 = vcvt.s32.f32 %v544
        %v549 = vpack.c.bf16 %v546, %v545
        %v550 = vpack.c.bf16 %v548, %v547
        %v551 = vsub.f32 %v481, %v537
        %v552 = vsub.f32 %v485, %v538
        %v553 = vsub.f32 %v489, %v539
        %v554 = vsub.f32 %v493, %v540
        %v555 = vmul.f32 %v551, 0.6666667
        %v556 = vmul.f32 %v552, 0.6666667
        %v557 = vmul.f32 %v553, 0.6666667
        %v558 = vmul.f32 %v554, 0.6666667
        %v559 = vadd.f32 %v537, %v555
        %v560 = vadd.f32 %v538, %v556
        %v561 = vadd.f32 %v539, %v557
        %v562 = vadd.f32 %v540, %v558
        %vm563 = vcmp.ge.f32.partialorder %v559, 1.0
        %vm564 = vcmp.ge.f32.partialorder %v560, 1.0
        %vm565 = vcmp.ge.f32.partialorder %v561, 1.0
        %vm566 = vcmp.ge.f32.partialorder %v562, 1.0
        %v567 = vsel %vm563, 0.0, %v559
        %v568 = vsel %vm564, 0.0, %v560
        %v569 = vsel %vm565, 0.0, %v561
        %v570 = vsel %vm566, 0.0, %v562
        %v571 = vsel %vm563, 1, 0
        %v572 = vsel %vm564, 1, 0
        %v573 = vsel %vm565, 1, 0
        %v574 = vsel %vm566, 1, 0
        %v575 = vcvt.s32.f32 %v571
        %v576 = vcvt.s32.f32 %v572
        %v577 = vcvt.s32.f32 %v573
        %v578 = vcvt.s32.f32 %v574
        %v579 = vpack.c.bf16 %v576, %v575
        %v580 = vpack.c.bf16 %v578, %v577
        %v581 = vsub.f32 %v482, %v567
        %v582 = vsub.f32 %v486, %v568
        %v583 = vsub.f32 %v490, %v569
        %v584 = vsub.f32 %v494, %v570
        %v585 = vmul.f32 %v581, 0.6666667
        %v586 = vmul.f32 %v582, 0.6666667
        %v587 = vmul.f32 %v583, 0.6666667
        %v588 = vmul.f32 %v584, 0.6666667
        %v589 = vadd.f32 %v567, %v585
        %v590 = vadd.f32 %v568, %v586
        %v591 = vadd.f32 %v569, %v587
        %v592 = vadd.f32 %v570, %v588
        %vm593 = vcmp.ge.f32.partialorder %v589, 1.0
        %vm594 = vcmp.ge.f32.partialorder %v590, 1.0
        %vm595 = vcmp.ge.f32.partialorder %v591, 1.0
        %vm596 = vcmp.ge.f32.partialorder %v592, 1.0
        %v597 = vsel %vm593, 1, 0
        %v598 = vsel %vm594, 1, 0
        %v599 = vsel %vm595, 1, 0
        %v600 = vsel %vm596, 1, 0
        %v601 = vcvt.s32.f32 %v597
        %v602 = vcvt.s32.f32 %v598
        %v603 = vcvt.s32.f32 %v599
        %v604 = vcvt.s32.f32 %v600
        %v605 = vpack.c.bf16 %v602, %v601
        %v606 = vpack.c.bf16 %v604, %v603
        %v619 = vunpack.c.l.b16 %v347
        %v620 = vunpack.c.l.b16 %v348
        %v621 = vunpack.c.l.b16 %v349
        %v622 = vunpack.c.l.b16 %v350
        %v623 = vunpack.c.l.b16 %v351
        %v624 = vunpack.c.l.b16 %v352
        %v625 = vunpack.c.l.b16 %v353
        %v626 = vunpack.c.l.b16 %v354
        %v627 = vunpack.c.l.b16 %v355
        %v628 = vunpack.c.l.b16 %v356
        %v629 = vunpack.c.l.b16 %v357
        %v630 = vunpack.c.l.b16 %v358
        %v631 = vpack.c.b16 %v620, %v619
        %v632 = vpack.c.b16 %v622, %v621
        %v633 = vpack.c.b16 %v624, %v623
        %v634 = vpack.c.b16 %v626, %v625
        %v635 = vpack.c.b16 %v628, %v627
        %v636 = vpack.c.b16 %v630, %v629
        %vm637 = vcmask 261120
        %v639 = vsel %vm637, %v631, 0
        %v642 = vsel %vm637, %v632, 0
        %v645 = vsel %vm637, %v633, 0
        %v648 = vsel %vm637, %v634, 0
        %v651 = vsel %vm637, %v635, 0
        %v654 = vsel %vm637, %v636, 0
        %656 = vmatprep.subr.bf16.mxu0 %v549
        %657 = vmatpush1.bf16.msra.mxu0 %v519
        %658 = vmatprep.subr.bf16.mxu0 %v550
        %659 = vmatpush1.bf16.msra.mxu0 %v520
        %660 = vmatprep.subr.bf16.mxu0 0
        %661 = vmatpush1.bf16.msra.mxu0 0
        %662 = vmatprep.subr.bf16.mxu0 0
        %663 = vmatpush1.bf16.msra.mxu0 0
        %664 = vmatprep.subr.bf16.mxu0 0
        %665 = vmatpush1.bf16.msra.mxu0 0
        %666 = vmatprep.subr.bf16.mxu0 0
        %667 = vmatpush1.bf16.msra.mxu0 0
        %668 = vmatprep.subr.bf16.mxu0 0
        %669 = vmatpush1.bf16.msra.mxu0 0
        %670 = vmatprep.subr.bf16.mxu0 0
        %671 = vmatpush1.bf16.msra.mxu0 0
        %672 = vmatprep.subr.bf16.mxu0 0
        %673 = vmatpush1.bf16.msra.mxu0 0
        %674 = vmatprep.subr.bf16.mxu0 0
        %675 = vmatpush1.bf16.msra.mxu0 0
        %676 = vmatprep.subr.bf16.mxu0 0
        %677 = vmatpush1.bf16.msra.mxu0 0
        %678 = vmatprep.subr.bf16.mxu0 0
        %679 = vmatpush1.bf16.msra.mxu0 0
        %680 = vmatprep.subr.bf16.mxu0 0
        %681 = vmatpush1.bf16.msra.mxu0 0
        %682 = vmatprep.subr.bf16.mxu0 0
        %683 = vmatpush1.bf16.msra.mxu0 0
        %684 = vmatprep.subr.bf16.mxu0 0
        %685 = vmatpush1.bf16.msra.mxu0 0
        %686 = vmatprep.subr.bf16.mxu0 0
        %687 = vmatpush1.bf16.msra.mxu0 0
        %688 = vmatprep.mubr.bf16.mxu0 0
        %689 = vmatmul.mubr.bf16.gmra.mrb[0].mxu0 %v639
        %v690 = vpop.f32.mrb[0].mxu0
        %v691 = vadd.f32 0.0, %v690
        %v692 = vpop.f32.mrb[0].mxu0
        %v693 = vadd.f32 0.0, %v692
        %v694 = vpop.f32.mrb[0].mxu0
        %v695 = vadd.f32 0.0, %v694
        %v696 = vpop.f32.mrb[0].mxu0
        %v697 = vadd.f32 0.0, %v696
        %698 = vmatprep.mubr.bf16.mxu0 0
        %699 = vmatmul.mubr.bf16.gmra.mrb[0].mxu0 %v642
        %v700 = vpop.f32.mrb[0].mxu0
        %v701 = vadd.f32 0.0, %v700
        %v702 = vpop.f32.mrb[0].mxu0
        %v703 = vadd.f32 0.0, %v702
        %v704 = vpop.f32.mrb[0].mxu0
        %v705 = vadd.f32 0.0, %v704
        %v706 = vpop.f32.mrb[0].mxu0
        %v707 = vadd.f32 0.0, %v706
        %708 = vmatprep.mubr.bf16.mxu0 0
        %709 = vmatmul.mubr.bf16.gmra.mrb[0].mxu0 %v645
        %v710 = vpop.f32.mrb[0].mxu0
        %v711 = vadd.f32 0.0, %v710
        %v712 = vpop.f32.mrb[0].mxu0
        %v713 = vadd.f32 0.0, %v712
        %v714 = vpop.f32.mrb[0].mxu0
        %v715 = vadd.f32 0.0, %v714
        %v716 = vpop.f32.mrb[0].mxu0
        %v717 = vadd.f32 0.0, %v716
        %718 = vmatprep.mubr.bf16.mxu0 0
        %719 = vmatmul.mubr.bf16.gmra.mrb[0].mxu0 %v648
        %v720 = vpop.f32.mrb[0].mxu0
        %v721 = vadd.f32 0.0, %v720
        %v722 = vpop.f32.mrb[0].mxu0
        %v723 = vadd.f32 0.0, %v722
        %v724 = vpop.f32.mrb[0].mxu0
        %v725 = vadd.f32 0.0, %v724
        %v726 = vpop.f32.mrb[0].mxu0
        %v727 = vadd.f32 0.0, %v726
        %728 = vmatprep.mubr.bf16.mxu0 0
        %729 = vmatmul.mubr.bf16.gmra.mrb[0].mxu0 %v651
        %v730 = vpop.f32.mrb[0].mxu0
        %v731 = vadd.f32 0.0, %v730
        %v732 = vpop.f32.mrb[0].mxu0
        %v733 = vadd.f32 0.0, %v732
        %v734 = vpop.f32.mrb[0].mxu0
        %v735 = vadd.f32 0.0, %v734
        %v736 = vpop.f32.mrb[0].mxu0
        %v737 = vadd.f32 0.0, %v736
        %738 = vmatprep.mubr.bf16.mxu0 0
        %739 = vmatmul.mubr.bf16.gmra.mrb[0].mxu0 %v654
        %v740 = vpop.f32.mrb[0].mxu0
        %v741 = vadd.f32 0.0, %v740
        %v742 = vpop.f32.mrb[0].mxu0
        %v743 = vadd.f32 0.0, %v742
        %v744 = vpop.f32.mrb[0].mxu0
        %v745 = vadd.f32 0.0, %v744
        %v746 = vpop.f32.mrb[0].mxu0
        %v747 = vadd.f32 0.0, %v746
        %748 = vdwg.mxu0
        %749 = vmatprep.subr.bf16.mxu0 %v605
        %750 = vmatpush1.bf16.msra.mxu0 %v579
        %751 = vmatprep.subr.bf16.mxu0 %v606
        %752 = vmatpush1.bf16.msra.mxu0 %v580
        %753 = vmatprep.subr.bf16.mxu0 0
        %754 = vmatpush1.bf16.msra.mxu0 0
        %755 = vmatprep.subr.bf16.mxu0 0
        %756 = vmatpush1.bf16.msra.mxu0 0
        %757 = vmatprep.subr.bf16.mxu0 0
        %758 = vmatpush1.bf16.msra.mxu0 0
        %759 = vmatprep.subr.bf16.mxu0 0
        %760 = vmatpush1.bf16.msra.mxu0 0
        %761 = vmatprep.subr.bf16.mxu0 0
        %762 = vmatpush1.bf16.msra.mxu0 0
        %763 = vmatprep.subr.bf16.mxu0 0
        %764 = vmatpush1.bf16.msra.mxu0 0
        %765 = vmatprep.subr.bf16.mxu0 0
        %766 = vmatpush1.bf16.msra.mxu0 0
        %767 = vmatprep.subr.bf16.mxu0 0
        %768 = vmatpush1.bf16.msra.mxu0 0
        %769 = vmatprep.subr.bf16.mxu0 0
        %770 = vmatpush1.bf16.msra.mxu0 0
        %771 = vmatprep.subr.bf16.mxu0 0
        %772 = vmatpush1.bf16.msra.mxu0 0
        %773 = vmatprep.subr.bf16.mxu0 0
        %774 = vmatpush1.bf16.msra.mxu0 0
        %775 = vmatprep.subr.bf16.mxu0 0
        %776 = vmatpush1.bf16.msra.mxu0 0
        %777 = vmatprep.subr.bf16.mxu0 0
        %778 = vmatpush1.bf16.msra.mxu0 0
        %779 = vmatprep.subr.bf16.mxu0 0
        %780 = vmatpush1.bf16.msra.mxu0 0
        %781 = vmatprep.mubr.bf16.mxu0 0
        %782 = vmatmul.mubr.bf16.gmra.mrb[0].mxu0 %v639
        %v783 = vpop.f32.mrb[0].mxu0
        %v784 = vadd.f32 0.0, %v783
        %v785 = vpop.f32.mrb[0].mxu0
        %v786 = vadd.f32 0.0, %v785
        %v787 = vpop.f32.mrb[0].mxu0
        %v788 = vadd.f32 0.0, %v787
        %v789 = vpop.f32.mrb[0].mxu0
        %v790 = vadd.f32 0.0, %v789
        %791 = vmatprep.mubr.bf16.mxu0 0
        %792 = vmatmul.mubr.bf16.gmra.mrb[0].mxu0 %v642
        %v793 = vpop.f32.mrb[0].mxu0
        %v794 = vadd.f32 0.0, %v793
        %v795 = vpop.f32.mrb[0].mxu0
        %v796 = vadd.f32 0.0, %v795
        %v797 = vpop.f32.mrb[0].mxu0
        %v798 = vadd.f32 0.0, %v797
        %v799 = vpop.f32.mrb[0].mxu0
        %v800 = vadd.f32 0.0, %v799
        %801 = vmatprep.mubr.bf16.mxu0 0
        %802 = vmatmul.mubr.bf16.gmra.mrb[0].mxu0 %v645
        %v803 = vpop.f32.mrb[0].mxu0
        %v804 = vadd.f32 0.0, %v803
        %v805 = vpop.f32.mrb[0].mxu0
        %v806 = vadd.f32 0.0, %v805
        %v807 = vpop.f32.mrb[0].mxu0
        %v808 = vadd.f32 0.0, %v807
        %v809 = vpop.f32.mrb[0].mxu0
        %v810 = vadd.f32 0.0, %v809
        %811 = vmatprep.mubr.bf16.mxu0 0
        %812 = vmatmul.mubr.bf16.gmra.mrb[0].mxu0 %v648
        %v813 = vpop.f32.mrb[0].mxu0
        %v814 = vadd.f32 0.0, %v813
        %v815 = vpop.f32.mrb[0].mxu0
        %v816 = vadd.f32 0.0, %v815
        %v817 = vpop.f32.mrb[0].mxu0
        %v818 = vadd.f32 0.0, %v817
        %v819 = vpop.f32.mrb[0].mxu0
        %v820 = vadd.f32 0.0, %v819
        %821 = vmatprep.mubr.bf16.mxu0 0
        %822 = vmatmul.mubr.bf16.gmra.mrb[0].mxu0 %v651
        %v823 = vpop.f32.mrb[0].mxu0
        %v824 = vadd.f32 0.0, %v823
        %v825 = vpop.f32.mrb[0].mxu0
        %v826 = vadd.f32 0.0, %v825
        %v827 = vpop.f32.mrb[0].mxu0
        %v828 = vadd.f32 0.0, %v827
        %v829 = vpop.f32.mrb[0].mxu0
        %v830 = vadd.f32 0.0, %v829
        %831 = vmatprep.mubr.bf16.mxu0 0
        %832 = vmatmul.mubr.bf16.gmra.mrb[0].mxu0 %v654
        %v833 = vpop.f32.mrb[0].mxu0
        %v834 = vadd.f32 0.0, %v833
        %v835 = vpop.f32.mrb[0].mxu0
        %v836 = vadd.f32 0.0, %v835
        %v837 = vpop.f32.mrb[0].mxu0
        %v838 = vadd.f32 0.0, %v837
        %v839 = vpop.f32.mrb[0].mxu0
        %v840 = vadd.f32 0.0, %v839
        %841 = vdwg.mxu0
        %v854 = vunpack.c.l.b16 %v335
        %v855 = vunpack.c.l.b16 %v336
        %v856 = vunpack.c.l.b16 %v337
        %v857 = vunpack.c.l.b16 %v338
        %v858 = vunpack.c.l.b16 %v339
        %v859 = vunpack.c.l.b16 %v340
        %v860 = vunpack.c.l.b16 %v341
        %v861 = vunpack.c.l.b16 %v342
        %v862 = vunpack.c.l.b16 %v343
        %v863 = vunpack.c.l.b16 %v344
        %v864 = vunpack.c.l.b16 %v345
        %v865 = vunpack.c.l.b16 %v346
        %v866 = vpack.c.b16 %v855, %v854
        %v867 = vpack.c.b16 %v857, %v856
        %v868 = vpack.c.b16 %v859, %v858
        %v869 = vpack.c.b16 %v861, %v860
        %v870 = vpack.c.b16 %v863, %v862
        %v871 = vpack.c.b16 %v865, %v864
        %v873 = vsel %vm637, %v866, 0
        %v876 = vsel %vm637, %v867, 0
        %v879 = vsel %vm637, %v868, 0
        %v882 = vsel %vm637, %v869, 0
        %v885 = vsel %vm637, %v870, 0
        %v888 = vsel %vm637, %v871, 0
        %890 = vmatprep.subr.bf16.mxu0 %v549
        %891 = vmatpush1.bf16.msra.mxu0 %v519
        %892 = vmatprep.subr.bf16.mxu0 %v550
        %893 = vmatpush1.bf16.msra.mxu0 %v520
        %894 = vmatprep.subr.bf16.mxu0 0
        %895 = vmatpush1.bf16.msra.mxu0 0
        %896 = vmatprep.subr.bf16.mxu0 0
        %897 = vmatpush1.bf16.msra.mxu0 0
        %898 = vmatprep.subr.bf16.mxu0 0
        %899 = vmatpush1.bf16.msra.mxu0 0
        %900 = vmatprep.subr.bf16.mxu0 0
        %901 = vmatpush1.bf16.msra.mxu0 0
        %902 = vmatprep.subr.bf16.mxu0 0
        %903 = vmatpush1.bf16.msra.mxu0 0
        %904 = vmatprep.subr.bf16.mxu0 0
        %905 = vmatpush1.bf16.msra.mxu0 0
        %906 = vmatprep.subr.bf16.mxu0 0
        %907 = vmatpush1.bf16.msra.mxu0 0
        %908 = vmatprep.subr.bf16.mxu0 0
        %909 = vmatpush1.bf16.msra.mxu0 0
        %910 = vmatprep.subr.bf16.mxu0 0
        %911 = vmatpush1.bf16.msra.mxu0 0
        %912 = vmatprep.subr.bf16.mxu0 0
        %913 = vmatpush1.bf16.msra.mxu0 0
        %914 = vmatprep.subr.bf16.mxu0 0
        %915 = vmatpush1.bf16.msra.mxu0 0
        %916 = vmatprep.subr.bf16.mxu0 0
        %917 = vmatpush1.bf16.msra.mxu0 0
        %918 = vmatprep.subr.bf16.mxu0 0
        %919 = vmatpush1.bf16.msra.mxu0 0
        %920 = vmatprep.subr.bf16.mxu0 0
        %921 = vmatpush1.bf16.msra.mxu0 0
        %922 = vmatprep.mubr.bf16.mxu0 0
        %923 = vmatmul.mubr.bf16.gmra.mrb[0].mxu0 %v873
        %v924 = vpop.f32.mrb[0].mxu0
        %v925 = vadd.f32 %v691, %v924
        %v926 = vpop.f32.mrb[0].mxu0
        %v927 = vadd.f32 %v693, %v926
        %v928 = vpop.f32.mrb[0].mxu0
        %v929 = vadd.f32 %v695, %v928
        %v930 = vpop.f32.mrb[0].mxu0
        %v931 = vadd.f32 %v697, %v930
        %932 = vmatprep.mubr.bf16.mxu0 0
        %933 = vmatmul.mubr.bf16.gmra.mrb[0].mxu0 %v876
        %v934 = vpop.f32.mrb[0].mxu0
        %v935 = vadd.f32 %v701, %v934
        %v936 = vpop.f32.mrb[0].mxu0
        %v937 = vadd.f32 %v703, %v936
        %v938 = vpop.f32.mrb[0].mxu0
        %v939 = vadd.f32 %v705, %v938
        %v940 = vpop.f32.mrb[0].mxu0
        %v941 = vadd.f32 %v707, %v940
        %942 = vmatprep.mubr.bf16.mxu0 0
        %943 = vmatmul.mubr.bf16.gmra.mrb[0].mxu0 %v879
        %v944 = vpop.f32.mrb[0].mxu0
        %v945 = vadd.f32 %v711, %v944
        %v946 = vpop.f32.mrb[0].mxu0
        %v947 = vadd.f32 %v713, %v946
        %v948 = vpop.f32.mrb[0].mxu0
        %v949 = vadd.f32 %v715, %v948
        %v950 = vpop.f32.mrb[0].mxu0
        %v951 = vadd.f32 %v717, %v950
        %952 = vmatprep.mubr.bf16.mxu0 0
        %953 = vmatmul.mubr.bf16.gmra.mrb[0].mxu0 %v882
        %v954 = vpop.f32.mrb[0].mxu0
        %v955 = vadd.f32 %v721, %v954
        %v956 = vpop.f32.mrb[0].mxu0
        %v957 = vadd.f32 %v723, %v956
        %v958 = vpop.f32.mrb[0].mxu0
        %v959 = vadd.f32 %v725, %v958
        %v960 = vpop.f32.mrb[0].mxu0
        %v961 = vadd.f32 %v727, %v960
        %962 = vmatprep.mubr.bf16.mxu0 0
        %963 = vmatmul.mubr.bf16.gmra.mrb[0].mxu0 %v885
        %v964 = vpop.f32.mrb[0].mxu0
        %v965 = vadd.f32 %v731, %v964
        %v966 = vpop.f32.mrb[0].mxu0
        %v967 = vadd.f32 %v733, %v966
        %v968 = vpop.f32.mrb[0].mxu0
        %v969 = vadd.f32 %v735, %v968
        %v970 = vpop.f32.mrb[0].mxu0
        %v971 = vadd.f32 %v737, %v970
        %972 = vmatprep.mubr.bf16.mxu0 0
        %973 = vmatmul.mubr.bf16.gmra.mrb[0].mxu0 %v888
        %v974 = vpop.f32.mrb[0].mxu0
        %v975 = vadd.f32 %v741, %v974
        %v976 = vpop.f32.mrb[0].mxu0
        %v977 = vadd.f32 %v743, %v976
        %v978 = vpop.f32.mrb[0].mxu0
        %v979 = vadd.f32 %v745, %v978
        %v980 = vpop.f32.mrb[0].mxu0
        %v981 = vadd.f32 %v747, %v980
        %982 = vdwg.mxu0
        %983 = vmatprep.subr.bf16.mxu0 %v605
        %984 = vmatpush1.bf16.msra.mxu0 %v579
        %985 = vmatprep.subr.bf16.mxu0 %v606
        %986 = vmatpush1.bf16.msra.mxu0 %v580
        %987 = vmatprep.subr.bf16.mxu0 0
        %988 = vmatpush1.bf16.msra.mxu0 0
        %989 = vmatprep.subr.bf16.mxu0 0
        %990 = vmatpush1.bf16.msra.mxu0 0
        %991 = vmatprep.subr.bf16.mxu0 0
        %992 = vmatpush1.bf16.msra.mxu0 0
        %993 = vmatprep.subr.bf16.mxu0 0
        %994 = vmatpush1.bf16.msra.mxu0 0
        %995 = vmatprep.subr.bf16.mxu0 0
        %996 = vmatpush1.bf16.msra.mxu0 0
        %997 = vmatprep.subr.bf16.mxu0 0
        %998 = vmatpush1.bf16.msra.mxu0 0
        %999 = vmatprep.subr.bf16.mxu0 0
        %1000 = vmatpush1.bf16.msra.mxu0 0
        %1001 = vmatprep.subr.bf16.mxu0 0
        %1002 = vmatpush1.bf16.msra.mxu0 0
        %1003 = vmatprep.subr.bf16.mxu0 0
        %1004 = vmatpush1.bf16.msra.mxu0 0
        %1005 = vmatprep.subr.bf16.mxu0 0
        %1006 = vmatpush1.bf16.msra.mxu0 0
        %1007 = vmatprep.subr.bf16.mxu0 0
        %1008 = vmatpush1.bf16.msra.mxu0 0
        %1009 = vmatprep.subr.bf16.mxu0 0
        %1010 = vmatpush1.bf16.msra.mxu0 0
        %1011 = vmatprep.subr.bf16.mxu0 0
        %1012 = vmatpush1.bf16.msra.mxu0 0
        %1013 = vmatprep.subr.bf16.mxu0 0
        %1014 = vmatpush1.bf16.msra.mxu0 0
        %1015 = vmatprep.mubr.bf16.mxu0 0
        %1016 = vmatmul.mubr.bf16.gmra.mrb[0].mxu0 %v873
        %v1017 = vpop.f32.mrb[0].mxu0
        %v1018 = vadd.f32 %v784, %v1017
        %v1019 = vpop.f32.mrb[0].mxu0
        %v1020 = vadd.f32 %v786, %v1019
        %v1021 = vpop.f32.mrb[0].mxu0
        %v1022 = vadd.f32 %v788, %v1021
        %v1023 = vpop.f32.mrb[0].mxu0
        %v1024 = vadd.f32 %v790, %v1023
        %1025 = vmatprep.mubr.bf16.mxu0 0
        %1026 = vmatmul.mubr.bf16.gmra.mrb[0].mxu0 %v876
        %v1027 = vpop.f32.mrb[0].mxu0
        %v1028 = vadd.f32 %v794, %v1027
        %v1029 = vpop.f32.mrb[0].mxu0
        %v1030 = vadd.f32 %v796, %v1029
        %v1031 = vpop.f32.mrb[0].mxu0
        %v1032 = vadd.f32 %v798, %v1031
        %v1033 = vpop.f32.mrb[0].mxu0
        %v1034 = vadd.f32 %v800, %v1033
        %1035 = vmatprep.mubr.bf16.mxu0 0
        %1036 = vmatmul.mubr.bf16.gmra.mrb[0].mxu0 %v879
        %v1037 = vpop.f32.mrb[0].mxu0
        %v1038 = vadd.f32 %v804, %v1037
        %v1039 = vpop.f32.mrb[0].mxu0
        %v1040 = vadd.f32 %v806, %v1039
        %v1041 = vpop.f32.mrb[0].mxu0
        %v1042 = vadd.f32 %v808, %v1041
        %v1043 = vpop.f32.mrb[0].mxu0
        %v1044 = vadd.f32 %v810, %v1043
        %1045 = vmatprep.mubr.bf16.mxu0 0
        %1046 = vmatmul.mubr.bf16.gmra.mrb[0].mxu0 %v882
        %v1047 = vpop.f32.mrb[0].mxu0
        %v1048 = vadd.f32 %v814, %v1047
        %v1049 = vpop.f32.mrb[0].mxu0
        %v1050 = vadd.f32 %v816, %v1049
        %v1051 = vpop.f32.mrb[0].mxu0
        %v1052 = vadd.f32 %v818, %v1051
        %v1053 = vpop.f32.mrb[0].mxu0
        %v1054 = vadd.f32 %v820, %v1053
        %1055 = vmatprep.mubr.bf16.mxu0 0
        %1056 = vmatmul.mubr.bf16.gmra.mrb[0].mxu0 %v885
        %v1057 = vpop.f32.mrb[0].mxu0
        %v1058 = vadd.f32 %v824, %v1057
        %v1059 = vpop.f32.mrb[0].mxu0
        %v1060 = vadd.f32 %v826, %v1059
        %v1061 = vpop.f32.mrb[0].mxu0
        %v1062 = vadd.f32 %v828, %v1061
        %v1063 = vpop.f32.mrb[0].mxu0
        %v1064 = vadd.f32 %v830, %v1063
        %1065 = vmatprep.mubr.bf16.mxu0 0
        %1066 = vmatmul.mubr.bf16.gmra.mrb[0].mxu0 %v888
        %v1067 = vpop.f32.mrb[0].mxu0
        %v1068 = vadd.f32 %v834, %v1067
        %v1069 = vpop.f32.mrb[0].mxu0
        %v1070 = vadd.f32 %v836, %v1069
        %v1071 = vpop.f32.mrb[0].mxu0
        %v1072 = vadd.f32 %v838, %v1071
        %v1073 = vpop.f32.mrb[0].mxu0
        %v1074 = vadd.f32 %v840, %v1073
        %1075 = vdwg.mxu0
        %1077 = vset.pattern.permute.xlu0 0
        %1078 = vperm.xlu0 %1077, %v359
        %v1079 = vpop.permute.xlu0 %1078
        %1082 = vset.pattern.permute.xlu0 0
        %1083 = vperm.xlu0 %1082, %v360
        %v1084 = vpop.permute.xlu0 %1083
        %1087 = vset.pattern.permute.xlu0 0
        %1088 = vperm.xlu0 %1087, %v361
        %v1089 = vpop.permute.xlu0 %1088
        %1092 = vset.pattern.permute.xlu0 0
        %1093 = vperm.xlu0 %1092, %v362
        %v1094 = vpop.permute.xlu0 %1093
        %1097 = vset.pattern.permute.xlu0 0
        %1098 = vperm.xlu0 %1097, %v363
        %v1099 = vpop.permute.xlu0 %1098
        %1102 = vset.pattern.permute.xlu0 0
        %1103 = vperm.xlu0 %1102, %v364
        %v1104 = vpop.permute.xlu0 %1103
        %1107 = vset.pattern.permute.xlu0 0
        %1108 = vperm.xlu0 %1107, %v365
        %v1109 = vpop.permute.xlu0 %1108
        %1112 = vset.pattern.permute.xlu0 0
        %1113 = vperm.xlu0 %1112, %v366
        %v1114 = vpop.permute.xlu0 %1113
        %1117 = vset.pattern.permute.xlu0 0
        %1118 = vperm.xlu0 %1117, %v367
        %v1119 = vpop.permute.xlu0 %1118
        %1122 = vset.pattern.permute.xlu0 0
        %1123 = vperm.xlu0 %1122, %v368
        %v1124 = vpop.permute.xlu0 %1123
        %1127 = vset.pattern.permute.xlu0 0
        %1128 = vperm.xlu0 %1127, %v369
        %v1129 = vpop.permute.xlu0 %1128
        %1132 = vset.pattern.permute.xlu0 0
        %1133 = vperm.xlu0 %1132, %v370
        %v1134 = vpop.permute.xlu0 %1133
        %v1136 = vadd.f32 %v925, %v1079
        %v1137 = vadd.f32 %v927, %v1079
        %v1138 = vadd.f32 %v1018, %v1079
        %v1139 = vadd.f32 %v1020, %v1079
        %v1140 = vadd.f32 %v929, %v1084
        %v1141 = vadd.f32 %v931, %v1084
        %v1142 = vadd.f32 %v1022, %v1084
        %v1143 = vadd.f32 %v1024, %v1084
        %v1144 = vadd.f32 %v935, %v1089
        %v1145 = vadd.f32 %v937, %v1089
        %v1146 = vadd.f32 %v1028, %v1089
        %v1147 = vadd.f32 %v1030, %v1089
        %v1148 = vadd.f32 %v939, %v1094
        %v1149 = vadd.f32 %v941, %v1094
        %v1150 = vadd.f32 %v1032, %v1094
        %v1151 = vadd.f32 %v1034, %v1094
        %v1152 = vadd.f32 %v945, %v1099
        %v1153 = vadd.f32 %v947, %v1099
        %v1154 = vadd.f32 %v1038, %v1099
        %v1155 = vadd.f32 %v1040, %v1099
        %v1156 = vadd.f32 %v949, %v1104
        %v1157 = vadd.f32 %v951, %v1104
        %v1158 = vadd.f32 %v1042, %v1104
        %v1159 = vadd.f32 %v1044, %v1104
        %v1160 = vadd.f32 %v955, %v1109
        %v1161 = vadd.f32 %v957, %v1109
        %v1162 = vadd.f32 %v1048, %v1109
        %v1163 = vadd.f32 %v1050, %v1109
        %v1164 = vadd.f32 %v959, %v1114
        %v1165 = vadd.f32 %v961, %v1114
        %v1166 = vadd.f32 %v1052, %v1114
        %v1167 = vadd.f32 %v1054, %v1114
        %v1168 = vadd.f32 %v965, %v1119
        %v1169 = vadd.f32 %v967, %v1119
        %v1170 = vadd.f32 %v1058, %v1119
        %v1171 = vadd.f32 %v1060, %v1119
        %v1172 = vadd.f32 %v969, %v1124
        %v1173 = vadd.f32 %v971, %v1124
        %v1174 = vadd.f32 %v1062, %v1124
        %v1175 = vadd.f32 %v1064, %v1124
        %v1176 = vadd.f32 %v975, %v1129
        %v1177 = vadd.f32 %v977, %v1129
        %v1178 = vadd.f32 %v1068, %v1129
        %v1179 = vadd.f32 %v1070, %v1129
        %v1180 = vadd.f32 %v979, %v1134
        %v1181 = vadd.f32 %v981, %v1134
        %v1182 = vadd.f32 %v1072, %v1134
        %v1183 = vadd.f32 %v1074, %v1134
        %v1184 = vmul.f32 %v1136, 0.6666667
        %v1185 = vmul.f32 %v1140, 0.6666667
        %v1186 = vmul.f32 %v1144, 0.6666667
        %v1187 = vmul.f32 %v1148, 0.6666667
        %v1188 = vadd.f32 %v1184, 0.0
        %v1189 = vadd.f32 %v1185, 0.0
        %v1190 = vadd.f32 %v1186, 0.0
        %v1191 = vadd.f32 %v1187, 0.0
        %vm1192 = vcmp.ge.f32.partialorder %v1188, 1.0
        %vm1193 = vcmp.ge.f32.partialorder %v1189, 1.0
        %vm1194 = vcmp.ge.f32.partialorder %v1190, 1.0
        %vm1195 = vcmp.ge.f32.partialorder %v1191, 1.0
        %v1196 = vsel %vm1192, 1, 0
        %v1197 = vsel %vm1193, 1, 0
        %v1198 = vsel %vm1194, 1, 0
        %v1199 = vsel %vm1195, 1, 0
        %v1200 = vcvt.s32.f32 %v1196
        %v1201 = vcvt.s32.f32 %v1197
        %v1202 = vcvt.s32.f32 %v1198
        %v1203 = vcvt.s32.f32 %v1199
        %v1204 = vsel %vm1192, 0.0, %v1188
        %v1205 = vsel %vm1193, 0.0, %v1189
        %v1206 = vsel %vm1194, 0.0, %v1190
        %v1207 = vsel %vm1195, 0.0, %v1191
        %v1208 = vmul.f32 %v1152, 0.6666667
        %v1209 = vmul.f32 %v1156, 0.6666667
        %v1210 = vmul.f32 %v1160, 0.6666667
        %v1211 = vmul.f32 %v1164, 0.6666667
        %v1212 = vadd.f32 %v1208, 0.0
        %v1213 = vadd.f32 %v1209, 0.0
        %v1214 = vadd.f32 %v1210, 0.0
        %v1215 = vadd.f32 %v1211, 0.0
        %vm1216 = vcmp.ge.f32.partialorder %v1212, 1.0
        %vm1217 = vcmp.ge.f32.partialorder %v1213, 1.0
        %vm1218 = vcmp.ge.f32.partialorder %v1214, 1.0
        %vm1219 = vcmp.ge.f32.partialorder %v1215, 1.0
        %v1220 = vsel %vm1216, 1, 0
        %v1221 = vsel %vm1217, 1, 0
        %v1222 = vsel %vm1218, 1, 0
        %v1223 = vsel %vm1219, 1, 0
        %v1224 = vcvt.s32.f32 %v1220
        %v1225 = vcvt.s32.f32 %v1221
        %v1226 = vcvt.s32.f32 %v1222
        %v1227 = vcvt.s32.f32 %v1223
        %v1228 = vsel %vm1216, 0.0, %v1212
        %v1229 = vsel %vm1217, 0.0, %v1213
        %v1230 = vsel %vm1218, 0.0, %v1214
        %v1231 = vsel %vm1219, 0.0, %v1215
        %v1232 = vmul.f32 %v1168, 0.6666667
        %v1233 = vmul.f32 %v1172, 0.6666667
        %v1234 = vmul.f32 %v1176, 0.6666667
        %v1235 = vmul.f32 %v1180, 0.6666667
        %v1236 = vadd.f32 %v1232, 0.0
        %v1237 = vadd.f32 %v1233, 0.0
        %v1238 = vadd.f32 %v1234, 0.0
        %v1239 = vadd.f32 %v1235, 0.0
        %vm1240 = vcmp.ge.f32.partialorder %v1236, 1.0
        %vm1241 = vcmp.ge.f32.partialorder %v1237, 1.0
        %vm1242 = vcmp.ge.f32.partialorder %v1238, 1.0
        %vm1243 = vcmp.ge.f32.partialorder %v1239, 1.0
        %v1244 = vsel %vm1240, 1, 0
        %v1245 = vsel %vm1241, 1, 0
        %v1246 = vsel %vm1242, 1, 0
        %v1247 = vsel %vm1243, 1, 0
        %v1248 = vcvt.s32.f32 %v1244
        %v1249 = vcvt.s32.f32 %v1245
        %v1250 = vcvt.s32.f32 %v1246
        %v1251 = vcvt.s32.f32 %v1247
        %v1252 = vsel %vm1240, 0.0, %v1236
        %v1253 = vsel %vm1241, 0.0, %v1237
        %v1254 = vsel %vm1242, 0.0, %v1238
        %v1255 = vsel %vm1243, 0.0, %v1239
        %v1256 = vpack.c.bf16 %v1201, %v1200
        %v1257 = vpack.c.bf16 %v1203, %v1202
        %v1258 = vpack.c.bf16 %v1225, %v1224
        %v1259 = vpack.c.bf16 %v1227, %v1226
        %v1260 = vpack.c.bf16 %v1249, %v1248
        %v1261 = vpack.c.bf16 %v1251, %v1250
        %v1262 = vsub.f32 %v1137, %v1204
        %v1263 = vsub.f32 %v1141, %v1205
        %v1264 = vsub.f32 %v1145, %v1206
        %v1265 = vsub.f32 %v1149, %v1207
        %v1266 = vmul.f32 %v1262, 0.6666667
        %v1267 = vmul.f32 %v1263, 0.6666667
        %v1268 = vmul.f32 %v1264, 0.6666667
        %v1269 = vmul.f32 %v1265, 0.6666667
        %v1270 = vadd.f32 %v1204, %v1266
        %v1271 = vadd.f32 %v1205, %v1267
        %v1272 = vadd.f32 %v1206, %v1268
        %v1273 = vadd.f32 %v1207, %v1269
        %vm1274 = vcmp.ge.f32.partialorder %v1270, 1.0
        %vm1275 = vcmp.ge.f32.partialorder %v1271, 1.0
        %vm1276 = vcmp.ge.f32.partialorder %v1272, 1.0
        %vm1277 = vcmp.ge.f32.partialorder %v1273, 1.0
        %v1278 = vsel %vm1274, 1, 0
        %v1279 = vsel %vm1275, 1, 0
        %v1280 = vsel %vm1276, 1, 0
        %v1281 = vsel %vm1277, 1, 0
        %v1282 = vcvt.s32.f32 %v1278
        %v1283 = vcvt.s32.f32 %v1279
        %v1284 = vcvt.s32.f32 %v1280
        %v1285 = vcvt.s32.f32 %v1281
        %v1286 = vsel %vm1274, 0.0, %v1270
        %v1287 = vsel %vm1275, 0.0, %v1271
        %v1288 = vsel %vm1276, 0.0, %v1272
        %v1289 = vsel %vm1277, 0.0, %v1273
        %v1290 = vsub.f32 %v1153, %v1228
        %v1291 = vsub.f32 %v1157, %v1229
        %v1292 = vsub.f32 %v1161, %v1230
        %v1293 = vsub.f32 %v1165, %v1231
        %v1294 = vmul.f32 %v1290, 0.6666667
        %v1295 = vmul.f32 %v1291, 0.6666667
        %v1296 = vmul.f32 %v1292, 0.6666667
        %v1297 = vmul.f32 %v1293, 0.6666667
        %v1298 = vadd.f32 %v1228, %v1294
        %v1299 = vadd.f32 %v1229, %v1295
        %v1300 = vadd.f32 %v1230, %v1296
        %v1301 = vadd.f32 %v1231, %v1297
        %vm1302 = vcmp.ge.f32.partialorder %v1298, 1.0
        %vm1303 = vcmp.ge.f32.partialorder %v1299, 1.0
        %vm1304 = vcmp.ge.f32.partialorder %v1300, 1.0
        %vm1305 = vcmp.ge.f32.partialorder %v1301, 1.0
        %v1306 = vsel %vm1302, 1, 0
        %v1307 = vsel %vm1303, 1, 0
        %v1308 = vsel %vm1304, 1, 0
        %v1309 = vsel %vm1305, 1, 0
        %v1310 = vcvt.s32.f32 %v1306
        %v1311 = vcvt.s32.f32 %v1307
        %v1312 = vcvt.s32.f32 %v1308
        %v1313 = vcvt.s32.f32 %v1309
        %v1314 = vsel %vm1302, 0.0, %v1298
        %v1315 = vsel %vm1303, 0.0, %v1299
        %v1316 = vsel %vm1304, 0.0, %v1300
        %v1317 = vsel %vm1305, 0.0, %v1301
        %v1318 = vsub.f32 %v1169, %v1252
        %v1319 = vsub.f32 %v1173, %v1253
        %v1320 = vsub.f32 %v1177, %v1254
        %v1321 = vsub.f32 %v1181, %v1255
        %v1322 = vmul.f32 %v1318, 0.6666667
        %v1323 = vmul.f32 %v1319, 0.6666667
        %v1324 = vmul.f32 %v1320, 0.6666667
        %v1325 = vmul.f32 %v1321, 0.6666667
        %v1326 = vadd.f32 %v1252, %v1322
        %v1327 = vadd.f32 %v1253, %v1323
        %v1328 = vadd.f32 %v1254, %v1324
        %v1329 = vadd.f32 %v1255, %v1325
        %vm1330 = vcmp.ge.f32.partialorder %v1326, 1.0
        %vm1331 = vcmp.ge.f32.partialorder %v1327, 1.0
        %vm1332 = vcmp.ge.f32.partialorder %v1328, 1.0
        %vm1333 = vcmp.ge.f32.partialorder %v1329, 1.0
        %v1334 = vsel %vm1330, 1, 0
        %v1335 = vsel %vm1331, 1, 0
        %v1336 = vsel %vm1332, 1, 0
        %v1337 = vsel %vm1333, 1, 0
        %v1338 = vcvt.s32.f32 %v1334
        %v1339 = vcvt.s32.f32 %v1335
        %v1340 = vcvt.s32.f32 %v1336
        %v1341 = vcvt.s32.f32 %v1337
        %v1342 = vsel %vm1330, 0.0, %v1326
        %v1343 = vsel %vm1331, 0.0, %v1327
        %v1344 = vsel %vm1332, 0.0, %v1328
        %v1345 = vsel %vm1333, 0.0, %v1329
        %v1346 = vpack.c.bf16 %v1283, %v1282
        %v1347 = vpack.c.bf16 %v1285, %v1284
        %v1348 = vpack.c.bf16 %v1311, %v1310
        %v1349 = vpack.c.bf16 %v1313, %v1312
        %v1350 = vpack.c.bf16 %v1339, %v1338
        %v1351 = vpack.c.bf16 %v1341, %v1340
        %v1352 = vsub.f32 %v1138, %v1286
        %v1353 = vsub.f32 %v1142, %v1287
        %v1354 = vsub.f32 %v1146, %v1288
        %v1355 = vsub.f32 %v1150, %v1289
        %v1356 = vmul.f32 %v1352, 0.6666667
        %v1357 = vmul.f32 %v1353, 0.6666667
        %v1358 = vmul.f32 %v1354, 0.6666667
        %v1359 = vmul.f32 %v1355, 0.6666667
        %v1360 = vadd.f32 %v1286, %v1356
        %v1361 = vadd.f32 %v1287, %v1357
        %v1362 = vadd.f32 %v1288, %v1358
        %v1363 = vadd.f32 %v1289, %v1359
        %vm1364 = vcmp.ge.f32.partialorder %v1360, 1.0
        %vm1365 = vcmp.ge.f32.partialorder %v1361, 1.0
        %vm1366 = vcmp.ge.f32.partialorder %v1362, 1.0
        %vm1367 = vcmp.ge.f32.partialorder %v1363, 1.0
        %v1368 = vsel %vm1364, 1, 0
        %v1369 = vsel %vm1365, 1, 0
        %v1370 = vsel %vm1366, 1, 0
        %v1371 = vsel %vm1367, 1, 0
        %v1372 = vcvt.s32.f32 %v1368
        %v1373 = vcvt.s32.f32 %v1369
        %v1374 = vcvt.s32.f32 %v1370
        %v1375 = vcvt.s32.f32 %v1371
        %v1376 = vsel %vm1364, 0.0, %v1360
        %v1377 = vsel %vm1365, 0.0, %v1361
        %v1378 = vsel %vm1366, 0.0, %v1362
        %v1379 = vsel %vm1367, 0.0, %v1363
        %v1380 = vsub.f32 %v1154, %v1314
        %v1381 = vsub.f32 %v1158, %v1315
        %v1382 = vsub.f32 %v1162, %v1316
        %v1383 = vsub.f32 %v1166, %v1317
        %v1384 = vmul.f32 %v1380, 0.6666667
        %v1385 = vmul.f32 %v1381, 0.6666667
        %v1386 = vmul.f32 %v1382, 0.6666667
        %v1387 = vmul.f32 %v1383, 0.6666667
        %v1388 = vadd.f32 %v1314, %v1384
        %v1389 = vadd.f32 %v1315, %v1385
        %v1390 = vadd.f32 %v1316, %v1386
        %v1391 = vadd.f32 %v1317, %v1387
        %vm1392 = vcmp.ge.f32.partialorder %v1388, 1.0
        %vm1393 = vcmp.ge.f32.partialorder %v1389, 1.0
        %vm1394 = vcmp.ge.f32.partialorder %v1390, 1.0
        %vm1395 = vcmp.ge.f32.partialorder %v1391, 1.0
        %v1396 = vsel %vm1392, 1, 0
        %v1397 = vsel %vm1393, 1, 0
        %v1398 = vsel %vm1394, 1, 0
        %v1399 = vsel %vm1395, 1, 0
        %v1400 = vcvt.s32.f32 %v1396
        %v1401 = vcvt.s32.f32 %v1397
        %v1402 = vcvt.s32.f32 %v1398
        %v1403 = vcvt.s32.f32 %v1399
        %v1404 = vsel %vm1392, 0.0, %v1388
        %v1405 = vsel %vm1393, 0.0, %v1389
        %v1406 = vsel %vm1394, 0.0, %v1390
        %v1407 = vsel %vm1395, 0.0, %v1391
        %v1408 = vsub.f32 %v1170, %v1342
        %v1409 = vsub.f32 %v1174, %v1343
        %v1410 = vsub.f32 %v1178, %v1344
        %v1411 = vsub.f32 %v1182, %v1345
        %v1412 = vmul.f32 %v1408, 0.6666667
        %v1413 = vmul.f32 %v1409, 0.6666667
        %v1414 = vmul.f32 %v1410, 0.6666667
        %v1415 = vmul.f32 %v1411, 0.6666667
        %v1416 = vadd.f32 %v1342, %v1412
        %v1417 = vadd.f32 %v1343, %v1413
        %v1418 = vadd.f32 %v1344, %v1414
        %v1419 = vadd.f32 %v1345, %v1415
        %vm1420 = vcmp.ge.f32.partialorder %v1416, 1.0
        %vm1421 = vcmp.ge.f32.partialorder %v1417, 1.0
        %vm1422 = vcmp.ge.f32.partialorder %v1418, 1.0
        %vm1423 = vcmp.ge.f32.partialorder %v1419, 1.0
        %v1424 = vsel %vm1420, 1, 0
        %v1425 = vsel %vm1421, 1, 0
        %v1426 = vsel %vm1422, 1, 0
        %v1427 = vsel %vm1423, 1, 0
        %v1428 = vcvt.s32.f32 %v1424
        %v1429 = vcvt.s32.f32 %v1425
        %v1430 = vcvt.s32.f32 %v1426
        %v1431 = vcvt.s32.f32 %v1427
        %v1432 = vsel %vm1420, 0.0, %v1416
        %v1433 = vsel %vm1421, 0.0, %v1417
        %v1434 = vsel %vm1422, 0.0, %v1418
        %v1435 = vsel %vm1423, 0.0, %v1419
        %v1436 = vpack.c.bf16 %v1373, %v1372
        %v1437 = vpack.c.bf16 %v1375, %v1374
        %v1438 = vpack.c.bf16 %v1401, %v1400
        %v1439 = vpack.c.bf16 %v1403, %v1402
        %v1440 = vpack.c.bf16 %v1429, %v1428
        %v1441 = vpack.c.bf16 %v1431, %v1430
        %v1442 = vsub.f32 %v1139, %v1376
        %v1443 = vsub.f32 %v1143, %v1377
        %v1444 = vsub.f32 %v1147, %v1378
        %v1445 = vsub.f32 %v1151, %v1379
        %v1446 = vmul.f32 %v1442, 0.6666667
        %v1447 = vmul.f32 %v1443, 0.6666667
        %v1448 = vmul.f32 %v1444, 0.6666667
        %v1449 = vmul.f32 %v1445, 0.6666667
        %v1450 = vadd.f32 %v1376, %v1446
        %v1451 = vadd.f32 %v1377, %v1447
        %v1452 = vadd.f32 %v1378, %v1448
        %v1453 = vadd.f32 %v1379, %v1449
        %vm1454 = vcmp.ge.f32.partialorder %v1450, 1.0
        %vm1455 = vcmp.ge.f32.partialorder %v1451, 1.0
        %vm1456 = vcmp.ge.f32.partialorder %v1452, 1.0
        %vm1457 = vcmp.ge.f32.partialorder %v1453, 1.0
        %v1458 = vsel %vm1454, 1, 0
        %v1459 = vsel %vm1455, 1, 0
        %v1460 = vsel %vm1456, 1, 0
        %v1461 = vsel %vm1457, 1, 0
        %v1462 = vcvt.s32.f32 %v1458
        %v1463 = vcvt.s32.f32 %v1459
        %v1464 = vcvt.s32.f32 %v1460
        %v1465 = vcvt.s32.f32 %v1461
        %v1466 = vsub.f32 %v1155, %v1404
        %v1467 = vsub.f32 %v1159, %v1405
        %v1468 = vsub.f32 %v1163, %v1406
        %v1469 = vsub.f32 %v1167, %v1407
        %v1470 = vmul.f32 %v1466, 0.6666667
        %v1471 = vmul.f32 %v1467, 0.6666667
        %v1472 = vmul.f32 %v1468, 0.6666667
        %v1473 = vmul.f32 %v1469, 0.6666667
        %v1474 = vadd.f32 %v1404, %v1470
        %v1475 = vadd.f32 %v1405, %v1471
        %v1476 = vadd.f32 %v1406, %v1472
        %v1477 = vadd.f32 %v1407, %v1473
        %vm1478 = vcmp.ge.f32.partialorder %v1474, 1.0
        %vm1479 = vcmp.ge.f32.partialorder %v1475, 1.0
        %vm1480 = vcmp.ge.f32.partialorder %v1476, 1.0
        %vm1481 = vcmp.ge.f32.partialorder %v1477, 1.0
        %v1482 = vsel %vm1478, 1, 0
        %v1483 = vsel %vm1479, 1, 0
        %v1484 = vsel %vm1480, 1, 0
        %v1485 = vsel %vm1481, 1, 0
        %v1486 = vcvt.s32.f32 %v1482
        %v1487 = vcvt.s32.f32 %v1483
        %v1488 = vcvt.s32.f32 %v1484
        %v1489 = vcvt.s32.f32 %v1485
        %v1490 = vsub.f32 %v1171, %v1432
        %v1491 = vsub.f32 %v1175, %v1433
        %v1492 = vsub.f32 %v1179, %v1434
        %v1493 = vsub.f32 %v1183, %v1435
        %v1494 = vmul.f32 %v1490, 0.6666667
        %v1495 = vmul.f32 %v1491, 0.6666667
        %v1496 = vmul.f32 %v1492, 0.6666667
        %v1497 = vmul.f32 %v1493, 0.6666667
        %v1498 = vadd.f32 %v1432, %v1494
        %v1499 = vadd.f32 %v1433, %v1495
        %v1500 = vadd.f32 %v1434, %v1496
        %v1501 = vadd.f32 %v1435, %v1497
        %vm1502 = vcmp.ge.f32.partialorder %v1498, 1.0
        %vm1503 = vcmp.ge.f32.partialorder %v1499, 1.0
        %vm1504 = vcmp.ge.f32.partialorder %v1500, 1.0
        %vm1505 = vcmp.ge.f32.partialorder %v1501, 1.0
        %v1506 = vsel %vm1502, 1, 0
        %v1507 = vsel %vm1503, 1, 0
        %v1508 = vsel %vm1504, 1, 0
        %v1509 = vsel %vm1505, 1, 0
        %v1510 = vcvt.s32.f32 %v1506
        %v1511 = vcvt.s32.f32 %v1507
        %v1512 = vcvt.s32.f32 %v1508
        %v1513 = vcvt.s32.f32 %v1509
        %v1514 = vpack.c.bf16 %v1463, %v1462
        %v1515 = vpack.c.bf16 %v1465, %v1464
        %v1516 = vpack.c.bf16 %v1487, %v1486
        %v1517 = vpack.c.bf16 %v1489, %v1488
        %v1518 = vpack.c.bf16 %v1511, %v1510
        %v1519 = vpack.c.bf16 %v1513, %v1512
        %1522 = vrot.lane.b32.xlu0 %v1256, 64
        %v1523 = vpop.permute.xlu0 %1522
        %1524 = vrot.lane.b32.xlu0 %v1257, 64
        %v1525 = vpop.permute.xlu0 %1524
        %1530 = vrot.lane.b32.xlu0 %v1346, 64
        %v1531 = vpop.permute.xlu0 %1530
        %1532 = vrot.lane.b32.xlu0 %v1347, 64
        %v1533 = vpop.permute.xlu0 %1532
        %1538 = vrot.lane.b32.xlu0 %v1436, 64
        %v1539 = vpop.permute.xlu0 %1538
        %1540 = vrot.lane.b32.xlu0 %v1437, 64
        %v1541 = vpop.permute.xlu0 %1540
        %1546 = vrot.lane.b32.xlu0 %v1514, 64
        %v1547 = vpop.permute.xlu0 %1546
        %1548 = vrot.lane.b32.xlu0 %v1515, 64
        %v1549 = vpop.permute.xlu0 %1548
        %1554 = vrot.lane.b32.xlu0 %v1258, 64
        %v1555 = vpop.permute.xlu0 %1554
        %1556 = vrot.lane.b32.xlu0 %v1259, 64
        %v1557 = vpop.permute.xlu0 %1556
        %1560 = vrot.lane.b32.xlu0 %v1348, 64
        %v1561 = vpop.permute.xlu0 %1560
        %1562 = vrot.lane.b32.xlu0 %v1349, 64
        %v1563 = vpop.permute.xlu0 %1562
        %1566 = vrot.lane.b32.xlu0 %v1438, 64
        %v1567 = vpop.permute.xlu0 %1566
        %1568 = vrot.lane.b32.xlu0 %v1439, 64
        %v1569 = vpop.permute.xlu0 %1568
        %1572 = vrot.lane.b32.xlu0 %v1516, 64
        %v1573 = vpop.permute.xlu0 %1572
        %1574 = vrot.lane.b32.xlu0 %v1517, 64
        %v1575 = vpop.permute.xlu0 %1574
        %1578 = vrot.lane.b32.xlu0 %v1260, 64
        %v1579 = vpop.permute.xlu0 %1578
        %1580 = vrot.lane.b32.xlu0 %v1261, 64
        %v1581 = vpop.permute.xlu0 %1580
        %1584 = vrot.lane.b32.xlu0 %v1350, 64
        %v1585 = vpop.permute.xlu0 %1584
        %1586 = vrot.lane.b32.xlu0 %v1351, 64
        %v1587 = vpop.permute.xlu0 %1586
        %1590 = vrot.lane.b32.xlu0 %v1440, 64
        %v1591 = vpop.permute.xlu0 %1590
        %1592 = vrot.lane.b32.xlu0 %v1441, 64
        %v1593 = vpop.permute.xlu0 %1592
        %1596 = vrot.lane.b32.xlu0 %v1518, 64
        %v1597 = vpop.permute.xlu0 %1596
        %1598 = vrot.lane.b32.xlu0 %v1519, 64
        %v1599 = vpop.permute.xlu0 %1598
        %vm1600 = vcmask 523264
        %v1602 = vsel %vm1600, %v1260, 0
        %v1605 = vsel %vm1600, %v1261, 0
        %v1608 = vsel %vm1600, %v1579, 0
        %v1611 = vsel %vm1600, %v1581, 0
        %v1614 = vsel %vm1600, %v1350, 0
        %v1617 = vsel %vm1600, %v1351, 0
        %v1620 = vsel %vm1600, %v1585, 0
        %v1623 = vsel %vm1600, %v1587, 0
        %v1626 = vsel %vm1600, %v1440, 0
        %v1629 = vsel %vm1600, %v1441, 0
        %v1632 = vsel %vm1600, %v1591, 0
        %v1635 = vsel %vm1600, %v1593, 0
        %v1638 = vsel %vm1600, %v1518, 0
        %v1641 = vsel %vm1600, %v1519, 0
        %v1644 = vsel %vm1600, %v1597, 0
        %v1647 = vsel %vm1600, %v1599, 0
        %v1650 = vsel %vm1600, %v1258, 0
        %v1653 = vsel %vm1600, %v1259, 0
        %v1656 = vsel %vm1600, %v1555, 0
        %v1659 = vsel %vm1600, %v1557, 0
        %v1662 = vsel %vm1600, %v1348, 0
        %v1665 = vsel %vm1600, %v1349, 0
        %v1668 = vsel %vm1600, %v1561, 0
        %v1671 = vsel %vm1600, %v1563, 0
        %v1674 = vsel %vm1600, %v1438, 0
        %v1677 = vsel %vm1600, %v1439, 0
        %v1680 = vsel %vm1600, %v1567, 0
        %v1683 = vsel %vm1600, %v1569, 0
        %v1686 = vsel %vm1600, %v1516, 0
        %v1689 = vsel %vm1600, %v1517, 0
        %v1692 = vsel %vm1600, %v1573, 0
        %v1695 = vsel %vm1600, %v1575, 0
        %1697 = vmatprep.subr.bf16.mxu0 0
        %1698 = vmatpush1.bf16.xpose.msra.mxu0 %v1650
        %1699 = vmatprep.subr.bf16.mxu0 0
        %1700 = vmatpush1.bf16.xpose.msra.mxu0 %v1653
        %1701 = vmatprep.subr.bf16.mxu0 0
        %1702 = vmatpush1.bf16.xpose.msra.mxu0 %v1656
        %1703 = vmatprep.subr.bf16.mxu0 0
        %1704 = vmatpush1.bf16.xpose.msra.mxu0 %v1659
        %1705 = vmatprep.subr.bf16.mxu0 0
        %1706 = vmatpush1.bf16.xpose.msra.mxu0 %v1662
        %1707 = vmatprep.subr.bf16.mxu0 0
        %1708 = vmatpush1.bf16.xpose.msra.mxu0 %v1665
        %1709 = vmatprep.subr.bf16.mxu0 0
        %1710 = vmatpush1.bf16.xpose.msra.mxu0 %v1668
        %1711 = vmatprep.subr.bf16.mxu0 0
        %1712 = vmatpush1.bf16.xpose.msra.mxu0 %v1671
        %1713 = vmatprep.subr.bf16.mxu0 0
        %1714 = vmatpush1.bf16.xpose.msra.mxu0 %v1674
        %1715 = vmatprep.subr.bf16.mxu0 0
        %1716 = vmatpush1.bf16.xpose.msra.mxu0 %v1677
        %1717 = vmatprep.subr.bf16.mxu0 0
        %1718 = vmatpush1.bf16.xpose.msra.mxu0 %v1680
        %1719 = vmatprep.subr.bf16.mxu0 0
        %1720 = vmatpush1.bf16.xpose.msra.mxu0 %v1683
        %1721 = vmatprep.subr.bf16.mxu0 0
        %1722 = vmatpush1.bf16.xpose.msra.mxu0 %v1686
        %1723 = vmatprep.subr.bf16.mxu0 0
        %1724 = vmatpush1.bf16.xpose.msra.mxu0 %v1689
        %1725 = vmatprep.subr.bf16.mxu0 0
        %1726 = vmatpush1.bf16.xpose.msra.mxu0 %v1692
        %1727 = vmatprep.subr.bf16.mxu0 0
        %1728 = vmatpush1.bf16.xpose.msra.mxu0 %v1695
        %1729 = vmatprep.mubr.bf16.mxu0 0
        %1730 = vmatmul.mubr.bf16.gmra.mrb[0].mxu0 %v1602
        %v1731 = vpop.f32.mrb[0].mxu0
        %v1732 = vadd.f32 0.0, %v1731
        %v1733 = vpop.f32.mrb[0].mxu0
        %v1734 = vadd.f32 0.0, %v1733
        %v1735 = vpop.f32.mrb[0].mxu0
        %v1736 = vadd.f32 0.0, %v1735
        %v1737 = vpop.f32.mrb[0].mxu0
        %v1738 = vadd.f32 0.0, %v1737
        %1739 = vmatprep.mubr.bf16.mxu0 0
        %1740 = vmatmul.mubr.bf16.gmra.mrb[0].mxu0 %v1605
        %v1741 = vpop.f32.mrb[0].mxu0
        %v1742 = vadd.f32 0.0, %v1741
        %v1743 = vpop.f32.mrb[0].mxu0
        %v1744 = vadd.f32 0.0, %v1743
        %v1745 = vpop.f32.mrb[0].mxu0
        %v1746 = vadd.f32 0.0, %v1745
        %v1747 = vpop.f32.mrb[0].mxu0
        %v1748 = vadd.f32 0.0, %v1747
        %1749 = vmatprep.mubr.bf16.mxu0 0
        %1750 = vmatmul.mubr.bf16.gmra.mrb[0].mxu0 %v1608
        %v1751 = vpop.f32.mrb[0].mxu0
        %v1752 = vadd.f32 0.0, %v1751
        %v1753 = vpop.f32.mrb[0].mxu0
        %v1754 = vadd.f32 0.0, %v1753
        %v1755 = vpop.f32.mrb[0].mxu0
        %v1756 = vadd.f32 0.0, %v1755
        %v1757 = vpop.f32.mrb[0].mxu0
        %v1758 = vadd.f32 0.0, %v1757
        %1759 = vmatprep.mubr.bf16.mxu0 0
        %1760 = vmatmul.mubr.bf16.gmra.mrb[0].mxu0 %v1611
        %v1761 = vpop.f32.mrb[0].mxu0
        %v1762 = vadd.f32 0.0, %v1761
        %v1763 = vpop.f32.mrb[0].mxu0
        %v1764 = vadd.f32 0.0, %v1763
        %v1765 = vpop.f32.mrb[0].mxu0
        %v1766 = vadd.f32 0.0, %v1765
        %v1767 = vpop.f32.mrb[0].mxu0
        %v1768 = vadd.f32 0.0, %v1767
        %1769 = vmatprep.mubr.bf16.mxu0 0
        %1770 = vmatmul.mubr.bf16.gmra.mrb[0].mxu0 %v1614
        %v1771 = vpop.f32.mrb[0].mxu0
        %v1772 = vadd.f32 0.0, %v1771
        %v1773 = vpop.f32.mrb[0].mxu0
        %v1774 = vadd.f32 0.0, %v1773
        %v1775 = vpop.f32.mrb[0].mxu0
        %v1776 = vadd.f32 0.0, %v1775
        %v1777 = vpop.f32.mrb[0].mxu0
        %v1778 = vadd.f32 0.0, %v1777
        %1779 = vmatprep.mubr.bf16.mxu0 0
        %1780 = vmatmul.mubr.bf16.gmra.mrb[0].mxu0 %v1617
        %v1781 = vpop.f32.mrb[0].mxu0
        %v1782 = vadd.f32 0.0, %v1781
        %v1783 = vpop.f32.mrb[0].mxu0
        %v1784 = vadd.f32 0.0, %v1783
        %v1785 = vpop.f32.mrb[0].mxu0
        %v1786 = vadd.f32 0.0, %v1785
        %v1787 = vpop.f32.mrb[0].mxu0
        %v1788 = vadd.f32 0.0, %v1787
        %1789 = vmatprep.mubr.bf16.mxu0 0
        %1790 = vmatmul.mubr.bf16.gmra.mrb[0].mxu0 %v1620
        %v1791 = vpop.f32.mrb[0].mxu0
        %v1792 = vadd.f32 0.0, %v1791
        %v1793 = vpop.f32.mrb[0].mxu0
        %v1794 = vadd.f32 0.0, %v1793
        %v1795 = vpop.f32.mrb[0].mxu0
        %v1796 = vadd.f32 0.0, %v1795
        %v1797 = vpop.f32.mrb[0].mxu0
        %v1798 = vadd.f32 0.0, %v1797
        %1799 = vmatprep.mubr.bf16.mxu0 0
        %1800 = vmatmul.mubr.bf16.gmra.mrb[0].mxu0 %v1623
        %v1801 = vpop.f32.mrb[0].mxu0
        %v1802 = vadd.f32 0.0, %v1801
        %v1803 = vpop.f32.mrb[0].mxu0
        %v1804 = vadd.f32 0.0, %v1803
        %v1805 = vpop.f32.mrb[0].mxu0
        %v1806 = vadd.f32 0.0, %v1805
        %v1807 = vpop.f32.mrb[0].mxu0
        %v1808 = vadd.f32 0.0, %v1807
        %1809 = vmatprep.mubr.bf16.mxu0 0
        %1810 = vmatmul.mubr.bf16.gmra.mrb[0].mxu0 %v1626
        %v1811 = vpop.f32.mrb[0].mxu0
        %v1812 = vadd.f32 0.0, %v1811
        %v1813 = vpop.f32.mrb[0].mxu0
        %v1814 = vadd.f32 0.0, %v1813
        %v1815 = vpop.f32.mrb[0].mxu0
        %v1816 = vadd.f32 0.0, %v1815
        %v1817 = vpop.f32.mrb[0].mxu0
        %v1818 = vadd.f32 0.0, %v1817
        %1819 = vmatprep.mubr.bf16.mxu0 0
        %1820 = vmatmul.mubr.bf16.gmra.mrb[0].mxu0 %v1629
        %v1821 = vpop.f32.mrb[0].mxu0
        %v1822 = vadd.f32 0.0, %v1821
        %v1823 = vpop.f32.mrb[0].mxu0
        %v1824 = vadd.f32 0.0, %v1823
        %v1825 = vpop.f32.mrb[0].mxu0
        %v1826 = vadd.f32 0.0, %v1825
        %v1827 = vpop.f32.mrb[0].mxu0
        %v1828 = vadd.f32 0.0, %v1827
        %1829 = vmatprep.mubr.bf16.mxu0 0
        %1830 = vmatmul.mubr.bf16.gmra.mrb[0].mxu0 %v1632
        %v1831 = vpop.f32.mrb[0].mxu0
        %v1832 = vadd.f32 0.0, %v1831
        %v1833 = vpop.f32.mrb[0].mxu0
        %v1834 = vadd.f32 0.0, %v1833
        %v1835 = vpop.f32.mrb[0].mxu0
        %v1836 = vadd.f32 0.0, %v1835
        %v1837 = vpop.f32.mrb[0].mxu0
        %v1838 = vadd.f32 0.0, %v1837
        %1839 = vmatprep.mubr.bf16.mxu0 0
        %1840 = vmatmul.mubr.bf16.gmra.mrb[0].mxu0 %v1635
        %v1841 = vpop.f32.mrb[0].mxu0
        %v1842 = vadd.f32 0.0, %v1841
        %v1843 = vpop.f32.mrb[0].mxu0
        %v1844 = vadd.f32 0.0, %v1843
        %v1845 = vpop.f32.mrb[0].mxu0
        %v1846 = vadd.f32 0.0, %v1845
        %v1847 = vpop.f32.mrb[0].mxu0
        %v1848 = vadd.f32 0.0, %v1847
        %1849 = vmatprep.mubr.bf16.mxu0 0
        %1850 = vmatmul.mubr.bf16.gmra.mrb[0].mxu0 %v1638
        %v1851 = vpop.f32.mrb[0].mxu0
        %v1852 = vadd.f32 0.0, %v1851
        %v1853 = vpop.f32.mrb[0].mxu0
        %v1854 = vadd.f32 0.0, %v1853
        %v1855 = vpop.f32.mrb[0].mxu0
        %v1856 = vadd.f32 0.0, %v1855
        %v1857 = vpop.f32.mrb[0].mxu0
        %v1858 = vadd.f32 0.0, %v1857
        %1859 = vmatprep.mubr.bf16.mxu0 0
        %1860 = vmatmul.mubr.bf16.gmra.mrb[0].mxu0 %v1641
        %v1861 = vpop.f32.mrb[0].mxu0
        %v1862 = vadd.f32 0.0, %v1861
        %v1863 = vpop.f32.mrb[0].mxu0
        %v1864 = vadd.f32 0.0, %v1863
        %v1865 = vpop.f32.mrb[0].mxu0
        %v1866 = vadd.f32 0.0, %v1865
        %v1867 = vpop.f32.mrb[0].mxu0
        %v1868 = vadd.f32 0.0, %v1867
        %1869 = vmatprep.mubr.bf16.mxu0 0
        %1870 = vmatmul.mubr.bf16.gmra.mrb[0].mxu0 %v1644
        %v1871 = vpop.f32.mrb[0].mxu0
        %v1872 = vadd.f32 0.0, %v1871
        %v1873 = vpop.f32.mrb[0].mxu0
        %v1874 = vadd.f32 0.0, %v1873
        %v1875 = vpop.f32.mrb[0].mxu0
        %v1876 = vadd.f32 0.0, %v1875
        %v1877 = vpop.f32.mrb[0].mxu0
        %v1878 = vadd.f32 0.0, %v1877
        %1879 = vmatprep.mubr.bf16.mxu0 0
        %1880 = vmatmul.mubr.bf16.gmra.mrb[0].mxu0 %v1647
        %v1881 = vpop.f32.mrb[0].mxu0
        %v1882 = vadd.f32 0.0, %v1881
        %v1883 = vpop.f32.mrb[0].mxu0
        %v1884 = vadd.f32 0.0, %v1883
        %v1885 = vpop.f32.mrb[0].mxu0
        %v1886 = vadd.f32 0.0, %v1885
        %v1887 = vpop.f32.mrb[0].mxu0
        %v1888 = vadd.f32 0.0, %v1887
        %1889 = vdwg.mxu0
        %v1890 = vmul.f32 %v1732, %v415
        %v1891 = vmul.f32 %v1734, %v416
        %v1892 = vmul.f32 %v1736, %v417
        %v1893 = vmul.f32 %v1738, %v418
        %v1894 = vmul.f32 %v1742, %v419
        %v1895 = vmul.f32 %v1744, %v420
        %v1896 = vmul.f32 %v1746, %v421
        %v1897 = vmul.f32 %v1748, %v422
        %v1898 = vmul.f32 %v1752, %v423
        %v1899 = vmul.f32 %v1754, %v424
        %v1900 = vmul.f32 %v1756, %v425
        %v1901 = vmul.f32 %v1758, %v426
        %v1902 = vmul.f32 %v1762, %v427
        %v1903 = vmul.f32 %v1764, %v428
        %v1904 = vmul.f32 %v1766, %v429
        %v1905 = vmul.f32 %v1768, %v430
        %v1906 = vmul.f32 %v1772, %v431
        %v1907 = vmul.f32 %v1774, %v432
        %v1908 = vmul.f32 %v1776, %v433
        %v1909 = vmul.f32 %v1778, %v434
        %v1910 = vmul.f32 %v1782, %v435
        %v1911 = vmul.f32 %v1784, %v436
        %v1912 = vmul.f32 %v1786, %v437
        %v1913 = vmul.f32 %v1788, %v438
        %v1914 = vmul.f32 %v1792, %v439
        %v1915 = vmul.f32 %v1794, %v440
        %v1916 = vmul.f32 %v1796, %v441
        %v1917 = vmul.f32 %v1798, %v442
        %v1918 = vmul.f32 %v1802, %v443
        %v1919 = vmul.f32 %v1804, %v444
        %v1920 = vmul.f32 %v1806, %v445
        %v1921 = vmul.f32 %v1808, %v446
        %v1922 = vmul.f32 %v1812, %v447
        %v1923 = vmul.f32 %v1814, %v448
        %v1924 = vmul.f32 %v1816, %v449
        %v1925 = vmul.f32 %v1818, %v450
        %v1926 = vmul.f32 %v1822, %v451
        %v1927 = vmul.f32 %v1824, %v452
        %v1928 = vmul.f32 %v1826, %v453
        %v1929 = vmul.f32 %v1828, %v454
        %v1930 = vmul.f32 %v1832, %v455
        %v1931 = vmul.f32 %v1834, %v456
        %v1932 = vmul.f32 %v1836, %v457
        %v1933 = vmul.f32 %v1838, %v458
        %v1934 = vmul.f32 %v1842, %v459
        %v1935 = vmul.f32 %v1844, %v460
        %v1936 = vmul.f32 %v1846, %v461
        %v1937 = vmul.f32 %v1848, %v462
        %v1938 = vmul.f32 %v1852, %v463
        %v1939 = vmul.f32 %v1854, %v464
        %v1940 = vmul.f32 %v1856, %v465
        %v1941 = vmul.f32 %v1858, %v466
        %v1942 = vmul.f32 %v1862, %v467
        %v1943 = vmul.f32 %v1864, %v468
        %v1944 = vmul.f32 %v1866, %v469
        %v1945 = vmul.f32 %v1868, %v470
        %v1946 = vmul.f32 %v1872, %v471
        %v1947 = vmul.f32 %v1874, %v472
        %v1948 = vmul.f32 %v1876, %v473
        %v1949 = vmul.f32 %v1878, %v474
        %v1950 = vmul.f32 %v1882, %v475
        %v1951 = vmul.f32 %v1884, %v476
        %v1952 = vmul.f32 %v1886, %v477
        %v1953 = vmul.f32 %v1888, %v478
        %v1954 = vpack.c.bf16 %v1892, %v1890
        %v1955 = vpack.c.bf16 %v1893, %v1891
        %v1956 = vpack.c.bf16 %v1896, %v1894
        %v1957 = vpack.c.bf16 %v1897, %v1895
        %v1958 = vpack.c.bf16 %v1900, %v1898
        %v1959 = vpack.c.bf16 %v1901, %v1899
        %v1960 = vpack.c.bf16 %v1904, %v1902
        %v1961 = vpack.c.bf16 %v1905, %v1903
        %v1962 = vpack.c.bf16 %v1908, %v1906
        %v1963 = vpack.c.bf16 %v1909, %v1907
        %v1964 = vpack.c.bf16 %v1912, %v1910
        %v1965 = vpack.c.bf16 %v1913, %v1911
        %v1966 = vpack.c.bf16 %v1916, %v1914
        %v1967 = vpack.c.bf16 %v1917, %v1915
        %v1968 = vpack.c.bf16 %v1920, %v1918
        %v1969 = vpack.c.bf16 %v1921, %v1919
        %v1970 = vpack.c.bf16 %v1924, %v1922
        %v1971 = vpack.c.bf16 %v1925, %v1923
        %v1972 = vpack.c.bf16 %v1928, %v1926
        %v1973 = vpack.c.bf16 %v1929, %v1927
        %v1974 = vpack.c.bf16 %v1932, %v1930
        %v1975 = vpack.c.bf16 %v1933, %v1931
        %v1976 = vpack.c.bf16 %v1936, %v1934
        %v1977 = vpack.c.bf16 %v1937, %v1935
        %v1978 = vpack.c.bf16 %v1940, %v1938
        %v1979 = vpack.c.bf16 %v1941, %v1939
        %v1980 = vpack.c.bf16 %v1944, %v1942
        %v1981 = vpack.c.bf16 %v1945, %v1943
        %v1982 = vpack.c.bf16 %v1948, %v1946
        %v1983 = vpack.c.bf16 %v1949, %v1947
        %v1984 = vpack.c.bf16 %v1952, %v1950
        %v1985 = vpack.c.bf16 %v1953, %v1951
        %1986 = vmatprep.subr.bf16.mxu0 0
        %1987 = vmatpush1.bf16.msra.mxu0 %v1256
        %1988 = vmatprep.subr.bf16.mxu0 0
        %1989 = vmatpush1.bf16.msra.mxu0 %v1257
        %1990 = vmatprep.subr.bf16.mxu0 0
        %1991 = vmatpush1.bf16.msra.mxu0 %v1523
        %1992 = vmatprep.subr.bf16.mxu0 0
        %1993 = vmatpush1.bf16.msra.mxu0 %v1525
        %1994 = vmatprep.subr.bf16.mxu0 0
        %1995 = vmatpush1.bf16.msra.mxu0 %v1346
        %1996 = vmatprep.subr.bf16.mxu0 0
        %1997 = vmatpush1.bf16.msra.mxu0 %v1347
        %1998 = vmatprep.subr.bf16.mxu0 0
        %1999 = vmatpush1.bf16.msra.mxu0 %v1531
        %2000 = vmatprep.subr.bf16.mxu0 0
        %2001 = vmatpush1.bf16.msra.mxu0 %v1533
        %2002 = vmatprep.subr.bf16.mxu0 0
        %2003 = vmatpush1.bf16.msra.mxu0 %v1436
        %2004 = vmatprep.subr.bf16.mxu0 0
        %2005 = vmatpush1.bf16.msra.mxu0 %v1437
        %2006 = vmatprep.subr.bf16.mxu0 0
        %2007 = vmatpush1.bf16.msra.mxu0 %v1539
        %2008 = vmatprep.subr.bf16.mxu0 0
        %2009 = vmatpush1.bf16.msra.mxu0 %v1541
        %2010 = vmatprep.subr.bf16.mxu0 0
        %2011 = vmatpush1.bf16.msra.mxu0 %v1514
        %2012 = vmatprep.subr.bf16.mxu0 0
        %2013 = vmatpush1.bf16.msra.mxu0 %v1515
        %2014 = vmatprep.subr.bf16.mxu0 0
        %2015 = vmatpush1.bf16.msra.mxu0 %v1547
        %2016 = vmatprep.subr.bf16.mxu0 0
        %2017 = vmatpush1.bf16.msra.mxu0 %v1549
        %2018 = vmatprep.mubr.bf16.mxu0 %v1955
        %2019 = vmatmul.mubr.bf16.gmra.mrb[0].mxu0 %v1954
        %v2020 = vpop.f32.mrb[0].mxu0
        %v2021 = vadd.f32 0.0, %v2020
        %v2022 = vpop.f32.mrb[0].mxu0
        %v2023 = vpop.f32.mrb[0].mxu0
        %v2024 = vadd.f32 0.0, %v2023
        %v2025 = vpop.f32.mrb[0].mxu0
        %2026 = vmatprep.mubr.bf16.mxu0 %v1957
        %2027 = vmatmul.mubr.bf16.gmra.mrb[0].mxu0 %v1956
        %v2028 = vpop.f32.mrb[0].mxu0
        %v2029 = vadd.f32 0.0, %v2028
        %v2030 = vpop.f32.mrb[0].mxu0
        %v2031 = vpop.f32.mrb[0].mxu0
        %v2032 = vadd.f32 0.0, %v2031
        %v2033 = vpop.f32.mrb[0].mxu0
        %2034 = vmatprep.mubr.bf16.mxu0 %v1959
        %2035 = vmatmul.mubr.bf16.gmra.mrb[0].mxu0 %v1958
        %v2036 = vpop.f32.mrb[0].mxu0
        %v2037 = vadd.f32 0.0, %v2036
        %v2038 = vpop.f32.mrb[0].mxu0
        %v2039 = vpop.f32.mrb[0].mxu0
        %v2040 = vadd.f32 0.0, %v2039
        %v2041 = vpop.f32.mrb[0].mxu0
        %2042 = vmatprep.mubr.bf16.mxu0 %v1961
        %2043 = vmatmul.mubr.bf16.gmra.mrb[0].mxu0 %v1960
        %v2044 = vpop.f32.mrb[0].mxu0
        %v2045 = vadd.f32 0.0, %v2044
        %v2046 = vpop.f32.mrb[0].mxu0
        %v2047 = vpop.f32.mrb[0].mxu0
        %v2048 = vadd.f32 0.0, %v2047
        %v2049 = vpop.f32.mrb[0].mxu0
        %2050 = vmatprep.mubr.bf16.mxu0 %v1963
        %2051 = vmatmul.mubr.bf16.gmra.mrb[0].mxu0 %v1962
        %v2052 = vpop.f32.mrb[0].mxu0
        %v2053 = vadd.f32 0.0, %v2052
        %v2054 = vpop.f32.mrb[0].mxu0
        %v2055 = vpop.f32.mrb[0].mxu0
        %v2056 = vadd.f32 0.0, %v2055
        %v2057 = vpop.f32.mrb[0].mxu0
        %2058 = vmatprep.mubr.bf16.mxu0 %v1965
        %2059 = vmatmul.mubr.bf16.gmra.mrb[0].mxu0 %v1964
        %v2060 = vpop.f32.mrb[0].mxu0
        %v2061 = vadd.f32 0.0, %v2060
        %v2062 = vpop.f32.mrb[0].mxu0
        %v2063 = vpop.f32.mrb[0].mxu0
        %v2064 = vadd.f32 0.0, %v2063
        %v2065 = vpop.f32.mrb[0].mxu0
        %2066 = vmatprep.mubr.bf16.mxu0 %v1967
        %2067 = vmatmul.mubr.bf16.gmra.mrb[0].mxu0 %v1966
        %v2068 = vpop.f32.mrb[0].mxu0
        %v2069 = vadd.f32 0.0, %v2068
        %v2070 = vpop.f32.mrb[0].mxu0
        %v2071 = vpop.f32.mrb[0].mxu0
        %v2072 = vadd.f32 0.0, %v2071
        %v2073 = vpop.f32.mrb[0].mxu0
        %2074 = vmatprep.mubr.bf16.mxu0 %v1969
        %2075 = vmatmul.mubr.bf16.gmra.mrb[0].mxu0 %v1968
        %v2076 = vpop.f32.mrb[0].mxu0
        %v2077 = vadd.f32 0.0, %v2076
        %v2078 = vpop.f32.mrb[0].mxu0
        %v2079 = vpop.f32.mrb[0].mxu0
        %v2080 = vadd.f32 0.0, %v2079
        %v2081 = vpop.f32.mrb[0].mxu0
        %2082 = vmatprep.mubr.bf16.mxu0 %v1971
        %2083 = vmatmul.mubr.bf16.gmra.mrb[0].mxu0 %v1970
        %v2084 = vpop.f32.mrb[0].mxu0
        %v2085 = vadd.f32 0.0, %v2084
        %v2086 = vpop.f32.mrb[0].mxu0
        %v2087 = vpop.f32.mrb[0].mxu0
        %v2088 = vadd.f32 0.0, %v2087
        %v2089 = vpop.f32.mrb[0].mxu0
        %2090 = vmatprep.mubr.bf16.mxu0 %v1973
        %2091 = vmatmul.mubr.bf16.gmra.mrb[0].mxu0 %v1972
        %v2092 = vpop.f32.mrb[0].mxu0
        %v2093 = vadd.f32 0.0, %v2092
        %v2094 = vpop.f32.mrb[0].mxu0
        %v2095 = vpop.f32.mrb[0].mxu0
        %v2096 = vadd.f32 0.0, %v2095
        %v2097 = vpop.f32.mrb[0].mxu0
        %2098 = vmatprep.mubr.bf16.mxu0 %v1975
        %2099 = vmatmul.mubr.bf16.gmra.mrb[0].mxu0 %v1974
        %v2100 = vpop.f32.mrb[0].mxu0
        %v2101 = vadd.f32 0.0, %v2100
        %v2102 = vpop.f32.mrb[0].mxu0
        %v2103 = vpop.f32.mrb[0].mxu0
        %v2104 = vadd.f32 0.0, %v2103
        %v2105 = vpop.f32.mrb[0].mxu0
        %2106 = vmatprep.mubr.bf16.mxu0 %v1977
        %2107 = vmatmul.mubr.bf16.gmra.mrb[0].mxu0 %v1976
        %v2108 = vpop.f32.mrb[0].mxu0
        %v2109 = vadd.f32 0.0, %v2108
        %v2110 = vpop.f32.mrb[0].mxu0
        %v2111 = vpop.f32.mrb[0].mxu0
        %v2112 = vadd.f32 0.0, %v2111
        %v2113 = vpop.f32.mrb[0].mxu0
        %2114 = vmatprep.mubr.bf16.mxu0 %v1979
        %2115 = vmatmul.mubr.bf16.gmra.mrb[0].mxu0 %v1978
        %v2116 = vpop.f32.mrb[0].mxu0
        %v2117 = vadd.f32 0.0, %v2116
        %v2118 = vpop.f32.mrb[0].mxu0
        %v2119 = vpop.f32.mrb[0].mxu0
        %v2120 = vadd.f32 0.0, %v2119
        %v2121 = vpop.f32.mrb[0].mxu0
        %2122 = vmatprep.mubr.bf16.mxu0 %v1981
        %2123 = vmatmul.mubr.bf16.gmra.mrb[0].mxu0 %v1980
        %v2124 = vpop.f32.mrb[0].mxu0
        %v2125 = vadd.f32 0.0, %v2124
        %v2126 = vpop.f32.mrb[0].mxu0
        %v2127 = vpop.f32.mrb[0].mxu0
        %v2128 = vadd.f32 0.0, %v2127
        %v2129 = vpop.f32.mrb[0].mxu0
        %2130 = vmatprep.mubr.bf16.mxu0 %v1983
        %2131 = vmatmul.mubr.bf16.gmra.mrb[0].mxu0 %v1982
        %v2132 = vpop.f32.mrb[0].mxu0
        %v2133 = vadd.f32 0.0, %v2132
        %v2134 = vpop.f32.mrb[0].mxu0
        %v2135 = vpop.f32.mrb[0].mxu0
        %v2136 = vadd.f32 0.0, %v2135
        %v2137 = vpop.f32.mrb[0].mxu0
        %2138 = vmatprep.mubr.bf16.mxu0 %v1985
        %2139 = vmatmul.mubr.bf16.gmra.mrb[0].mxu0 %v1984
        %v2140 = vpop.f32.mrb[0].mxu0
        %v2141 = vadd.f32 0.0, %v2140
        %v2142 = vpop.f32.mrb[0].mxu0
        %v2143 = vpop.f32.mrb[0].mxu0
        %v2144 = vadd.f32 0.0, %v2143
        %v2145 = vpop.f32.mrb[0].mxu0
        %2146 = vdwg.mxu0
        %v2147 = vmul.f32 %v2021, 0.6666667
        %v2148 = vmul.f32 %v2024, 0.6666667
        %v2149 = vmul.f32 %v2029, 0.6666667
        %v2150 = vmul.f32 %v2032, 0.6666667
        %v2151 = vmul.f32 %v2037, 0.6666667
        %v2152 = vmul.f32 %v2040, 0.6666667
        %v2153 = vmul.f32 %v2045, 0.6666667
        %v2154 = vmul.f32 %v2048, 0.6666667
        %v2155 = vadd.f32 %v2147, 0.0
        %v2156 = vadd.f32 %v2148, 0.0
        %v2157 = vadd.f32 %v2149, 0.0
        %v2158 = vadd.f32 %v2150, 0.0
        %v2159 = vadd.f32 %v2151, 0.0
        %v2160 = vadd.f32 %v2152, 0.0
        %v2161 = vadd.f32 %v2153, 0.0
        %v2162 = vadd.f32 %v2154, 0.0
        %vm2163 = vcmp.ge.f32.partialorder %v2155, 0.5
        %vm2164 = vcmp.ge.f32.partialorder %v2156, 0.5
        %vm2165 = vcmp.ge.f32.partialorder %v2157, 0.5
        %vm2166 = vcmp.ge.f32.partialorder %v2158, 0.5
        %vm2167 = vcmp.ge.f32.partialorder %v2159, 0.5
        %vm2168 = vcmp.ge.f32.partialorder %v2160, 0.5
        %vm2169 = vcmp.ge.f32.partialorder %v2161, 0.5
        %vm2170 = vcmp.ge.f32.partialorder %v2162, 0.5
        %v2171 = vsel %vm2163, 0.0, %v2155
        %v2172 = vsel %vm2164, 0.0, %v2156
        %v2173 = vsel %vm2165, 0.0, %v2157
        %v2174 = vsel %vm2166, 0.0, %v2158
        %v2175 = vsel %vm2167, 0.0, %v2159
        %v2176 = vsel %vm2168, 0.0, %v2160
        %v2177 = vsel %vm2169, 0.0, %v2161
        %v2178 = vsel %vm2170, 0.0, %v2162
        %v2179 = vsel %vm2163, 1, 0
        %v2180 = vsel %vm2164, 1, 0
        %v2181 = vsel %vm2165, 1, 0
        %v2182 = vsel %vm2166, 1, 0
        %v2183 = vsel %vm2167, 1, 0
        %v2184 = vsel %vm2168, 1, 0
        %v2185 = vsel %vm2169, 1, 0
        %v2186 = vsel %vm2170, 1, 0
        %v2187 = vcvt.s32.f32 %v2179
        %v2188 = vcvt.s32.f32 %v2180
        %v2189 = vcvt.s32.f32 %v2181
        %v2190 = vcvt.s32.f32 %v2182
        %v2191 = vcvt.s32.f32 %v2183
        %v2192 = vcvt.s32.f32 %v2184
        %v2193 = vcvt.s32.f32 %v2185
        %v2194 = vcvt.s32.f32 %v2186
        %v2195 = vpack.c.bf16 %v2188, %v2187
        %v2196 = vpack.c.bf16 %v2190, %v2189
        %v2197 = vpack.c.bf16 %v2192, %v2191
        %v2198 = vpack.c.bf16 %v2194, %v2193
        %v2199 = vsub.f32 %v2053, %v2171
        %v2200 = vsub.f32 %v2056, %v2172
        %v2201 = vsub.f32 %v2061, %v2173
        %v2202 = vsub.f32 %v2064, %v2174
        %v2203 = vsub.f32 %v2069, %v2175
        %v2204 = vsub.f32 %v2072, %v2176
        %v2205 = vsub.f32 %v2077, %v2177
        %v2206 = vsub.f32 %v2080, %v2178
        %v2207 = vmul.f32 %v2199, 0.6666667
        %v2208 = vmul.f32 %v2200, 0.6666667
        %v2209 = vmul.f32 %v2201, 0.6666667
        %v2210 = vmul.f32 %v2202, 0.6666667
        %v2211 = vmul.f32 %v2203, 0.6666667
        %v2212 = vmul.f32 %v2204, 0.6666667
        %v2213 = vmul.f32 %v2205, 0.6666667
        %v2214 = vmul.f32 %v2206, 0.6666667
        %v2215 = vadd.f32 %v2171, %v2207
        %v2216 = vadd.f32 %v2172, %v2208
        %v2217 = vadd.f32 %v2173, %v2209
        %v2218 = vadd.f32 %v2174, %v2210
        %v2219 = vadd.f32 %v2175, %v2211
        %v2220 = vadd.f32 %v2176, %v2212
        %v2221 = vadd.f32 %v2177, %v2213
        %v2222 = vadd.f32 %v2178, %v2214
        %vm2223 = vcmp.ge.f32.partialorder %v2215, 0.5
        %vm2224 = vcmp.ge.f32.partialorder %v2216, 0.5
        %vm2225 = vcmp.ge.f32.partialorder %v2217, 0.5
        %vm2226 = vcmp.ge.f32.partialorder %v2218, 0.5
        %vm2227 = vcmp.ge.f32.partialorder %v2219, 0.5
        %vm2228 = vcmp.ge.f32.partialorder %v2220, 0.5
        %vm2229 = vcmp.ge.f32.partialorder %v2221, 0.5
        %vm2230 = vcmp.ge.f32.partialorder %v2222, 0.5
        %v2231 = vsel %vm2223, 0.0, %v2215
        %v2232 = vsel %vm2224, 0.0, %v2216
        %v2233 = vsel %vm2225, 0.0, %v2217
        %v2234 = vsel %vm2226, 0.0, %v2218
        %v2235 = vsel %vm2227, 0.0, %v2219
        %v2236 = vsel %vm2228, 0.0, %v2220
        %v2237 = vsel %vm2229, 0.0, %v2221
        %v2238 = vsel %vm2230, 0.0, %v2222
        %v2239 = vsel %vm2223, 1, 0
        %v2240 = vsel %vm2224, 1, 0
        %v2241 = vsel %vm2225, 1, 0
        %v2242 = vsel %vm2226, 1, 0
        %v2243 = vsel %vm2227, 1, 0
        %v2244 = vsel %vm2228, 1, 0
        %v2245 = vsel %vm2229, 1, 0
        %v2246 = vsel %vm2230, 1, 0
        %v2247 = vcvt.s32.f32 %v2239
        %v2248 = vcvt.s32.f32 %v2240
        %v2249 = vcvt.s32.f32 %v2241
        %v2250 = vcvt.s32.f32 %v2242
        %v2251 = vcvt.s32.f32 %v2243
        %v2252 = vcvt.s32.f32 %v2244
        %v2253 = vcvt.s32.f32 %v2245
        %v2254 = vcvt.s32.f32 %v2246
        %v2255 = vpack.c.bf16 %v2248, %v2247
        %v2256 = vpack.c.bf16 %v2250, %v2249
        %v2257 = vpack.c.bf16 %v2252, %v2251
        %v2258 = vpack.c.bf16 %v2254, %v2253
        %v2259 = vsub.f32 %v2085, %v2231
        %v2260 = vsub.f32 %v2088, %v2232
        %v2261 = vsub.f32 %v2093, %v2233
        %v2262 = vsub.f32 %v2096, %v2234
        %v2263 = vsub.f32 %v2101, %v2235
        %v2264 = vsub.f32 %v2104, %v2236
        %v2265 = vsub.f32 %v2109, %v2237
        %v2266 = vsub.f32 %v2112, %v2238
        %v2267 = vmul.f32 %v2259, 0.6666667
        %v2268 = vmul.f32 %v2260, 0.6666667
        %v2269 = vmul.f32 %v2261, 0.6666667
        %v2270 = vmul.f32 %v2262, 0.6666667
        %v2271 = vmul.f32 %v2263, 0.6666667
        %v2272 = vmul.f32 %v2264, 0.6666667
        %v2273 = vmul.f32 %v2265, 0.6666667
        %v2274 = vmul.f32 %v2266, 0.6666667
        %v2275 = vadd.f32 %v2231, %v2267
        %v2276 = vadd.f32 %v2232, %v2268
        %v2277 = vadd.f32 %v2233, %v2269
        %v2278 = vadd.f32 %v2234, %v2270
        %v2279 = vadd.f32 %v2235, %v2271
        %v2280 = vadd.f32 %v2236, %v2272
        %v2281 = vadd.f32 %v2237, %v2273
        %v2282 = vadd.f32 %v2238, %v2274
        %vm2283 = vcmp.ge.f32.partialorder %v2275, 0.5
        %vm2284 = vcmp.ge.f32.partialorder %v2276, 0.5
        %vm2285 = vcmp.ge.f32.partialorder %v2277, 0.5
        %vm2286 = vcmp.ge.f32.partialorder %v2278, 0.5
        %vm2287 = vcmp.ge.f32.partialorder %v2279, 0.5
        %vm2288 = vcmp.ge.f32.partialorder %v2280, 0.5
        %vm2289 = vcmp.ge.f32.partialorder %v2281, 0.5
        %vm2290 = vcmp.ge.f32.partialorder %v2282, 0.5
        %v2291 = vsel %vm2283, 0.0, %v2275
        %v2292 = vsel %vm2284, 0.0, %v2276
        %v2293 = vsel %vm2285, 0.0, %v2277
        %v2294 = vsel %vm2286, 0.0, %v2278
        %v2295 = vsel %vm2287, 0.0, %v2279
        %v2296 = vsel %vm2288, 0.0, %v2280
        %v2297 = vsel %vm2289, 0.0, %v2281
        %v2298 = vsel %vm2290, 0.0, %v2282
        %v2299 = vsel %vm2283, 1, 0
        %v2300 = vsel %vm2284, 1, 0
        %v2301 = vsel %vm2285, 1, 0
        %v2302 = vsel %vm2286, 1, 0
        %v2303 = vsel %vm2287, 1, 0
        %v2304 = vsel %vm2288, 1, 0
        %v2305 = vsel %vm2289, 1, 0
        %v2306 = vsel %vm2290, 1, 0
        %v2307 = vcvt.s32.f32 %v2299
        %v2308 = vcvt.s32.f32 %v2300
        %v2309 = vcvt.s32.f32 %v2301
        %v2310 = vcvt.s32.f32 %v2302
        %v2311 = vcvt.s32.f32 %v2303
        %v2312 = vcvt.s32.f32 %v2304
        %v2313 = vcvt.s32.f32 %v2305
        %v2314 = vcvt.s32.f32 %v2306
        %v2315 = vpack.c.bf16 %v2308, %v2307
        %v2316 = vpack.c.bf16 %v2310, %v2309
        %v2317 = vpack.c.bf16 %v2312, %v2311
        %v2318 = vpack.c.bf16 %v2314, %v2313
        %v2319 = vsub.f32 %v2117, %v2291
        %v2320 = vsub.f32 %v2120, %v2292
        %v2321 = vsub.f32 %v2125, %v2293
        %v2322 = vsub.f32 %v2128, %v2294
        %v2323 = vsub.f32 %v2133, %v2295
        %v2324 = vsub.f32 %v2136, %v2296
        %v2325 = vsub.f32 %v2141, %v2297
        %v2326 = vsub.f32 %v2144, %v2298
        %v2327 = vmul.f32 %v2319, 0.6666667
        %v2328 = vmul.f32 %v2320, 0.6666667
        %v2329 = vmul.f32 %v2321, 0.6666667
        %v2330 = vmul.f32 %v2322, 0.6666667
        %v2331 = vmul.f32 %v2323, 0.6666667
        %v2332 = vmul.f32 %v2324, 0.6666667
        %v2333 = vmul.f32 %v2325, 0.6666667
        %v2334 = vmul.f32 %v2326, 0.6666667
        %v2335 = vadd.f32 %v2291, %v2327
        %v2336 = vadd.f32 %v2292, %v2328
        %v2337 = vadd.f32 %v2293, %v2329
        %v2338 = vadd.f32 %v2294, %v2330
        %v2339 = vadd.f32 %v2295, %v2331
        %v2340 = vadd.f32 %v2296, %v2332
        %v2341 = vadd.f32 %v2297, %v2333
        %v2342 = vadd.f32 %v2298, %v2334
        %vm2343 = vcmp.ge.f32.partialorder %v2335, 0.5
        %vm2344 = vcmp.ge.f32.partialorder %v2336, 0.5
        %vm2345 = vcmp.ge.f32.partialorder %v2337, 0.5
        %vm2346 = vcmp.ge.f32.partialorder %v2338, 0.5
        %vm2347 = vcmp.ge.f32.partialorder %v2339, 0.5
        %vm2348 = vcmp.ge.f32.partialorder %v2340, 0.5
        %vm2349 = vcmp.ge.f32.partialorder %v2341, 0.5
        %vm2350 = vcmp.ge.f32.partialorder %v2342, 0.5
        %v2351 = vsel %vm2343, 1, 0
        %v2352 = vsel %vm2344, 1, 0
        %v2353 = vsel %vm2345, 1, 0
        %v2354 = vsel %vm2346, 1, 0
        %v2355 = vsel %vm2347, 1, 0
        %v2356 = vsel %vm2348, 1, 0
        %v2357 = vsel %vm2349, 1, 0
        %v2358 = vsel %vm2350, 1, 0
        %v2359 = vcvt.s32.f32 %v2351
        %v2360 = vcvt.s32.f32 %v2352
        %v2361 = vcvt.s32.f32 %v2353
        %v2362 = vcvt.s32.f32 %v2354
        %v2363 = vcvt.s32.f32 %v2355
        %v2364 = vcvt.s32.f32 %v2356
        %v2365 = vcvt.s32.f32 %v2357
        %v2366 = vcvt.s32.f32 %v2358
        %v2367 = vpack.c.bf16 %v2360, %v2359
        %v2368 = vpack.c.bf16 %v2362, %v2361
        %v2369 = vpack.c.bf16 %v2364, %v2363
        %v2370 = vpack.c.bf16 %v2366, %v2365
        %2373 = vrot.lane.b32.xlu0 %v2197, 64
        %v2374 = vpop.permute.xlu0 %2373
        %2375 = vrot.lane.b32.xlu0 %v2198, 64
        %v2376 = vpop.permute.xlu0 %2375
        %2379 = vrot.lane.b32.xlu0 %v2257, 64
        %v2380 = vpop.permute.xlu0 %2379
        %2381 = vrot.lane.b32.xlu0 %v2258, 64
        %v2382 = vpop.permute.xlu0 %2381
        %2385 = vrot.lane.b32.xlu0 %v2317, 64
        %v2386 = vpop.permute.xlu0 %2385
        %2387 = vrot.lane.b32.xlu0 %v2318, 64
        %v2388 = vpop.permute.xlu0 %2387
        %2391 = vrot.lane.b32.xlu0 %v2369, 64
        %v2392 = vpop.permute.xlu0 %2391
        %2393 = vrot.lane.b32.xlu0 %v2370, 64
        %v2394 = vpop.permute.xlu0 %2393
        %v2397 = vsel %vm1600, %v2195, %v2374
        %v2401 = vsel %vm1600, %v2196, %v2376
        %v2405 = vsel %vm1600, %v2255, %v2380
        %v2409 = vsel %vm1600, %v2256, %v2382
        %v2413 = vsel %vm1600, %v2315, %v2386
        %v2417 = vsel %vm1600, %v2316, %v2388
        %v2421 = vsel %vm1600, %v2367, %v2392
        %v2425 = vsel %vm1600, %v2368, %v2394
        %v2431 = vunpack.c.l.b16 %v375
        %v2432 = vunpack.c.l.b16 %v376
        %v2433 = vunpack.c.l.b16 %v377
        %v2434 = vunpack.c.l.b16 %v378
        %v2435 = vpack.c.b16 %v2432, %v2431
        %v2436 = vpack.c.b16 %v2434, %v2433
        %v2438 = vsel %vm637, %v2435, 0
        %v2441 = vsel %vm637, %v2436, 0
        %2443 = vmatprep.subr.bf16.mxu0 %v2405
        %2444 = vmatpush1.bf16.msra.mxu0 %v2397
        %2445 = vmatprep.subr.bf16.mxu0 %v2409
        %2446 = vmatpush1.bf16.msra.mxu0 %v2401
        %2447 = vmatprep.subr.bf16.mxu0 0
        %2448 = vmatpush1.bf16.msra.mxu0 0
        %2449 = vmatprep.subr.bf16.mxu0 0
        %2450 = vmatpush1.bf16.msra.mxu0 0
        %2451 = vmatprep.subr.bf16.mxu0 0
        %2452 = vmatpush1.bf16.msra.mxu0 0
        %2453 = vmatprep.subr.bf16.mxu0 0
        %2454 = vmatpush1.bf16.msra.mxu0 0
        %2455 = vmatprep.subr.bf16.mxu0 0
        %2456 = vmatpush1.bf16.msra.mxu0 0
        %2457 = vmatprep.subr.bf16.mxu0 0
        %2458 = vmatpush1.bf16.msra.mxu0 0
        %2459 = vmatprep.subr.bf16.mxu0 0
        %2460 = vmatpush1.bf16.msra.mxu0 0
        %2461 = vmatprep.subr.bf16.mxu0 0
        %2462 = vmatpush1.bf16.msra.mxu0 0
        %2463 = vmatprep.subr.bf16.mxu0 0
        %2464 = vmatpush1.bf16.msra.mxu0 0
        %2465 = vmatprep.subr.bf16.mxu0 0
        %2466 = vmatpush1.bf16.msra.mxu0 0
        %2467 = vmatprep.subr.bf16.mxu0 0
        %2468 = vmatpush1.bf16.msra.mxu0 0
        %2469 = vmatprep.subr.bf16.mxu0 0
        %2470 = vmatpush1.bf16.msra.mxu0 0
        %2471 = vmatprep.subr.bf16.mxu0 0
        %2472 = vmatpush1.bf16.msra.mxu0 0
        %2473 = vmatprep.subr.bf16.mxu0 0
        %2474 = vmatpush1.bf16.msra.mxu0 0
        %2475 = vmatprep.mubr.bf16.mxu0 0
        %2476 = vmatmul.mubr.bf16.gmra.mrb[0].mxu0 %v2438
        %v2477 = vpop.f32.mrb[0].mxu0
        %v2478 = vadd.f32 0.0, %v2477
        %v2479 = vpop.f32.mrb[0].mxu0
        %v2480 = vadd.f32 0.0, %v2479
        %v2481 = vpop.f32.mrb[0].mxu0
        %v2482 = vadd.f32 0.0, %v2481
        %v2483 = vpop.f32.mrb[0].mxu0
        %v2484 = vadd.f32 0.0, %v2483
        %2485 = vmatprep.mubr.bf16.mxu0 0
        %2486 = vmatmul.mubr.bf16.gmra.mrb[0].mxu0 %v2441
        %v2487 = vpop.f32.mrb[0].mxu0
        %v2488 = vadd.f32 0.0, %v2487
        %v2489 = vpop.f32.mrb[0].mxu0
        %v2490 = vadd.f32 0.0, %v2489
        %v2491 = vpop.f32.mrb[0].mxu0
        %v2492 = vadd.f32 0.0, %v2491
        %v2493 = vpop.f32.mrb[0].mxu0
        %v2494 = vadd.f32 0.0, %v2493
        %2495 = vdwg.mxu0
        %2496 = vmatprep.subr.bf16.mxu0 %v2421
        %2497 = vmatpush1.bf16.msra.mxu0 %v2413
        %2498 = vmatprep.subr.bf16.mxu0 %v2425
        %2499 = vmatpush1.bf16.msra.mxu0 %v2417
        %2500 = vmatprep.subr.bf16.mxu0 0
        %2501 = vmatpush1.bf16.msra.mxu0 0
        %2502 = vmatprep.subr.bf16.mxu0 0
        %2503 = vmatpush1.bf16.msra.mxu0 0
        %2504 = vmatprep.subr.bf16.mxu0 0
        %2505 = vmatpush1.bf16.msra.mxu0 0
        %2506 = vmatprep.subr.bf16.mxu0 0
        %2507 = vmatpush1.bf16.msra.mxu0 0
        %2508 = vmatprep.subr.bf16.mxu0 0
        %2509 = vmatpush1.bf16.msra.mxu0 0
        %2510 = vmatprep.subr.bf16.mxu0 0
        %2511 = vmatpush1.bf16.msra.mxu0 0
        %2512 = vmatprep.subr.bf16.mxu0 0
        %2513 = vmatpush1.bf16.msra.mxu0 0
        %2514 = vmatprep.subr.bf16.mxu0 0
        %2515 = vmatpush1.bf16.msra.mxu0 0
        %2516 = vmatprep.subr.bf16.mxu0 0
        %2517 = vmatpush1.bf16.msra.mxu0 0
        %2518 = vmatprep.subr.bf16.mxu0 0
        %2519 = vmatpush1.bf16.msra.mxu0 0
        %2520 = vmatprep.subr.bf16.mxu0 0
        %2521 = vmatpush1.bf16.msra.mxu0 0
        %2522 = vmatprep.subr.bf16.mxu0 0
        %2523 = vmatpush1.bf16.msra.mxu0 0
        %2524 = vmatprep.subr.bf16.mxu0 0
        %2525 = vmatpush1.bf16.msra.mxu0 0
        %2526 = vmatprep.subr.bf16.mxu0 0
        %2527 = vmatpush1.bf16.msra.mxu0 0
        %2528 = vmatprep.mubr.bf16.mxu0 0
        %2529 = vmatmul.mubr.bf16.gmra.mrb[0].mxu0 %v2438
        %v2530 = vpop.f32.mrb[0].mxu0
        %v2531 = vadd.f32 0.0, %v2530
        %v2532 = vpop.f32.mrb[0].mxu0
        %v2533 = vadd.f32 0.0, %v2532
        %v2534 = vpop.f32.mrb[0].mxu0
        %v2535 = vadd.f32 0.0, %v2534
        %v2536 = vpop.f32.mrb[0].mxu0
        %v2537 = vadd.f32 0.0, %v2536
        %2538 = vmatprep.mubr.bf16.mxu0 0
        %2539 = vmatmul.mubr.bf16.gmra.mrb[0].mxu0 %v2441
        %v2540 = vpop.f32.mrb[0].mxu0
        %v2541 = vadd.f32 0.0, %v2540
        %v2542 = vpop.f32.mrb[0].mxu0
        %v2543 = vadd.f32 0.0, %v2542
        %v2544 = vpop.f32.mrb[0].mxu0
        %v2545 = vadd.f32 0.0, %v2544
        %v2546 = vpop.f32.mrb[0].mxu0
        %v2547 = vadd.f32 0.0, %v2546
        %2548 = vdwg.mxu0
        %v2553 = vunpack.c.l.b16 %v371
        %v2554 = vunpack.c.l.b16 %v372
        %v2555 = vunpack.c.l.b16 %v373
        %v2556 = vunpack.c.l.b16 %v374
        %v2557 = vpack.c.b16 %v2554, %v2553
        %v2558 = vpack.c.b16 %v2556, %v2555
        %v2560 = vsel %vm637, %v2557, 0
        %v2563 = vsel %vm637, %v2558, 0
        %2565 = vmatprep.subr.bf16.mxu0 %v2405
        %2566 = vmatpush1.bf16.msra.mxu0 %v2397
        %2567 = vmatprep.subr.bf16.mxu0 %v2409
        %2568 = vmatpush1.bf16.msra.mxu0 %v2401
        %2569 = vmatprep.subr.bf16.mxu0 0
        %2570 = vmatpush1.bf16.msra.mxu0 0
        %2571 = vmatprep.subr.bf16.mxu0 0
        %2572 = vmatpush1.bf16.msra.mxu0 0
        %2573 = vmatprep.subr.bf16.mxu0 0
        %2574 = vmatpush1.bf16.msra.mxu0 0
        %2575 = vmatprep.subr.bf16.mxu0 0
        %2576 = vmatpush1.bf16.msra.mxu0 0
        %2577 = vmatprep.subr.bf16.mxu0 0
        %2578 = vmatpush1.bf16.msra.mxu0 0
        %2579 = vmatprep.subr.bf16.mxu0 0
        %2580 = vmatpush1.bf16.msra.mxu0 0
        %2581 = vmatprep.subr.bf16.mxu0 0
        %2582 = vmatpush1.bf16.msra.mxu0 0
        %2583 = vmatprep.subr.bf16.mxu0 0
        %2584 = vmatpush1.bf16.msra.mxu0 0
        %2585 = vmatprep.subr.bf16.mxu0 0
        %2586 = vmatpush1.bf16.msra.mxu0 0
        %2587 = vmatprep.subr.bf16.mxu0 0
        %2588 = vmatpush1.bf16.msra.mxu0 0
        %2589 = vmatprep.subr.bf16.mxu0 0
        %2590 = vmatpush1.bf16.msra.mxu0 0
        %2591 = vmatprep.subr.bf16.mxu0 0
        %2592 = vmatpush1.bf16.msra.mxu0 0
        %2593 = vmatprep.subr.bf16.mxu0 0
        %2594 = vmatpush1.bf16.msra.mxu0 0
        %2595 = vmatprep.subr.bf16.mxu0 0
        %2596 = vmatpush1.bf16.msra.mxu0 0
        %2597 = vmatprep.mubr.bf16.mxu0 0
        %2598 = vmatmul.mubr.bf16.gmra.mrb[0].mxu0 %v2560
        %v2599 = vpop.f32.mrb[0].mxu0
        %v2600 = vadd.f32 %v2478, %v2599
        %v2601 = vpop.f32.mrb[0].mxu0
        %v2602 = vadd.f32 %v2480, %v2601
        %v2603 = vpop.f32.mrb[0].mxu0
        %v2604 = vadd.f32 %v2482, %v2603
        %v2605 = vpop.f32.mrb[0].mxu0
        %v2606 = vadd.f32 %v2484, %v2605
        %2607 = vmatprep.mubr.bf16.mxu0 0
        %2608 = vmatmul.mubr.bf16.gmra.mrb[0].mxu0 %v2563
        %v2609 = vpop.f32.mrb[0].mxu0
        %v2610 = vadd.f32 %v2488, %v2609
        %v2611 = vpop.f32.mrb[0].mxu0
        %v2612 = vadd.f32 %v2490, %v2611
        %v2613 = vpop.f32.mrb[0].mxu0
        %v2614 = vadd.f32 %v2492, %v2613
        %v2615 = vpop.f32.mrb[0].mxu0
        %v2616 = vadd.f32 %v2494, %v2615
        %2617 = vdwg.mxu0
        %2618 = vmatprep.subr.bf16.mxu0 %v2421
        %2619 = vmatpush1.bf16.msra.mxu0 %v2413
        %2620 = vmatprep.subr.bf16.mxu0 %v2425
        %2621 = vmatpush1.bf16.msra.mxu0 %v2417
        %2622 = vmatprep.subr.bf16.mxu0 0
        %2623 = vmatpush1.bf16.msra.mxu0 0
        %2624 = vmatprep.subr.bf16.mxu0 0
        %2625 = vmatpush1.bf16.msra.mxu0 0
        %2626 = vmatprep.subr.bf16.mxu0 0
        %2627 = vmatpush1.bf16.msra.mxu0 0
        %2628 = vmatprep.subr.bf16.mxu0 0
        %2629 = vmatpush1.bf16.msra.mxu0 0
        %2630 = vmatprep.subr.bf16.mxu0 0
        %2631 = vmatpush1.bf16.msra.mxu0 0
        %2632 = vmatprep.subr.bf16.mxu0 0
        %2633 = vmatpush1.bf16.msra.mxu0 0
        %2634 = vmatprep.subr.bf16.mxu0 0
        %2635 = vmatpush1.bf16.msra.mxu0 0
        %2636 = vmatprep.subr.bf16.mxu0 0
        %2637 = vmatpush1.bf16.msra.mxu0 0
        %2638 = vmatprep.subr.bf16.mxu0 0
        %2639 = vmatpush1.bf16.msra.mxu0 0
        %2640 = vmatprep.subr.bf16.mxu0 0
        %2641 = vmatpush1.bf16.msra.mxu0 0
        %2642 = vmatprep.subr.bf16.mxu0 0
        %2643 = vmatpush1.bf16.msra.mxu0 0
        %2644 = vmatprep.subr.bf16.mxu0 0
        %2645 = vmatpush1.bf16.msra.mxu0 0
        %2646 = vmatprep.subr.bf16.mxu0 0
        %2647 = vmatpush1.bf16.msra.mxu0 0
        %2648 = vmatprep.subr.bf16.mxu0 0
        %2649 = vmatpush1.bf16.msra.mxu0 0
        %2650 = vmatprep.mubr.bf16.mxu0 0
        %2651 = vmatmul.mubr.bf16.gmra.mrb[0].mxu0 %v2560
        %v2652 = vpop.f32.mrb[0].mxu0
        %v2653 = vadd.f32 %v2531, %v2652
        %v2654 = vpop.f32.mrb[0].mxu0
        %v2655 = vadd.f32 %v2533, %v2654
        %v2656 = vpop.f32.mrb[0].mxu0
        %v2657 = vadd.f32 %v2535, %v2656
        %v2658 = vpop.f32.mrb[0].mxu0
        %v2659 = vadd.f32 %v2537, %v2658
        %2660 = vmatprep.mubr.bf16.mxu0 0
        %2661 = vmatmul.mubr.bf16.gmra.mrb[0].mxu0 %v2563
        %v2662 = vpop.f32.mrb[0].mxu0
        %v2663 = vadd.f32 %v2541, %v2662
        %v2664 = vpop.f32.mrb[0].mxu0
        %v2665 = vadd.f32 %v2543, %v2664
        %v2666 = vpop.f32.mrb[0].mxu0
        %v2667 = vadd.f32 %v2545, %v2666
        %v2668 = vpop.f32.mrb[0].mxu0
        %v2669 = vadd.f32 %v2547, %v2668
        %2670 = vdwg.mxu0
        %2672 = vset.pattern.permute.xlu0 0
        %2673 = vperm.xlu0 %2672, %v379
        %v2674 = vpop.permute.xlu0 %2673
        %2677 = vset.pattern.permute.xlu0 0
        %2678 = vperm.xlu0 %2677, %v380
        %v2679 = vpop.permute.xlu0 %2678
        %2682 = vset.pattern.permute.xlu0 0
        %2683 = vperm.xlu0 %2682, %v381
        %v2684 = vpop.permute.xlu0 %2683
        %2687 = vset.pattern.permute.xlu0 0
        %2688 = vperm.xlu0 %2687, %v382
        %v2689 = vpop.permute.xlu0 %2688
        %v2691 = vadd.f32 %v2600, %v2674
        %v2692 = vadd.f32 %v2602, %v2674
        %v2693 = vadd.f32 %v2653, %v2674
        %v2694 = vadd.f32 %v2655, %v2674
        %v2695 = vadd.f32 %v2604, %v2679
        %v2696 = vadd.f32 %v2606, %v2679
        %v2697 = vadd.f32 %v2657, %v2679
        %v2698 = vadd.f32 %v2659, %v2679
        %v2699 = vadd.f32 %v2610, %v2684
        %v2700 = vadd.f32 %v2612, %v2684
        %v2701 = vadd.f32 %v2663, %v2684
        %v2702 = vadd.f32 %v2665, %v2684
        %v2703 = vadd.f32 %v2614, %v2689
        %v2704 = vadd.f32 %v2616, %v2689
        %v2705 = vadd.f32 %v2667, %v2689
        %v2706 = vadd.f32 %v2669, %v2689
        %2707 = vst [vmem:[%s328] sm:$0xff] %v2691
        %2708 = vst [vmem:[%s328 + $0x8] sm:$0xff] %v2692
        %2709 = vst [vmem:[%s328 + $0x10] sm:$0xff] %v2693
        %2710 = vst [vmem:[%s328 + $0x18] sm:$0xff] %v2694
        %2711 = vst [vmem:[%s328 + $0x20] sm:$0xff] %v2695
        %2712 = vst [vmem:[%s328 + $0x28] sm:$0xff] %v2696
        %2713 = vst [vmem:[%s328 + $0x30] sm:$0xff] %v2697
        %2714 = vst [vmem:[%s328 + $0x38] sm:$0xff] %v2698
        %2715 = vst [vmem:[%s328 + $0x40] sm:$0xff] %v2699
        %2716 = vst [vmem:[%s328 + $0x48] sm:$0xff] %v2700
        %2717 = vst [vmem:[%s328 + $0x50] sm:$0xff] %v2701
        %2718 = vst [vmem:[%s328 + $0x58] sm:$0xff] %v2702
        %2719 = vst [vmem:[%s328 + $0x60] sm:$0xff] %v2703
        %2720 = vst [vmem:[%s328 + $0x68] sm:$0xff] %v2704
        %2721 = vst [vmem:[%s328 + $0x70] sm:$0xff] %v2705
        %2722 = vst [vmem:[%s328 + $0x78] sm:$0xff] %v2706
        %s2723 = sand.u32 %s205, 1
        %s2724 = scalar_lea.sflag [#allocation4], %s2723
        %s2725 = sand.u32 %s205, 1
        %s2726 = smul.addr %s2725, 128
        %s2727 = scalar_lea.vmem [#allocation7], %s2726
        // Predicated region
        $region61: #{tpu_custom_call.1} parent=51 // pred_check
          %p2728 = pneg %p215
        $region62: #{tpu_custom_call.1} parent=51 // pred_check_branch
          %2730 = sbr.rel (%p2728) target = $region64
        $region63: #{tpu_custom_call.1} parent=51 // pred_region
          %s2732 = ssub.s32 2048, 2048
          %2733 = vsyncadd %s2724, %s2732
          %s2734 = smul.addr %s24, 16
          %s2735 = smul.addr %s2734, 128
          %s2736 = scalar_lea.hbm %s8, %s2735
          %s2737 = sshll.u32 %s2727, 4
          %s2738 = int_to_ptr.vmem [resolvable:$true] %s2737
          %2743 = dma.vmem_to_hbm [thread:$0]  %s2738, 2048, %s2736, %s2724, 512, 512, 32
        $region64: #{tpu_custom_call.1} parent=51 // pred_fallthru
          _
      $region52: #{tpu_custom_call.1} parent=5 // pred_fallthru
        _
      %p2744 = scmp.le.s32.totalorder 2, %s19
      // Predicated region
      $region65: #{tpu_custom_call.1} parent=5 // pred_check
        %p2745 = pneg %p2744
      $region66: #{tpu_custom_call.1} parent=5 // pred_check_branch
        %2747 = sbr.rel (%p2745) target = $region68
      $region67: #{tpu_custom_call.1} parent=5 // pred_region
        %s2748 = ssub.s32 %s19, 2
        // Predicated region
        $region69: #{tpu_custom_call.1} parent=67 // pred_check
          %p2749 = pneg %p221
        $region70: #{tpu_custom_call.1} parent=67 // pred_check_branch
          %2751 = sbr.rel (%p2749) target = $region72
        $region71: #{tpu_custom_call.1} parent=67 // pred_region
          %s2752 = sand.u32 %s206, 1
          %s2753 = scalar_lea.sflag [#allocation4], %s2752
          %s2754 = sand.u32 %s206, 1
          %s2755 = smul.addr %s2754, 128
          %s2756 = scalar_lea.vmem [#allocation7], %s2755
          %2757 = dma.done %s2753, 2048
        $region72: #{tpu_custom_call.1} parent=67 // pred_fallthru
          _
      $region68: #{tpu_custom_call.1} parent=5 // pred_fallthru
        _
    $region6: #{tpu_custom_call.1} parent=1 // loop_footer
      %s23 = sadd.s32 1, %s19
    $region7: #{tpu_custom_call.1} parent=1 // loop_footer_branch
      %18 = sbr.rel target = $region3
    $region8: #{tpu_custom_call.1} parent=1 // loop_exit
      _
    %2758 = vsyncpa [#allocation3], 1
    %s2759 = scalar_lea.sflag [#allocation3], 1
    %2760 = vsyncpa %s2759, 1
    %2761 = vsyncpa [#allocation6], 1
    %2762 = vsyncpa [#allocation4], 1
    %s2763 = scalar_lea.sflag [#allocation4], 1
    %2764 = vsyncpa %s2763, 1

</llo_original>
